<compile_context>
chip_gen: v7x
topology: tpu7x:2x2x1
jax: 0.10.0
libtpu: 0.0.40
codegen_flags: <defaults>
</compile_context>

<pallas_src>
import functools

import jax
import jax.numpy as jnp
from jax.experimental import pallas as pl
from jax.experimental.pallas import tpu as pltpu


# ----------------------------------------------------------------------------
# tiling helpers
# ----------------------------------------------------------------------------
def _pick_row_tile(m, cap):
    """Row tile: whole dim if it fits, else the largest multiple-of-8 divisor."""
    if m <= cap:
        return m
    start = cap - cap % 8
    for t in range(start, 7, -8):
        if m % t == 0:
            return t
    return cap  # ragged tail: OOB writes are clipped; reductions are masked


def _pick_col_tile(n, cap=256):
    if n <= cap:
        return n
    for t in (cap, 256, 128):
        if t <= cap and n % t == 0:
            return t
    return 128  # ragged tail in N (clipped writes)


# ----------------------------------------------------------------------------
# Pallas kernels
# ----------------------------------------------------------------------------
def _gemm_bias_stats_kernel(a_ref, b_ref, bias_ref, o_ref, sum_ref, sq_ref,
                            *, m_total, tm):
    """out = A @ B + bias (f32 accumulate), plus per-block column sum / sumsq.

    K is a single block, so there is no accumulator scratch and no
    init/finalize phase; bf16 operands feed the MXU at full rate.
    """
    z = jnp.dot(a_ref[...], b_ref[...], preferred_element_type=jnp.float32)
    z = z + bias_ref[...]
    o_ref[...] = z.astype(o_ref.dtype)

    # Column statistics over the *valid* rows only (mask a ragged row block).
    row = jax.lax.broadcasted_iota(jnp.int32, z.shape, 0) + pl.program_id(0) * tm
    zv = jnp.where(row < m_total, z, 0.0)
    sum_ref[...] = jnp.sum(zv, axis=0, keepdims=True)
    sq_ref[...] = jnp.sum(zv * zv, axis=0, keepdims=True)


def _affine_relu_kernel(x_ref, scale_ref, shift_ref, o_ref):
    """Per-channel affine (folded BatchNorm) + ReLU, elementwise, lane-dense."""
    y = x_ref[...] * scale_ref[...] + shift_ref[...]
    o_ref[...] = jnp.maximum(y, 0.0)


def _global_avgpool_kernel(x_ref, o_ref, acc_ref, *, s_total, ts):
    """(B, S, C) -> (B, C) mean over the spatial axis, accumulated per S-tile."""
    s = pl.program_id(0)

    @pl.when(s == 0)
    def _():
        acc_ref[...] = jnp.zeros_like(acc_ref)

    x = x_ref[...]
    col = jax.lax.broadcasted_iota(jnp.int32, x.shape, 1) + s * ts
    xv = jnp.where(col < s_total, x, 0.0)
    acc_ref[...] += jnp.sum(xv, axis=1)

    @pl.when(s == pl.num_programs(0) - 1)
    def _():
        o_ref[...] = (acc_ref[...] * (1.0 / s_total)).astype(o_ref.dtype)


# ----------------------------------------------------------------------------
# Kernel wrappers
# ----------------------------------------------------------------------------
def pallas_gemm_bias_stats(a, b, bias, *, tm_cap=256, tn_cap=256):
    """a: (M, K), b: (K, N), bias: (N,).

    Returns (out f32 (M, N), col_sum f32 (n_i, N), col_sq f32 (n_i, N)).
    Operands are cast to bf16 at the GEMM boundary; accumulation and all
    outputs stay f32. K is not tiled (<= a few thousand for this model).
    """
    M, K = a.shape
    K2, N = b.shape
    assert K == K2
    a = a.astype(jnp.bfloat16)
    b = b.astype(jnp.bfloat16)
    bias2 = bias.reshape(1, N).astype(jnp.float32)

    tm = _pick_row_tile(M, tm_cap)
    tn = _pick_col_tile(N, tn_cap)
    n_i = pl.cdiv(M, tm)
    n_j = pl.cdiv(N, tn)

    kernel = functools.partial(_gemm_bias_stats_kernel, m_total=M, tm=tm)
    out, col_sum, col_sq = pl.pallas_call(
        kernel,
        out_shape=(
            jax.ShapeDtypeStruct((M, N), jnp.float32),
            jax.ShapeDtypeStruct((n_i, N), jnp.float32),
            jax.ShapeDtypeStruct((n_i, N), jnp.float32),
        ),
        grid_spec=pltpu.PrefetchScalarGridSpec(
            num_scalar_prefetch=0,
            grid=(n_i, n_j),
            in_specs=[
                pl.BlockSpec((tm, K), lambda i, j: (i, 0)),
                pl.BlockSpec((K, tn), lambda i, j: (0, j)),
                pl.BlockSpec((1, tn), lambda i, j: (0, j)),
            ],
            out_specs=(
                pl.BlockSpec((tm, tn), lambda i, j: (i, j)),
                pl.BlockSpec((1, tn), lambda i, j: (i, j)),
                pl.BlockSpec((1, tn), lambda i, j: (i, j)),
            ),
        ),
        compiler_params=pltpu.CompilerParams(
            dimension_semantics=("parallel", "parallel"),
            vmem_limit_bytes=48 * 1024 * 1024),
    )(a, b, bias2)
    return out, col_sum, col_sq


def pallas_bn_relu(x_flat, scale, shift, *, rows_cap=1024):
    """Per-channel affine (BatchNorm with precomputed scale/shift) + ReLU.

    x_flat: (M, C) f32.  Rows are folded into the channel axis when C < 128 so
    the last (lane) dim of the stores is a multiple of 128 (no masked vst).
    """
    M, C = x_flat.shape
    k = 1
    if C < 128 and 128 % C == 0 and M % (128 // C) == 0:
        k = 128 // C
    Mk, Ck = M // k, C * k
    xk = x_flat.reshape(Mk, Ck)
    scale_k = jnp.tile(scale.astype(jnp.float32), k).reshape(1, Ck)
    shift_k = jnp.tile(shift.astype(jnp.float32), k).reshape(1, Ck)

    tr = _pick_row_tile(Mk, rows_cap)
    out = pl.pallas_call(
        _affine_relu_kernel,
        out_shape=jax.ShapeDtypeStruct((Mk, Ck), jnp.float32),
        grid_spec=pltpu.PrefetchScalarGridSpec(
            num_scalar_prefetch=0,
            grid=(pl.cdiv(Mk, tr),),
            in_specs=[
                pl.BlockSpec((tr, Ck), lambda i: (i, 0)),
                pl.BlockSpec((1, Ck), lambda i: (0, 0)),
                pl.BlockSpec((1, Ck), lambda i: (0, 0)),
            ],
            out_specs=pl.BlockSpec((tr, Ck), lambda i: (i, 0)),
        ),
        compiler_params=pltpu.CompilerParams(
            dimension_semantics=("parallel",)),
    )(xk, scale_k, shift_k)
    return out.reshape(M, C)


def pallas_global_avgpool(x_ndhwc, *, spatial_cap=512):
    """AdaptiveAvgPool3d((1,1,1)) + Flatten(1): (B, D, H, W, C) -> (B, C)."""
    B, D, H, W, C = x_ndhwc.shape
    S = D * H * W
    xf = x_ndhwc.reshape(B, S, C)
    ts = S if S <= spatial_cap else spatial_cap
    kernel = functools.partial(_global_avgpool_kernel, s_total=S, ts=ts)
    return pl.pallas_call(
        kernel,
        out_shape=jax.ShapeDtypeStruct((B, C), jnp.float32),
        grid_spec=pltpu.PrefetchScalarGridSpec(
            num_scalar_prefetch=0,
            grid=(pl.cdiv(S, ts),),
            in_specs=[pl.BlockSpec((B, ts, C), lambda s: (0, s, 0))],
            out_specs=pl.BlockSpec((B, C), lambda s: (0, 0)),
            scratch_shapes=[pltpu.VMEM((B, C), jnp.float32)],
        ),
        compiler_params=pltpu.CompilerParams(
            dimension_semantics=("arbitrary",)),
    )(xf)


# ----------------------------------------------------------------------------
# Model pieces (glue = reshapes / im2col / padding; heavy work runs in Pallas)
# ----------------------------------------------------------------------------
def patch_embed_3d(x_ndhwc, w, b, patch_size):
    """Conv3d with kernel = stride = patch_size (non-overlapping) as one GEMM.

    w keeps the PyTorch layout (E, Cin, pd, ph, pw); b: (E,)."""
    pd, ph, pw = patch_size
    B, D, H, W, C = x_ndhwc.shape
    pad_d, pad_h, pad_w = (-D) % pd, (-H) % ph, (-W) % pw
    if pad_d or pad_h or pad_w:
        x_ndhwc = jnp.pad(
            x_ndhwc, ((0, 0), (0, pad_d), (0, pad_h), (0, pad_w), (0, 0)))
    D2, H2, W2 = D + pad_d, H + pad_h, W + pad_w
    Dn, Hn, Wn = D2 // pd, H2 // ph, W2 // pw

    xr = x_ndhwc.astype(jnp.bfloat16).reshape(B, Dn, pd, Hn, ph, Wn, pw, C)
    xr = jnp.transpose(xr, (0, 1, 3, 5, 2, 4, 6, 7))   # (B,Dn,Hn,Wn,pd,ph,pw,C)
    a = xr.reshape(B * Dn * Hn * Wn, pd * ph * pw * C)

    E = w.shape[0]
    wmat = jnp.transpose(w, (2, 3, 4, 1, 0)).reshape(pd * ph * pw * C, E)
    out, _, _ = pallas_gemm_bias_stats(a, wmat, b)
    return out.reshape(B, Dn, Hn, Wn, E)


def conv_bn_relu_stage(x_ndhwc, w, b, gamma, beta, eps=1e-5):
    """Conv3d(k=3, s=2, p=1) -> BatchNorm3d (training-mode batch stats) -> ReLU.

    The conv runs as im2col (bf16) + Pallas GEMM; the GEMM also emits the
    per-channel column sums / sums-of-squares used for the BN statistics, so
    no extra full read pass over the conv output is needed."""
    B, D, H, W, Cin = x_ndhwc.shape
    Cout = w.shape[0]
    Do, Ho, Wo = (D - 1) // 2 + 1, (H - 1) // 2 + 1, (W - 1) // 2 + 1

    # TODO(synk): replace the im2col materialization with a direct-conv Pallas
    # kernel that reads the 27 strided taps from the NDHWC input in-kernel.
    xp = jnp.pad(x_ndhwc.astype(jnp.bfloat16),
                 ((0, 0), (1, 1), (1, 1), (1, 1), (0, 0)))
    taps = []
    for kd in range(3):
        for kh in range(3):
            for kw in range(3):
                taps.append(xp[:,
                               kd:kd + 2 * Do - 1:2,
                               kh:kh + 2 * Ho - 1:2,
                               kw:kw + 2 * Wo - 1:2, :])
    a = jnp.concatenate(taps, axis=-1).reshape(B * Do * Ho * Wo, 27 * Cin)
    wmat = jnp.transpose(w, (2, 3, 4, 1, 0)).reshape(27 * Cin, Cout)

    out, col_sum, col_sq = pallas_gemm_bias_stats(a, wmat, b)

    # BatchNorm3d training-mode statistics (biased variance, like PyTorch).
    m = float(B * Do * Ho * Wo)
    mean = jnp.sum(col_sum, axis=0) / m
    var = jnp.maximum(jnp.sum(col_sq, axis=0) / m - mean * mean, 0.0)
    scale = gamma / jnp.sqrt(var + eps)
    shift = beta - mean * scale

    y = pallas_bn_relu(out, scale, shift)
    return y.reshape(B, Do, Ho, Wo, Cout)


def init_params(key, in_channels, patch_size, embed_dim):
    """Deterministic synthetic parameters (PyTorch weight layouts)."""
    ks = jax.random.split(key, 8)
    pd, ph, pw = patch_size
    E = embed_dim

    def w_init(k, shape, fan_in):
        return jax.random.normal(k, shape, jnp.float32) * (1.0 / jnp.sqrt(fan_in))

    return {
        "pe_w": w_init(ks[0], (E, in_channels, pd, ph, pw),
                       in_channels * pd * ph * pw),
        "pe_b": jax.random.normal(ks[1], (E,), jnp.float32) * 0.01,
        "c1_w": w_init(ks[2], (2 * E, E, 3, 3, 3), E * 27),
        "c1_b": jax.random.normal(ks[3], (2 * E,), jnp.float32) * 0.01,
        "bn1_g": jnp.ones((2 * E,), jnp.float32),
        "bn1_b": jnp.zeros((2 * E,), jnp.float32),
        "c2_w": w_init(ks[4], (4 * E, 2 * E, 3, 3, 3), 2 * E * 27),
        "c2_b": jax.random.normal(ks[5], (4 * E,), jnp.float32) * 0.01,
        "bn2_g": jnp.ones((4 * E,), jnp.float32),
        "bn2_b": jnp.zeros((4 * E,), jnp.float32),
        "c3_w": w_init(ks[6], (8 * E, 4 * E, 3, 3, 3), 4 * E * 27),
        "c3_b": jax.random.normal(ks[7], (8 * E,), jnp.float32) * 0.01,
        "bn3_g": jnp.ones((8 * E,), jnp.float32),
        "bn3_b": jnp.zeros((8 * E,), jnp.float32),
    }


@functools.partial(jax.jit, static_argnames=("patch_size",))
def ali_swin3d_forward(x_ncdhw, params, patch_size=(4, 4, 4)):
    """Full AliSwin3D forward. Input NCDHW; returns (B, 8*embed_dim)."""
    # NCDHW -> NDHWC
    x = jnp.transpose(x_ncdhw, (0, 2, 3, 4, 1)).astype(jnp.float32)

    # PatchEmbed3D
    x = patch_embed_3d(x, params["pe_w"], params["pe_b"], patch_size)

    # features: 3 x (conv s2 -> BN -> ReLU)
    x = conv_bn_relu_stage(x, params["c1_w"], params["c1_b"],
                           params["bn1_g"], params["bn1_b"])
    x = conv_bn_relu_stage(x, params["c2_w"], params["c2_b"],
                           params["bn2_g"], params["bn2_b"])
    x = conv_bn_relu_stage(x, params["c3_w"], params["c3_b"],
                           params["bn3_g"], params["bn3_b"])

    # AdaptiveAvgPool3d((1,1,1)) + Flatten(1)
    return pallas_global_avgpool(x)


# NOTE: window_size / depths / num_heads / drop_path_rate / use_checkpoint are
# constructor arguments of the PyTorch module but are unused in its forward.

if __name__ == "__main__":
    key = jax.random.PRNGKey(0)
    k_x, k_p = jax.random.split(key)

    in_channels = 3
    patch_size = (4, 4, 4)
    embed_dim = 16                       # small synthetic width; out_dim = 128
    B, D, H, W = 2, 8, 16, 16

    x = jax.random.normal(k_x, (B, in_channels, D, H, W), jnp.float32)
    params = init_params(k_p, in_channels, patch_size, embed_dim)

    out = ali_swin3d_forward(x, params, patch_size=patch_size)
    out = jax.block_until_ready(out)

    assert out.shape == (B, 8 * embed_dim), out.shape
    assert bool(jnp.all(jnp.isfinite(out)))
    print("KERNEL_OK")
</pallas_src>

<mosaic_0001>
module attributes {stable_mosaic.version = 11 : i64} {
  func.func @_gemm_bias_stats_kernel(%arg0: i32, %arg1: i32, %arg2: memref<64x192xbf16, #tpu.memory_space<vmem>>, %arg3: memref<192x16xbf16, #tpu.memory_space<vmem>>, %arg4: memref<1x16xf32, #tpu.memory_space<vmem>>, %arg5: memref<64x16xf32, #tpu.memory_space<vmem>>, %arg6: memref<1x16xf32, #tpu.memory_space<vmem>>, %arg7: memref<1x16xf32, #tpu.memory_space<vmem>>) attributes {dimension_semantics = [#tpu.dimension_semantics<parallel>, #tpu.dimension_semantics<parallel>], iteration_bounds = array<i64: 1, 1>, scalar_prefetch = 0 : i64, scratch_operands = 0 : i64, tpu.core_type = #tpu.core_type<tc>, window_params = [{transform_indices = @transform_0, window_bounds = array<i64: 64, 192>}, {transform_indices = @transform_1, window_bounds = array<i64: 192, 16>}, {transform_indices = @transform_2, window_bounds = array<i64: 1, 16>}, {transform_indices = @transform_3, window_bounds = array<i64: 64, 16>}, {transform_indices = @transform_4, window_bounds = array<i64: 1, 16>}, {transform_indices = @transform_5, window_bounds = array<i64: 1, 16>}]} {
    %c0 = arith.constant 0 : index
    %c0_0 = arith.constant 0 : index
    %0 = vector.load %arg2[%c0, %c0_0] : memref<64x192xbf16, #tpu.memory_space<vmem>>, vector<64x192xbf16>
    %c0_1 = arith.constant 0 : index
    %c0_2 = arith.constant 0 : index
    %1 = vector.load %arg3[%c0_1, %c0_2] : memref<192x16xbf16, #tpu.memory_space<vmem>>, vector<192x16xbf16>
    %cst = arith.constant dense<0.000000e+00> : vector<64x16xf32>
    %2 = tpu.matmul %0, %1, %cst {dimension_numbers = #tpu.dot_dimension_numbers<[1], [0], [0], [1], [0, 0, 1, 1], [], []>} : vector<64x192xbf16>, vector<192x16xbf16>, vector<64x16xf32> -> vector<64x16xf32>
    %c0_3 = arith.constant 0 : index
    %c0_4 = arith.constant 0 : index
    %3 = vector.load %arg4[%c0_3, %c0_4] : memref<1x16xf32, #tpu.memory_space<vmem>>, vector<1x16xf32>
    %4 = vector.broadcast %3 : vector<1x16xf32> to vector<64x16xf32>
    %5 = arith.addf %2, %4 : vector<64x16xf32>
    %c0_5 = arith.constant 0 : index
    %c0_6 = arith.constant 0 : index
    %6 = vector.load %arg5[%c0_5, %c0_6] : memref<64x16xf32, #tpu.memory_space<vmem>>, vector<64x16xf32>
    tpu.vector_store %arg5[%c0_5, %c0_6], %5 {strides = array<i32>} : memref<64x16xf32, #tpu.memory_space<vmem>>, vector<64x16xf32>,
    %7 = tpu.iota {dimensions = array<i32: 0>} : vector<64x16xi32>
    %c64_i32 = arith.constant 64 : i32
    %8 = arith.muli %arg0, %c64_i32 : i32
    %9 = vector.broadcast %8 : i32 to vector<64x16xi32>
    %10 = arith.addi %7, %9 : vector<64x16xi32>
    %c64_i32_7 = arith.constant 64 : i32
    %11 = vector.broadcast %c64_i32_7 : i32 to vector<64x16xi32>
    %12 = arith.cmpi slt, %10, %11 : vector<64x16xi32>
    %cst_8 = arith.constant 0.000000e+00 : f32
    %13 = vector.broadcast %cst_8 : f32 to vector<64x16xf32>
    %14 = arith.select %12, %5, %13 : vector<64x16xi1>, vector<64x16xf32>
    %cst_9 = arith.constant dense<0.000000e+00> : vector<16xf32>
    %15 = vector.multi_reduction <add>, %14, %cst_9 [0] : vector<64x16xf32> to vector<16xf32>
    %16 = vector.shape_cast %15 : vector<16xf32> to vector<1x16xf32>
    %c0_10 = arith.constant 0 : index
    %c0_11 = arith.constant 0 : index
    %17 = vector.load %arg6[%c0_10, %c0_11] : memref<1x16xf32, #tpu.memory_space<vmem>>, vector<1x16xf32>
    tpu.vector_store %arg6[%c0_10, %c0_11], %16 {strides = array<i32>} : memref<1x16xf32, #tpu.memory_space<vmem>>, vector<1x16xf32>,
    %18 = arith.mulf %14, %14 : vector<64x16xf32>
    %cst_12 = arith.constant dense<0.000000e+00> : vector<16xf32>
    %19 = vector.multi_reduction <add>, %18, %cst_12 [0] : vector<64x16xf32> to vector<16xf32>
    %20 = vector.shape_cast %19 : vector<16xf32> to vector<1x16xf32>
    %c0_13 = arith.constant 0 : index
    %c0_14 = arith.constant 0 : index
    %21 = vector.load %arg7[%c0_13, %c0_14] : memref<1x16xf32, #tpu.memory_space<vmem>>, vector<1x16xf32>
    tpu.vector_store %arg7[%c0_13, %c0_14], %20 {strides = array<i32>} : memref<1x16xf32, #tpu.memory_space<vmem>>, vector<1x16xf32>,
    return
  }
  func.func @transform_0(%arg0: i32, %arg1: i32) -> (i32, i32) {
    %c0_i32 = arith.constant 0 : i32
    %c0_i32_0 = arith.constant 0 : i32
    return %arg0, %c0_i32 : i32, i32
  }
  func.func @transform_1(%arg0: i32, %arg1: i32) -> (i32, i32) {
    %c0_i32 = arith.constant 0 : i32
    %c0_i32_0 = arith.constant 0 : i32
    return %c0_i32, %arg1 : i32, i32
  }
  func.func @transform_2(%arg0: i32, %arg1: i32) -> (i32, i32) {
    %c0_i32 = arith.constant 0 : i32
    %c0_i32_0 = arith.constant 0 : i32
    return %c0_i32, %arg1 : i32, i32
  }
  func.func @transform_3(%arg0: i32, %arg1: i32) -> (i32, i32) {
    %c0_i32 = arith.constant 0 : i32
    return %arg0, %arg1 : i32, i32
  }
  func.func @transform_4(%arg0: i32, %arg1: i32) -> (i32, i32) {
    %c0_i32 = arith.constant 0 : i32
    return %arg0, %arg1 : i32, i32
  }
  func.func @transform_5(%arg0: i32, %arg1: i32) -> (i32, i32) {
    %c0_i32 = arith.constant 0 : i32
    return %arg0, %arg1 : i32, i32
  }
}

module attributes {stable_mosaic.version = 11 : i64} {
  func.func @_gemm_bias_stats_kernel(%arg0: i32, %arg1: i32, %arg2: memref<8x432xbf16, #tpu.memory_space<vmem>>, %arg3: memref<432x32xbf16, #tpu.memory_space<vmem>>, %arg4: memref<1x32xf32, #tpu.memory_space<vmem>>, %arg5: memref<8x32xf32, #tpu.memory_space<vmem>>, %arg6: memref<1x32xf32, #tpu.memory_space<vmem>>, %arg7: memref<1x32xf32, #tpu.memory_space<vmem>>) attributes {dimension_semantics = [#tpu.dimension_semantics<parallel>, #tpu.dimension_semantics<parallel>], iteration_bounds = array<i64: 1, 1>, scalar_prefetch = 0 : i64, scratch_operands = 0 : i64, tpu.core_type = #tpu.core_type<tc>, window_params = [{transform_indices = @transform_0, window_bounds = array<i64: 8, 432>}, {transform_indices = @transform_1, window_bounds = array<i64: 432, 32>}, {transform_indices = @transform_2, window_bounds = array<i64: 1, 32>}, {transform_indices = @transform_3, window_bounds = array<i64: 8, 32>}, {transform_indices = @transform_4, window_bounds = array<i64: 1, 32>}, {transform_indices = @transform_5, window_bounds = array<i64: 1, 32>}]} {
    %c0 = arith.constant 0 : index
    %c0_0 = arith.constant 0 : index
    %0 = vector.load %arg2[%c0, %c0_0] : memref<8x432xbf16, #tpu.memory_space<vmem>>, vector<8x432xbf16>
    %c0_1 = arith.constant 0 : index
    %c0_2 = arith.constant 0 : index
    %1 = vector.load %arg3[%c0_1, %c0_2] : memref<432x32xbf16, #tpu.memory_space<vmem>>, vector<432x32xbf16>
    %cst = arith.constant dense<0.000000e+00> : vector<8x32xf32>
    %2 = tpu.matmul %0, %1, %cst {dimension_numbers = #tpu.dot_dimension_numbers<[1], [0], [0], [1], [0, 0, 1, 1], [], []>} : vector<8x432xbf16>, vector<432x32xbf16>, vector<8x32xf32> -> vector<8x32xf32>
    %c0_3 = arith.constant 0 : index
    %c0_4 = arith.constant 0 : index
    %3 = vector.load %arg4[%c0_3, %c0_4] : memref<1x32xf32, #tpu.memory_space<vmem>>, vector<1x32xf32>
    %4 = vector.broadcast %3 : vector<1x32xf32> to vector<8x32xf32>
    %5 = arith.addf %2, %4 : vector<8x32xf32>
    %c0_5 = arith.constant 0 : index
    %c0_6 = arith.constant 0 : index
    %6 = vector.load %arg5[%c0_5, %c0_6] : memref<8x32xf32, #tpu.memory_space<vmem>>, vector<8x32xf32>
    tpu.vector_store %arg5[%c0_5, %c0_6], %5 {strides = array<i32>} : memref<8x32xf32, #tpu.memory_space<vmem>>, vector<8x32xf32>,
    %7 = tpu.iota {dimensions = array<i32: 0>} : vector<8x32xi32>
    %c8_i32 = arith.constant 8 : i32
    %8 = arith.muli %arg0, %c8_i32 : i32
    %9 = vector.broadcast %8 : i32 to vector<8x32xi32>
    %10 = arith.addi %7, %9 : vector<8x32xi32>
    %c8_i32_7 = arith.constant 8 : i32
    %11 = vector.broadcast %c8_i32_7 : i32 to vector<8x32xi32>
    %12 = arith.cmpi slt, %10, %11 : vector<8x32xi32>
    %cst_8 = arith.constant 0.000000e+00 : f32
    %13 = vector.broadcast %cst_8 : f32 to vector<8x32xf32>
    %14 = arith.select %12, %5, %13 : vector<8x32xi1>, vector<8x32xf32>
    %cst_9 = arith.constant dense<0.000000e+00> : vector<32xf32>
    %15 = vector.multi_reduction <add>, %14, %cst_9 [0] : vector<8x32xf32> to vector<32xf32>
    %16 = vector.shape_cast %15 : vector<32xf32> to vector<1x32xf32>
    %c0_10 = arith.constant 0 : index
    %c0_11 = arith.constant 0 : index
    %17 = vector.load %arg6[%c0_10, %c0_11] : memref<1x32xf32, #tpu.memory_space<vmem>>, vector<1x32xf32>
    tpu.vector_store %arg6[%c0_10, %c0_11], %16 {strides = array<i32>} : memref<1x32xf32, #tpu.memory_space<vmem>>, vector<1x32xf32>,
    %18 = arith.mulf %14, %14 : vector<8x32xf32>
    %cst_12 = arith.constant dense<0.000000e+00> : vector<32xf32>
    %19 = vector.multi_reduction <add>, %18, %cst_12 [0] : vector<8x32xf32> to vector<32xf32>
    %20 = vector.shape_cast %19 : vector<32xf32> to vector<1x32xf32>
    %c0_13 = arith.constant 0 : index
    %c0_14 = arith.constant 0 : index
    %21 = vector.load %arg7[%c0_13, %c0_14] : memref<1x32xf32, #tpu.memory_space<vmem>>, vector<1x32xf32>
    tpu.vector_store %arg7[%c0_13, %c0_14], %20 {strides = array<i32>} : memref<1x32xf32, #tpu.memory_space<vmem>>, vector<1x32xf32>,
    return
  }
  func.func @transform_0(%arg0: i32, %arg1: i32) -> (i32, i32) {
    %c0_i32 = arith.constant 0 : i32
    %c0_i32_0 = arith.constant 0 : i32
    return %arg0, %c0_i32 : i32, i32
  }
  func.func @transform_1(%arg0: i32, %arg1: i32) -> (i32, i32) {
    %c0_i32 = arith.constant 0 : i32
    %c0_i32_0 = arith.constant 0 : i32
    return %c0_i32, %arg1 : i32, i32
  }
  func.func @transform_2(%arg0: i32, %arg1: i32) -> (i32, i32) {
    %c0_i32 = arith.constant 0 : i32
    %c0_i32_0 = arith.constant 0 : i32
    return %c0_i32, %arg1 : i32, i32
  }
  func.func @transform_3(%arg0: i32, %arg1: i32) -> (i32, i32) {
    %c0_i32 = arith.constant 0 : i32
    return %arg0, %arg1 : i32, i32
  }
  func.func @transform_4(%arg0: i32, %arg1: i32) -> (i32, i32) {
    %c0_i32 = arith.constant 0 : i32
    return %arg0, %arg1 : i32, i32
  }
  func.func @transform_5(%arg0: i32, %arg1: i32) -> (i32, i32) {
    %c0_i32 = arith.constant 0 : i32
    return %arg0, %arg1 : i32, i32
  }
}

module attributes {stable_mosaic.version = 11 : i64} {
  func.func @_affine_relu_kernel(%arg0: i32, %arg1: memref<2x128xf32, #tpu.memory_space<vmem>>, %arg2: memref<1x128xf32, #tpu.memory_space<vmem>>, %arg3: memref<1x128xf32, #tpu.memory_space<vmem>>, %arg4: memref<2x128xf32, #tpu.memory_space<vmem>>) attributes {dimension_semantics = [#tpu.dimension_semantics<parallel>], iteration_bounds = array<i64: 1>, scalar_prefetch = 0 : i64, scratch_operands = 0 : i64, tpu.core_type = #tpu.core_type<tc>, window_params = [{transform_indices = @transform_0, window_bounds = array<i64: 2, 128>}, {pipeline_mode = #tpu.pipeline_mode<synchronous>, transform_indices = @transform_1, window_bounds = array<i64: 1, 128>}, {pipeline_mode = #tpu.pipeline_mode<synchronous>, transform_indices = @transform_2, window_bounds = array<i64: 1, 128>}, {transform_indices = @transform_3, window_bounds = array<i64: 2, 128>}]} {
    %c0 = arith.constant 0 : index
    %c0_0 = arith.constant 0 : index
    %0 = vector.load %arg1[%c0, %c0_0] : memref<2x128xf32, #tpu.memory_space<vmem>>, vector<2x128xf32>
    %c0_1 = arith.constant 0 : index
    %c0_2 = arith.constant 0 : index
    %1 = vector.load %arg2[%c0_1, %c0_2] : memref<1x128xf32, #tpu.memory_space<vmem>>, vector<1x128xf32>
    %2 = vector.broadcast %1 : vector<1x128xf32> to vector<2x128xf32>
    %3 = arith.mulf %0, %2 : vector<2x128xf32>
    %c0_3 = arith.constant 0 : index
    %c0_4 = arith.constant 0 : index
    %4 = vector.load %arg3[%c0_3, %c0_4] : memref<1x128xf32, #tpu.memory_space<vmem>>, vector<1x128xf32>
    %5 = vector.broadcast %4 : vector<1x128xf32> to vector<2x128xf32>
    %6 = arith.addf %3, %5 : vector<2x128xf32>
    %cst = arith.constant 0.000000e+00 : f32
    %7 = vector.broadcast %cst : f32 to vector<2x128xf32>
    %8 = arith.maximumf %6, %7 : vector<2x128xf32>
    %c0_5 = arith.constant 0 : index
    %c0_6 = arith.constant 0 : index
    %9 = vector.load %arg4[%c0_5, %c0_6] : memref<2x128xf32, #tpu.memory_space<vmem>>, vector<2x128xf32>
    tpu.vector_store %arg4[%c0_5, %c0_6], %8 {strides = array<i32>} : memref<2x128xf32, #tpu.memory_space<vmem>>, vector<2x128xf32>,
    return
  }
  func.func @transform_0(%arg0: i32) -> (i32, i32) {
    %c0_i32 = arith.constant 0 : i32
    %c0_i32_0 = arith.constant 0 : i32
    return %arg0, %c0_i32 : i32, i32
  }
  func.func @transform_1(%arg0: i32) -> (i32, i32) {
    %c0_i32 = arith.constant 0 : i32
    %c0_i32_0 = arith.constant 0 : i32
    %c0_i32_1 = arith.constant 0 : i32
    return %c0_i32, %c0_i32_0 : i32, i32
  }
  func.func @transform_2(%arg0: i32) -> (i32, i32) {
    %c0_i32 = arith.constant 0 : i32
    %c0_i32_0 = arith.constant 0 : i32
    %c0_i32_1 = arith.constant 0 : i32
    return %c0_i32, %c0_i32_0 : i32, i32
  }
  func.func @transform_3(%arg0: i32) -> (i32, i32) {
    %c0_i32 = arith.constant 0 : i32
    %c0_i32_0 = arith.constant 0 : i32
    return %arg0, %c0_i32 : i32, i32
  }
}

module attributes {stable_mosaic.version = 11 : i64} {
  func.func @_affine_relu_kernel(%arg0: i32, %arg1: memref<1x128xf32, #tpu.memory_space<vmem>>, %arg2: memref<1x128xf32, #tpu.memory_space<vmem>>, %arg3: memref<1x128xf32, #tpu.memory_space<vmem>>, %arg4: memref<1x128xf32, #tpu.memory_space<vmem>>) attributes {dimension_semantics = [#tpu.dimension_semantics<parallel>], iteration_bounds = array<i64: 1>, scalar_prefetch = 0 : i64, scratch_operands = 0 : i64, tpu.core_type = #tpu.core_type<tc>, window_params = [{transform_indices = @transform_0, window_bounds = array<i64: 1, 128>}, {pipeline_mode = #tpu.pipeline_mode<synchronous>, transform_indices = @transform_1, window_bounds = array<i64: 1, 128>}, {pipeline_mode = #tpu.pipeline_mode<synchronous>, transform_indices = @transform_2, window_bounds = array<i64: 1, 128>}, {transform_indices = @transform_3, window_bounds = array<i64: 1, 128>}]} {
    %c0 = arith.constant 0 : index
    %c0_0 = arith.constant 0 : index
    %0 = vector.load %arg1[%c0, %c0_0] : memref<1x128xf32, #tpu.memory_space<vmem>>, vector<1x128xf32>
    %c0_1 = arith.constant 0 : index
    %c0_2 = arith.constant 0 : index
    %1 = vector.load %arg2[%c0_1, %c0_2] : memref<1x128xf32, #tpu.memory_space<vmem>>, vector<1x128xf32>
    %2 = arith.mulf %0, %1 : vector<1x128xf32>
    %c0_3 = arith.constant 0 : index
    %c0_4 = arith.constant 0 : index
    %3 = vector.load %arg3[%c0_3, %c0_4] : memref<1x128xf32, #tpu.memory_space<vmem>>, vector<1x128xf32>
    %4 = arith.addf %2, %3 : vector<1x128xf32>
    %cst = arith.constant 0.000000e+00 : f32
    %5 = vector.broadcast %cst : f32 to vector<1x128xf32>
    %6 = arith.maximumf %4, %5 : vector<1x128xf32>
    %c0_5 = arith.constant 0 : index
    %c0_6 = arith.constant 0 : index
    %7 = vector.load %arg4[%c0_5, %c0_6] : memref<1x128xf32, #tpu.memory_space<vmem>>, vector<1x128xf32>
    tpu.vector_store %arg4[%c0_5, %c0_6], %6 {strides = array<i32>} : memref<1x128xf32, #tpu.memory_space<vmem>>, vector<1x128xf32>,
    return
  }
  func.func @transform_0(%arg0: i32) -> (i32, i32) {
    %c0_i32 = arith.constant 0 : i32
    %c0_i32_0 = arith.constant 0 : i32
    return %arg0, %c0_i32 : i32, i32
  }
  func.func @transform_1(%arg0: i32) -> (i32, i32) {
    %c0_i32 = arith.constant 0 : i32
    %c0_i32_0 = arith.constant 0 : i32
    %c0_i32_1 = arith.constant 0 : i32
    return %c0_i32, %c0_i32_0 : i32, i32
  }
  func.func @transform_2(%arg0: i32) -> (i32, i32) {
    %c0_i32 = arith.constant 0 : i32
    %c0_i32_0 = arith.constant 0 : i32
    %c0_i32_1 = arith.constant 0 : i32
    return %c0_i32, %c0_i32_0 : i32, i32
  }
  func.func @transform_3(%arg0: i32) -> (i32, i32) {
    %c0_i32 = arith.constant 0 : i32
    %c0_i32_0 = arith.constant 0 : i32
    return %arg0, %c0_i32 : i32, i32
  }
}

module attributes {stable_mosaic.version = 11 : i64} {
  func.func @_gemm_bias_stats_kernel(%arg0: i32, %arg1: i32, %arg2: memref<2x864xbf16, #tpu.memory_space<vmem>>, %arg3: memref<864x64xbf16, #tpu.memory_space<vmem>>, %arg4: memref<1x64xf32, #tpu.memory_space<vmem>>, %arg5: memref<2x64xf32, #tpu.memory_space<vmem>>, %arg6: memref<1x64xf32, #tpu.memory_space<vmem>>, %arg7: memref<1x64xf32, #tpu.memory_space<vmem>>) attributes {dimension_semantics = [#tpu.dimension_semantics<parallel>, #tpu.dimension_semantics<parallel>], iteration_bounds = array<i64: 1, 1>, scalar_prefetch = 0 : i64, scratch_operands = 0 : i64, tpu.core_type = #tpu.core_type<tc>, window_params = [{transform_indices = @transform_0, window_bounds = array<i64: 2, 864>}, {transform_indices = @transform_1, window_bounds = array<i64: 864, 64>}, {transform_indices = @transform_2, window_bounds = array<i64: 1, 64>}, {transform_indices = @transform_3, window_bounds = array<i64: 2, 64>}, {transform_indices = @transform_4, window_bounds = array<i64: 1, 64>}, {transform_indices = @transform_5, window_bounds = array<i64: 1, 64>}]} {
    %c0 = arith.constant 0 : index
    %c0_0 = arith.constant 0 : index
    %0 = vector.load %arg2[%c0, %c0_0] : memref<2x864xbf16, #tpu.memory_space<vmem>>, vector<2x864xbf16>
    %c0_1 = arith.constant 0 : index
    %c0_2 = arith.constant 0 : index
    %1 = vector.load %arg3[%c0_1, %c0_2] : memref<864x64xbf16, #tpu.memory_space<vmem>>, vector<864x64xbf16>
    %cst = arith.constant dense<0.000000e+00> : vector<2x64xf32>
    %2 = tpu.matmul %0, %1, %cst {dimension_numbers = #tpu.dot_dimension_numbers<[1], [0], [0], [1], [0, 0, 1, 1], [], []>} : vector<2x864xbf16>, vector<864x64xbf16>, vector<2x64xf32> -> vector<2x64xf32>
    %c0_3 = arith.constant 0 : index
    %c0_4 = arith.constant 0 : index
    %3 = vector.load %arg4[%c0_3, %c0_4] : memref<1x64xf32, #tpu.memory_space<vmem>>, vector<1x64xf32>
    %4 = vector.broadcast %3 : vector<1x64xf32> to vector<2x64xf32>
    %5 = arith.addf %2, %4 : vector<2x64xf32>
    %c0_5 = arith.constant 0 : index
    %c0_6 = arith.constant 0 : index
    %6 = vector.load %arg5[%c0_5, %c0_6] : memref<2x64xf32, #tpu.memory_space<vmem>>, vector<2x64xf32>
    tpu.vector_store %arg5[%c0_5, %c0_6], %5 {strides = array<i32>} : memref<2x64xf32, #tpu.memory_space<vmem>>, vector<2x64xf32>,
    %7 = tpu.iota {dimensions = array<i32: 0>} : vector<2x64xi32>
    %c2_i32 = arith.constant 2 : i32
    %8 = arith.muli %arg0, %c2_i32 : i32
    %9 = vector.broadcast %8 : i32 to vector<2x64xi32>
    %10 = arith.addi %7, %9 : vector<2x64xi32>
    %c2_i32_7 = arith.constant 2 : i32
    %11 = vector.broadcast %c2_i32_7 : i32 to vector<2x64xi32>
    %12 = arith.cmpi slt, %10, %11 : vector<2x64xi32>
    %cst_8 = arith.constant 0.000000e+00 : f32
    %13 = vector.broadcast %cst_8 : f32 to vector<2x64xf32>
    %14 = arith.select %12, %5, %13 : vector<2x64xi1>, vector<2x64xf32>
    %cst_9 = arith.constant dense<0.000000e+00> : vector<64xf32>
    %15 = vector.multi_reduction <add>, %14, %cst_9 [0] : vector<2x64xf32> to vector<64xf32>
    %16 = vector.shape_cast %15 : vector<64xf32> to vector<1x64xf32>
    %c0_10 = arith.constant 0 : index
    %c0_11 = arith.constant 0 : index
    %17 = vector.load %arg6[%c0_10, %c0_11] : memref<1x64xf32, #tpu.memory_space<vmem>>, vector<1x64xf32>
    tpu.vector_store %arg6[%c0_10, %c0_11], %16 {strides = array<i32>} : memref<1x64xf32, #tpu.memory_space<vmem>>, vector<1x64xf32>,
    %18 = arith.mulf %14, %14 : vector<2x64xf32>
    %cst_12 = arith.constant dense<0.000000e+00> : vector<64xf32>
    %19 = vector.multi_reduction <add>, %18, %cst_12 [0] : vector<2x64xf32> to vector<64xf32>
    %20 = vector.shape_cast %19 : vector<64xf32> to vector<1x64xf32>
    %c0_13 = arith.constant 0 : index
    %c0_14 = arith.constant 0 : index
    %21 = vector.load %arg7[%c0_13, %c0_14] : memref<1x64xf32, #tpu.memory_space<vmem>>, vector<1x64xf32>
    tpu.vector_store %arg7[%c0_13, %c0_14], %20 {strides = array<i32>} : memref<1x64xf32, #tpu.memory_space<vmem>>, vector<1x64xf32>,
    return
  }
  func.func @transform_0(%arg0: i32, %arg1: i32) -> (i32, i32) {
    %c0_i32 = arith.constant 0 : i32
    %c0_i32_0 = arith.constant 0 : i32
    return %arg0, %c0_i32 : i32, i32
  }
  func.func @transform_1(%arg0: i32, %arg1: i32) -> (i32, i32) {
    %c0_i32 = arith.constant 0 : i32
    %c0_i32_0 = arith.constant 0 : i32
    return %c0_i32, %arg1 : i32, i32
  }
  func.func @transform_2(%arg0: i32, %arg1: i32) -> (i32, i32) {
    %c0_i32 = arith.constant 0 : i32
    %c0_i32_0 = arith.constant 0 : i32
    return %c0_i32, %arg1 : i32, i32
  }
  func.func @transform_3(%arg0: i32, %arg1: i32) -> (i32, i32) {
    %c0_i32 = arith.constant 0 : i32
    return %arg0, %arg1 : i32, i32
  }
  func.func @transform_4(%arg0: i32, %arg1: i32) -> (i32, i32) {
    %c0_i32 = arith.constant 0 : i32
    return %arg0, %arg1 : i32, i32
  }
  func.func @transform_5(%arg0: i32, %arg1: i32) -> (i32, i32) {
    %c0_i32 = arith.constant 0 : i32
    return %arg0, %arg1 : i32, i32
  }
}

module attributes {stable_mosaic.version = 11 : i64} {
  func.func @_gemm_bias_stats_kernel(%arg0: i32, %arg1: i32, %arg2: memref<2x1728xbf16, #tpu.memory_space<vmem>>, %arg3: memref<1728x128xbf16, #tpu.memory_space<vmem>>, %arg4: memref<1x128xf32, #tpu.memory_space<vmem>>, %arg5: memref<2x128xf32, #tpu.memory_space<vmem>>, %arg6: memref<1x128xf32, #tpu.memory_space<vmem>>, %arg7: memref<1x128xf32, #tpu.memory_space<vmem>>) attributes {dimension_semantics = [#tpu.dimension_semantics<parallel>, #tpu.dimension_semantics<parallel>], iteration_bounds = array<i64: 1, 1>, scalar_prefetch = 0 : i64, scratch_operands = 0 : i64, tpu.core_type = #tpu.core_type<tc>, window_params = [{transform_indices = @transform_0, window_bounds = array<i64: 2, 1728>}, {transform_indices = @transform_1, window_bounds = array<i64: 1728, 128>}, {transform_indices = @transform_2, window_bounds = array<i64: 1, 128>}, {transform_indices = @transform_3, window_bounds = array<i64: 2, 128>}, {transform_indices = @transform_4, window_bounds = array<i64: 1, 128>}, {transform_indices = @transform_5, window_bounds = array<i64: 1, 128>}]} {
    %c0 = arith.constant 0 : index
    %c0_0 = arith.constant 0 : index
    %0 = vector.load %arg2[%c0, %c0_0] : memref<2x1728xbf16, #tpu.memory_space<vmem>>, vector<2x1728xbf16>
    %c0_1 = arith.constant 0 : index
    %c0_2 = arith.constant 0 : index
    %1 = vector.load %arg3[%c0_1, %c0_2] : memref<1728x128xbf16, #tpu.memory_space<vmem>>, vector<1728x128xbf16>
    %cst = arith.constant dense<0.000000e+00> : vector<2x128xf32>
    %2 = tpu.matmul %0, %1, %cst {dimension_numbers = #tpu.dot_dimension_numbers<[1], [0], [0], [1], [0, 0, 1, 1], [], []>} : vector<2x1728xbf16>, vector<1728x128xbf16>, vector<2x128xf32> -> vector<2x128xf32>
    %c0_3 = arith.constant 0 : index
    %c0_4 = arith.constant 0 : index
    %3 = vector.load %arg4[%c0_3, %c0_4] : memref<1x128xf32, #tpu.memory_space<vmem>>, vector<1x128xf32>
    %4 = vector.broadcast %3 : vector<1x128xf32> to vector<2x128xf32>
    %5 = arith.addf %2, %4 : vector<2x128xf32>
    %c0_5 = arith.constant 0 : index
    %c0_6 = arith.constant 0 : index
    %6 = vector.load %arg5[%c0_5, %c0_6] : memref<2x128xf32, #tpu.memory_space<vmem>>, vector<2x128xf32>
    tpu.vector_store %arg5[%c0_5, %c0_6], %5 {strides = array<i32>} : memref<2x128xf32, #tpu.memory_space<vmem>>, vector<2x128xf32>,
    %7 = tpu.iota {dimensions = array<i32: 0>} : vector<2x128xi32>
    %c2_i32 = arith.constant 2 : i32
    %8 = arith.muli %arg0, %c2_i32 : i32
    %9 = vector.broadcast %8 : i32 to vector<2x128xi32>
    %10 = arith.addi %7, %9 : vector<2x128xi32>
    %c2_i32_7 = arith.constant 2 : i32
    %11 = vector.broadcast %c2_i32_7 : i32 to vector<2x128xi32>
    %12 = arith.cmpi slt, %10, %11 : vector<2x128xi32>
    %cst_8 = arith.constant 0.000000e+00 : f32
    %13 = vector.broadcast %cst_8 : f32 to vector<2x128xf32>
    %14 = arith.select %12, %5, %13 : vector<2x128xi1>, vector<2x128xf32>
    %cst_9 = arith.constant dense<0.000000e+00> : vector<128xf32>
    %15 = vector.multi_reduction <add>, %14, %cst_9 [0] : vector<2x128xf32> to vector<128xf32>
    %16 = vector.shape_cast %15 : vector<128xf32> to vector<1x128xf32>
    %c0_10 = arith.constant 0 : index
    %c0_11 = arith.constant 0 : index
    %17 = vector.load %arg6[%c0_10, %c0_11] : memref<1x128xf32, #tpu.memory_space<vmem>>, vector<1x128xf32>
    tpu.vector_store %arg6[%c0_10, %c0_11], %16 {strides = array<i32>} : memref<1x128xf32, #tpu.memory_space<vmem>>, vector<1x128xf32>,
    %18 = arith.mulf %14, %14 : vector<2x128xf32>
    %cst_12 = arith.constant dense<0.000000e+00> : vector<128xf32>
    %19 = vector.multi_reduction <add>, %18, %cst_12 [0] : vector<2x128xf32> to vector<128xf32>
    %20 = vector.shape_cast %19 : vector<128xf32> to vector<1x128xf32>
    %c0_13 = arith.constant 0 : index
    %c0_14 = arith.constant 0 : index
    %21 = vector.load %arg7[%c0_13, %c0_14] : memref<1x128xf32, #tpu.memory_space<vmem>>, vector<1x128xf32>
    tpu.vector_store %arg7[%c0_13, %c0_14], %20 {strides = array<i32>} : memref<1x128xf32, #tpu.memory_space<vmem>>, vector<1x128xf32>,
    return
  }
  func.func @transform_0(%arg0: i32, %arg1: i32) -> (i32, i32) {
    %c0_i32 = arith.constant 0 : i32
    %c0_i32_0 = arith.constant 0 : i32
    return %arg0, %c0_i32 : i32, i32
  }
  func.func @transform_1(%arg0: i32, %arg1: i32) -> (i32, i32) {
    %c0_i32 = arith.constant 0 : i32
    %c0_i32_0 = arith.constant 0 : i32
    return %c0_i32, %arg1 : i32, i32
  }
  func.func @transform_2(%arg0: i32, %arg1: i32) -> (i32, i32) {
    %c0_i32 = arith.constant 0 : i32
    %c0_i32_0 = arith.constant 0 : i32
    return %c0_i32, %arg1 : i32, i32
  }
  func.func @transform_3(%arg0: i32, %arg1: i32) -> (i32, i32) {
    %c0_i32 = arith.constant 0 : i32
    return %arg0, %arg1 : i32, i32
  }
  func.func @transform_4(%arg0: i32, %arg1: i32) -> (i32, i32) {
    %c0_i32 = arith.constant 0 : i32
    return %arg0, %arg1 : i32, i32
  }
  func.func @transform_5(%arg0: i32, %arg1: i32) -> (i32, i32) {
    %c0_i32 = arith.constant 0 : i32
    return %arg0, %arg1 : i32, i32
  }
}

module attributes {stable_mosaic.version = 11 : i64} {
  func.func @_global_avgpool_kernel(%arg0: i32, %arg1: memref<2x1x128xf32, #tpu.memory_space<vmem>>, %arg2: memref<2x128xf32, #tpu.memory_space<vmem>>, %arg3: memref<2x128xf32, #tpu.memory_space<vmem>>) attributes {dimension_semantics = [#tpu.dimension_semantics<arbitrary>], iteration_bounds = array<i64: 1>, scalar_prefetch = 0 : i64, scratch_operands = 1 : i64, tpu.core_type = #tpu.core_type<tc>, window_params = [{transform_indices = @transform_0, window_bounds = array<i64: 2, 1, 128>}, {pipeline_mode = #tpu.pipeline_mode<synchronous>, transform_indices = @transform_1, window_bounds = array<i64: 2, 128>}]} {
    %c0_i32 = arith.constant 0 : i32
    %0 = arith.cmpi eq, %arg0, %c0_i32 : i32
    %1 = arith.extui %0 : i1 to i32
    %c0_i32_0 = arith.constant 0 : i32
    %2 = arith.cmpi ne, %1, %c0_i32_0 : i32
    scf.if %2 {
      %cst_11 = arith.constant 0.000000e+00 : f32
      %19 = vector.broadcast %cst_11 : f32 to vector<2x128xf32>
      %c0_12 = arith.constant 0 : index
      %c0_13 = arith.constant 0 : index
      %20 = vector.load %arg3[%c0_12, %c0_13] : memref<2x128xf32, #tpu.memory_space<vmem>>, vector<2x128xf32>
      tpu.vector_store %arg3[%c0_12, %c0_13], %19 {strides = array<i32>} : memref<2x128xf32, #tpu.memory_space<vmem>>, vector<2x128xf32>,
    } else {
    }
    %c0 = arith.constant 0 : index
    %c0_1 = arith.constant 0 : index
    %c0_2 = arith.constant 0 : index
    %3 = vector.load %arg1[%c0, %c0_1, %c0_2] : memref<2x1x128xf32, #tpu.memory_space<vmem>>, vector<2x1x128xf32>
    %4 = tpu.iota {dimensions = array<i32: 1>} : vector<2x1x128xi32>
    %c1_i32 = arith.constant 1 : i32
    %5 = arith.muli %arg0, %c1_i32 : i32
    %6 = vector.broadcast %5 : i32 to vector<2x1x128xi32>
    %7 = arith.addi %4, %6 : vector<2x1x128xi32>
    %c1_i32_3 = arith.constant 1 : i32
    %8 = vector.broadcast %c1_i32_3 : i32 to vector<2x1x128xi32>
    %9 = arith.cmpi slt, %7, %8 : vector<2x1x128xi32>
    %cst = arith.constant 0.000000e+00 : f32
    %10 = vector.broadcast %cst : f32 to vector<2x1x128xf32>
    %11 = arith.select %9, %3, %10 : vector<2x1x128xi1>, vector<2x1x128xf32>
    %c0_4 = arith.constant 0 : index
    %c0_5 = arith.constant 0 : index
    %12 = vector.load %arg3[%c0_4, %c0_5] : memref<2x128xf32, #tpu.memory_space<vmem>>, vector<2x128xf32>
    %cst_6 = arith.constant dense<0.000000e+00> : vector<2x128xf32>
    %13 = vector.multi_reduction <add>, %11, %cst_6 [1] : vector<2x1x128xf32> to vector<2x128xf32>
    %14 = arith.addf %12, %13 : vector<2x128xf32>
    %c0_7 = arith.constant 0 : index
    %c0_8 = arith.constant 0 : index
    %15 = vector.load %arg3[%c0_7, %c0_8] : memref<2x128xf32, #tpu.memory_space<vmem>>, vector<2x128xf32>
    tpu.vector_store %arg3[%c0_7, %c0_8], %14 {strides = array<i32>} : memref<2x128xf32, #tpu.memory_space<vmem>>, vector<2x128xf32>,
    %c0_i32_9 = arith.constant 0 : i32
    %16 = arith.cmpi eq, %arg0, %c0_i32_9 : i32
    %17 = arith.extui %16 : i1 to i32
    %c0_i32_10 = arith.constant 0 : i32
    %18 = arith.cmpi ne, %17, %c0_i32_10 : i32
    scf.if %18 {
      %c0_11 = arith.constant 0 : index
      %c0_12 = arith.constant 0 : index
      %19 = vector.load %arg3[%c0_11, %c0_12] : memref<2x128xf32, #tpu.memory_space<vmem>>, vector<2x128xf32>
      %cst_13 = arith.constant 1.000000e+00 : f32
      %20 = vector.broadcast %cst_13 : f32 to vector<2x128xf32>
      %21 = arith.mulf %19, %20 : vector<2x128xf32>
      %c0_14 = arith.constant 0 : index
      %c0_15 = arith.constant 0 : index
      %22 = vector.load %arg2[%c0_14, %c0_15] : memref<2x128xf32, #tpu.memory_space<vmem>>, vector<2x128xf32>
      tpu.vector_store %arg2[%c0_14, %c0_15], %21 {strides = array<i32>} : memref<2x128xf32, #tpu.memory_space<vmem>>, vector<2x128xf32>,
    } else {
    }
    return
  }
  func.func @transform_0(%arg0: i32) -> (i32, i32, i32) {
    %c0_i32 = arith.constant 0 : i32
    %c0_i32_0 = arith.constant 0 : i32
    %c0_i32_1 = arith.constant 0 : i32
    return %c0_i32, %arg0, %c0_i32_0 : i32, i32, i32
  }
  func.func @transform_1(%arg0: i32) -> (i32, i32) {
    %c0_i32 = arith.constant 0 : i32
    %c0_i32_0 = arith.constant 0 : i32
    %c0_i32_1 = arith.constant 0 : i32
    return %c0_i32, %c0_i32_0 : i32, i32
  }
}

</mosaic_0001>

<llo_original>
// kernel: ali_swin3d_forward.8
$region0: #{ali_swin3d_forward.8}
  #allocation0 [shape = 'u32[]', space=smem, size = 0x4, offset = 0x4, fixed_abs, tag = 'smem constant byte address 0x4 - core index']
  #allocation1 [shape = 'u32[144,128]{1,0:T(1,128)}', space=vmem, size = 0x12000, scoped, tag = 'internal scratch']
  %s0 = inlined_call_operand.vmem [shape: bf16[64,192], index: 0, kind: input, shape index: {}]
  %s1 = inlined_call_operand.vmem [shape: bf16[192,16], index: 1, kind: input, shape index: {}]
  %s2 = inlined_call_operand.vmem [shape: f32[1,16], index: 2, kind: input, shape index: {}]
  %s3 = inlined_call_operand.vmem [shape: f32[64,16], index: 3, kind: output, shape index: {0}]
  %s4 = inlined_call_operand.hbm [shape: f32[1,16], index: 4, kind: output, shape index: {1}]
  %s5 = inlined_call_operand.hbm [shape: f32[1,16], index: 5, kind: output, shape index: {2}]
  %6 = xla_tuple %s3, %s4, %s5
  %s7 = sld [smem:[#allocation0]]
  $region38: #{ali_swin3d_forward.8} parent=0
    _
  %s9 = ssub.s32 1, %s7
  %s10 = scalar_select 0, %s9, %s7
  $region1: #{ali_swin3d_forward.8} parent=0
    #allocation2 [shape = 'u8[512]{0}', space=vmem, size = 0x400, scoped, tag = 'output window, operand 1, single buffered']
    #allocation3 [shape = 's32[1]{0}', space=sflag, size = 0x4, scoped, tag = 'scoped memory for ali_swin3d_forward.8']
    #allocation4 [shape = 'u8[512]{0}', space=vmem, size = 0x400, scoped, tag = 'output window, operand 2, single buffered']
    #allocation5 [shape = 's32[1]{0}', space=sflag, size = 0x4, scoped, tag = 'scoped memory for ali_swin3d_forward.8']
    %11 = vsyncpa [#allocation3], 0
    %12 = vsyncpa [#allocation5], 0
    // Predicated region
    $region2: #{ali_swin3d_forward.8} parent=1 // pred_check
      _
    $region3: #{ali_swin3d_forward.8} parent=1 // pred_check_branch
      %14 = sbr.rel (0) target = $region5
    $region4: #{ali_swin3d_forward.8} parent=1 // pred_region
      _
    $region5: #{ali_swin3d_forward.8} parent=1 // pred_fallthru
      _
    // Predicated region
    $region6: #{ali_swin3d_forward.8} parent=1 // pred_check
      _
    $region7: #{ali_swin3d_forward.8} parent=1 // pred_check_branch
      %16 = sbr.rel (0) target = $region9
    $region8: #{ali_swin3d_forward.8} parent=1 // pred_region
      _
    $region9: #{ali_swin3d_forward.8} parent=1 // pred_fallthru
      _
    // Predicated region
    $region10: #{ali_swin3d_forward.8} parent=1 // pred_check
      _
    $region11: #{ali_swin3d_forward.8} parent=1 // pred_check_branch
      %18 = sbr.rel (0) target = $region13
    $region12: #{ali_swin3d_forward.8} parent=1 // pred_region
      _
    $region13: #{ali_swin3d_forward.8} parent=1 // pred_fallthru
      _
    %v20 = vld [vmem:[%s0] sm:$0xff]
    %v21 = vld [vmem:[%s0 + $0x8] sm:$0xff]
    %v22 = vld [vmem:[%s0 + $0x10] sm:$0xff]
    %v23 = vld [vmem:[%s0 + $0x18] sm:$0xff]
    %v24 = vld [vmem:[%s0 + $0x20] sm:$0xff]
    %v25 = vld [vmem:[%s0 + $0x28] sm:$0xff]
    %v26 = vld [vmem:[%s0 + $0x30] sm:$0xff]
    %v27 = vld [vmem:[%s0 + $0x38] sm:$0xff]
    %v28 = vld [vmem:[%s1] sm:$0xf]
    %v29 = vld [vmem:[%s1 + $0x4] sm:$0xf]
    %v30 = vld [vmem:[%s1 + $0x8] sm:$0xf]
    %v31 = vld [vmem:[%s1 + $0xc] sm:$0xf]
    %v32 = vld [vmem:[%s1 + $0x10] sm:$0xf]
    %v33 = vld [vmem:[%s1 + $0x14] sm:$0xf]
    %v34 = vld [vmem:[%s1 + $0x18] sm:$0xf]
    %v35 = vld [vmem:[%s1 + $0x1c] sm:$0xf]
    %v36 = vld [vmem:[%s1 + $0x20] sm:$0xf]
    %v37 = vld [vmem:[%s1 + $0x24] sm:$0xf]
    %v38 = vld [vmem:[%s1 + $0x28] sm:$0xf]
    %v39 = vld [vmem:[%s1 + $0x2c] sm:$0xf]
    %v40 = vld [vmem:[%s1 + $0x30] sm:$0xf]
    %v41 = vld [vmem:[%s1 + $0x34] sm:$0xf]
    %v42 = vld [vmem:[%s1 + $0x38] sm:$0xf]
    %v43 = vld [vmem:[%s1 + $0x3c] sm:$0xf]
    %v44 = vld [vmem:[%s1 + $0x40] sm:$0xf]
    %v45 = vld [vmem:[%s1 + $0x44] sm:$0xf]
    %v46 = vld [vmem:[%s1 + $0x48] sm:$0xf]
    %v47 = vld [vmem:[%s1 + $0x4c] sm:$0xf]
    %v48 = vld [vmem:[%s1 + $0x50] sm:$0xf]
    %v49 = vld [vmem:[%s1 + $0x54] sm:$0xf]
    %v50 = vld [vmem:[%s1 + $0x58] sm:$0xf]
    %v51 = vld [vmem:[%s1 + $0x5c] sm:$0xf]
    %v52 = vld [vmem:[%s2] sm:$0x1]
    %v54 = vlaneseq
    %v55 = vshrl.u32 %v54, 7
    %v56 = vsub.s32 0, %v55
    %v57 = vrot.slane %v52, %v56
    %v67 = vunpack.c.l.b16 %v20
    %v68 = vunpack.c.h.b16 %v20
    %v69 = vunpack.c.l.b16 %v21
    %v70 = vunpack.c.h.b16 %v21
    %v71 = vunpack.c.l.b16 %v22
    %v72 = vunpack.c.h.b16 %v22
    %v73 = vunpack.c.l.b16 %v23
    %v74 = vunpack.c.h.b16 %v23
    %v75 = vunpack.c.l.b16 %v24
    %v76 = vunpack.c.h.b16 %v24
    %v77 = vunpack.c.l.b16 %v25
    %v78 = vunpack.c.h.b16 %v25
    %v79 = vunpack.c.l.b16 %v26
    %v80 = vunpack.c.h.b16 %v26
    %v81 = vunpack.c.l.b16 %v27
    %v82 = vunpack.c.h.b16 %v27
    %v83 = vpack.c.b16 %v69, %v67
    %v84 = vpack.c.b16 %v70, %v68
    %v85 = vpack.c.b16 %v73, %v71
    %v86 = vpack.c.b16 %v74, %v72
    %v87 = vpack.c.b16 %v77, %v75
    %v88 = vpack.c.b16 %v78, %v76
    %v89 = vpack.c.b16 %v81, %v79
    %v90 = vpack.c.b16 %v82, %v80
    %v119 = vunpack.c.l.b16 %v28
    %v120 = vunpack.c.l.b16 %v29
    %v121 = vunpack.c.l.b16 %v30
    %v122 = vunpack.c.l.b16 %v31
    %v123 = vunpack.c.l.b16 %v32
    %v124 = vunpack.c.l.b16 %v33
    %v125 = vunpack.c.l.b16 %v34
    %v126 = vunpack.c.l.b16 %v35
    %v127 = vunpack.c.l.b16 %v36
    %v128 = vunpack.c.l.b16 %v37
    %v129 = vunpack.c.l.b16 %v38
    %v130 = vunpack.c.l.b16 %v39
    %v131 = vunpack.c.l.b16 %v40
    %v132 = vunpack.c.l.b16 %v41
    %v133 = vunpack.c.l.b16 %v42
    %v134 = vunpack.c.l.b16 %v43
    %v135 = vunpack.c.l.b16 %v44
    %v136 = vunpack.c.l.b16 %v45
    %v137 = vunpack.c.l.b16 %v46
    %v138 = vunpack.c.l.b16 %v47
    %v139 = vunpack.c.l.b16 %v48
    %v140 = vunpack.c.l.b16 %v49
    %v141 = vunpack.c.l.b16 %v50
    %v142 = vunpack.c.l.b16 %v51
    %v143 = vpack.c.b16 %v120, %v119
    %v144 = vpack.c.b16 %v122, %v121
    %v145 = vpack.c.b16 %v124, %v123
    %v146 = vpack.c.b16 %v126, %v125
    %v147 = vpack.c.b16 %v128, %v127
    %v148 = vpack.c.b16 %v130, %v129
    %v149 = vpack.c.b16 %v132, %v131
    %v150 = vpack.c.b16 %v134, %v133
    %v151 = vpack.c.b16 %v136, %v135
    %v152 = vpack.c.b16 %v138, %v137
    %v153 = vpack.c.b16 %v140, %v139
    %v154 = vpack.c.b16 %v142, %v141
    %vm167 = vcmask 523264
    %v169 = vsel %vm167, %v84, 0
    %v172 = vsel %vm167, %v86, 0
    %v175 = vsel %vm167, %v88, 0
    %v178 = vsel %vm167, %v90, 0
    %180 = vmatprep.subr.bf16.mxu0 0
    %181 = vmatpush1.bf16.msra.mxu0 %v143
    %182 = vmatprep.subr.bf16.mxu0 0
    %183 = vmatpush1.bf16.msra.mxu0 %v144
    %184 = vmatprep.subr.bf16.mxu0 0
    %185 = vmatpush1.bf16.msra.mxu0 %v145
    %186 = vmatprep.subr.bf16.mxu0 0
    %187 = vmatpush1.bf16.msra.mxu0 %v146
    %188 = vmatprep.subr.bf16.mxu0 0
    %189 = vmatpush1.bf16.msra.mxu0 %v147
    %190 = vmatprep.subr.bf16.mxu0 0
    %191 = vmatpush1.bf16.msra.mxu0 %v148
    %192 = vmatprep.subr.bf16.mxu0 0
    %193 = vmatpush1.bf16.msra.mxu0 %v149
    %194 = vmatprep.subr.bf16.mxu0 0
    %195 = vmatpush1.bf16.msra.mxu0 %v150
    %196 = vmatprep.subr.bf16.mxu0 0
    %197 = vmatpush1.bf16.msra.mxu0 %v151
    %198 = vmatprep.subr.bf16.mxu0 0
    %199 = vmatpush1.bf16.msra.mxu0 %v152
    %200 = vmatprep.subr.bf16.mxu0 0
    %201 = vmatpush1.bf16.msra.mxu0 %v153
    %202 = vmatprep.subr.bf16.mxu0 0
    %203 = vmatpush1.bf16.msra.mxu0 %v154
    %204 = vmatprep.subr.bf16.mxu0 0
    %205 = vmatpush1.bf16.msra.mxu0 0
    %206 = vmatprep.subr.bf16.mxu0 0
    %207 = vmatpush1.bf16.msra.mxu0 0
    %208 = vmatprep.subr.bf16.mxu0 0
    %209 = vmatpush1.bf16.msra.mxu0 0
    %210 = vmatprep.subr.bf16.mxu0 0
    %211 = vmatpush1.bf16.msra.mxu0 0
    %212 = vmatprep.mubr.bf16.mxu0 %v169
    %213 = vmatmul.mubr.bf16.gmra.mrb[0].mxu0 %v83
    %v214 = vpop.f32.mrb[0].mxu0
    %v215 = vadd.f32 %v57, %v214
    %v216 = vpop.f32.mrb[0].mxu0
    %v217 = vpop.f32.mrb[0].mxu0
    %v218 = vadd.f32 %v57, %v217
    %v219 = vpop.f32.mrb[0].mxu0
    %220 = vmatprep.mubr.bf16.mxu0 %v172
    %221 = vmatmul.mubr.bf16.gmra.mrb[0].mxu0 %v85
    %v222 = vpop.f32.mrb[0].mxu0
    %v223 = vadd.f32 %v57, %v222
    %v224 = vpop.f32.mrb[0].mxu0
    %v225 = vpop.f32.mrb[0].mxu0
    %v226 = vadd.f32 %v57, %v225
    %v227 = vpop.f32.mrb[0].mxu0
    %228 = vmatprep.mubr.bf16.mxu0 %v175
    %229 = vmatmul.mubr.bf16.gmra.mrb[0].mxu0 %v87
    %v230 = vpop.f32.mrb[0].mxu0
    %v231 = vadd.f32 %v57, %v230
    %v232 = vpop.f32.mrb[0].mxu0
    %v233 = vpop.f32.mrb[0].mxu0
    %v234 = vadd.f32 %v57, %v233
    %v235 = vpop.f32.mrb[0].mxu0
    %236 = vmatprep.mubr.bf16.mxu0 %v178
    %237 = vmatmul.mubr.bf16.gmra.mrb[0].mxu0 %v89
    %v238 = vpop.f32.mrb[0].mxu0
    %v239 = vadd.f32 %v57, %v238
    %v240 = vpop.f32.mrb[0].mxu0
    %v241 = vpop.f32.mrb[0].mxu0
    %v242 = vadd.f32 %v57, %v241
    %v243 = vpop.f32.mrb[0].mxu0
    %244 = vdwg.mxu0
    %vm245 = vcmask 130048
    %246 = vst.msk [vmem:[%s3] sm:$0xff] %vm245, %v215
    %247 = vst.msk [vmem:[%s3 + $0x8] sm:$0xff] %vm245, %v218
    %248 = vst.msk [vmem:[%s3 + $0x10] sm:$0xff] %vm245, %v223
    %249 = vst.msk [vmem:[%s3 + $0x18] sm:$0xff] %vm245, %v226
    %250 = vst.msk [vmem:[%s3 + $0x20] sm:$0xff] %vm245, %v231
    %251 = vst.msk [vmem:[%s3 + $0x28] sm:$0xff] %vm245, %v234
    %252 = vst.msk [vmem:[%s3 + $0x30] sm:$0xff] %vm245, %v239
    %253 = vst.msk [vmem:[%s3 + $0x38] sm:$0xff] %vm245, %v242
    %v254 = vlaneseq
    %v255 = vshrl.u32 %v254, 7
    %v256 = vadd.s32 %v255, 8
    %v257 = vadd.s32 %v255, 16
    %v258 = vadd.s32 %v255, 24
    %v259 = vadd.s32 %v255, 32
    %v260 = vadd.s32 %v255, 40
    %v261 = vadd.s32 %v255, 48
    %v262 = vadd.s32 %v255, 56
    %s263 = smul.u32 0, 64
    %v264 = vstv %s263
    %v265 = vadd.s32 %v255, %v264
    %v266 = vadd.s32 %v256, %v264
    %v267 = vadd.s32 %v257, %v264
    %v268 = vadd.s32 %v258, %v264
    %v269 = vadd.s32 %v259, %v264
    %v270 = vadd.s32 %v260, %v264
    %v271 = vadd.s32 %v261, %v264
    %v272 = vadd.s32 %v262, %v264
    %vm273 = vcmp.lt.s32.totalorder %v265, 64
    %vm274 = vcmp.lt.s32.totalorder %v266, 64
    %vm275 = vcmp.lt.s32.totalorder %v267, 64
    %vm276 = vcmp.lt.s32.totalorder %v268, 64
    %vm277 = vcmp.lt.s32.totalorder %v269, 64
    %vm278 = vcmp.lt.s32.totalorder %v270, 64
    %vm279 = vcmp.lt.s32.totalorder %v271, 64
    %vm280 = vcmp.lt.s32.totalorder %v272, 64
    %v281 = vsel %vm273, %v215, 0.0
    %v282 = vsel %vm274, %v218, 0.0
    %v283 = vsel %vm275, %v223, 0.0
    %v284 = vsel %vm276, %v226, 0.0
    %v285 = vsel %vm277, %v231, 0.0
    %v286 = vsel %vm278, %v234, 0.0
    %v287 = vsel %vm279, %v239, 0.0
    %v288 = vsel %vm280, %v242, 0.0
    %v289 = vsel %vm245, %v281, 0.0
    %v290 = vsel %vm245, %v282, 0.0
    %v291 = vadd.f32 %v289, %v290
    %v292 = vsel %vm245, %v283, 0.0
    %v293 = vadd.f32 %v291, %v292
    %v294 = vsel %vm245, %v284, 0.0
    %v295 = vadd.f32 %v293, %v294
    %v296 = vsel %vm245, %v285, 0.0
    %v297 = vadd.f32 %v295, %v296
    %v298 = vsel %vm245, %v286, 0.0
    %v299 = vadd.f32 %v297, %v298
    %v300 = vsel %vm245, %v287, 0.0
    %v301 = vadd.f32 %v299, %v300
    %v302 = vsel %vm245, %v288, 0.0
    %v303 = vadd.f32 %v301, %v302
    %v304 = vrot.slane %v303, 4
    %v305 = vadd.f32 %v303, %v304
    %v306 = vrot.slane %v305, 2
    %v307 = vadd.f32 %v305, %v306
    %v308 = vrot.slane %v307, 1
    %v309 = vadd.f32 %v307, %v308
    %vm310 = vcmask 122880
    %311 = vst.msk [vmem:[#allocation2] sm:$0x1] %vm310, %v309
    %v312 = vmul.f32 %v281, %v281
    %v313 = vmul.f32 %v282, %v282
    %v314 = vmul.f32 %v283, %v283
    %v315 = vmul.f32 %v284, %v284
    %v316 = vmul.f32 %v285, %v285
    %v317 = vmul.f32 %v286, %v286
    %v318 = vmul.f32 %v287, %v287
    %v319 = vmul.f32 %v288, %v288
    %v320 = vsel %vm245, %v312, 0.0
    %v321 = vsel %vm245, %v313, 0.0
    %v322 = vadd.f32 %v320, %v321
    %v323 = vsel %vm245, %v314, 0.0
    %v324 = vadd.f32 %v322, %v323
    %v325 = vsel %vm245, %v315, 0.0
    %v326 = vadd.f32 %v324, %v325
    %v327 = vsel %vm245, %v316, 0.0
    %v328 = vadd.f32 %v326, %v327
    %v329 = vsel %vm245, %v317, 0.0
    %v330 = vadd.f32 %v328, %v329
    %v331 = vsel %vm245, %v318, 0.0
    %v332 = vadd.f32 %v330, %v331
    %v333 = vsel %vm245, %v319, 0.0
    %v334 = vadd.f32 %v332, %v333
    %v335 = vrot.slane %v334, 4
    %v336 = vadd.f32 %v334, %v335
    %v337 = vrot.slane %v336, 2
    %v338 = vadd.f32 %v336, %v337
    %v339 = vrot.slane %v338, 1
    %v340 = vadd.f32 %v338, %v339
    %341 = vst.msk [vmem:[#allocation4] sm:$0x1] %vm310, %v340
    // Predicated region
    $region14: #{ali_swin3d_forward.8} parent=1 // pred_check
      _
    $region15: #{ali_swin3d_forward.8} parent=1 // pred_check_branch
      %343 = sbr.rel (0) target = $region17
    $region16: #{ali_swin3d_forward.8} parent=1 // pred_region
      _
    $region17: #{ali_swin3d_forward.8} parent=1 // pred_fallthru
      _
    // Predicated region
    $region18: #{ali_swin3d_forward.8} parent=1 // pred_check
      _
    $region19: #{ali_swin3d_forward.8} parent=1 // pred_check_branch
      %345 = sbr.rel (0) target = $region21
    $region20: #{ali_swin3d_forward.8} parent=1 // pred_region
      %s347 = ssub.s32 16, 16
      %348 = vsyncadd [#allocation3], %s347
      %s350 = sshll.u32 [#allocation2], 4
      %s351 = int_to_ptr.vmem [resolvable:$true] %s350
      %353 = dma.vmem_to_hbm [thread:$0]  %s351, 16, %s4, [#allocation3]
    $region21: #{ali_swin3d_forward.8} parent=1 // pred_fallthru
      _
    // Predicated region
    $region22: #{ali_swin3d_forward.8} parent=1 // pred_check
      _
    $region23: #{ali_swin3d_forward.8} parent=1 // pred_check_branch
      %355 = sbr.rel (0) target = $region25
    $region24: #{ali_swin3d_forward.8} parent=1 // pred_region
      %s357 = ssub.s32 16, 16
      %358 = vsyncadd [#allocation5], %s357
      %s360 = sshll.u32 [#allocation4], 4
      %s361 = int_to_ptr.vmem [resolvable:$true] %s360
      %363 = dma.vmem_to_hbm [thread:$0]  %s361, 16, %s5, [#allocation5]
    $region25: #{ali_swin3d_forward.8} parent=1 // pred_fallthru
      _
    // Predicated region
    $region26: #{ali_swin3d_forward.8} parent=1 // pred_check
      _
    $region27: #{ali_swin3d_forward.8} parent=1 // pred_check_branch
      %365 = sbr.rel (0) target = $region29
    $region28: #{ali_swin3d_forward.8} parent=1 // pred_region
      _
    $region29: #{ali_swin3d_forward.8} parent=1 // pred_fallthru
      _
    // Predicated region
    $region30: #{ali_swin3d_forward.8} parent=1 // pred_check
      _
    $region31: #{ali_swin3d_forward.8} parent=1 // pred_check_branch
      %367 = sbr.rel (0) target = $region33
    $region32: #{ali_swin3d_forward.8} parent=1 // pred_region
      %368 = dma.done [#allocation3], 16
    $region33: #{ali_swin3d_forward.8} parent=1 // pred_fallthru
      _
    // Predicated region
    $region34: #{ali_swin3d_forward.8} parent=1 // pred_check
      _
    $region35: #{ali_swin3d_forward.8} parent=1 // pred_check_branch
      %370 = sbr.rel (0) target = $region37
    $region36: #{ali_swin3d_forward.8} parent=1 // pred_region
      %371 = dma.done [#allocation5], 16
    $region37: #{ali_swin3d_forward.8} parent=1 // pred_fallthru
      _
    %372 = vsyncpa [#allocation3], 1
    %373 = vsyncpa [#allocation5], 1

// kernel: ali_swin3d_forward.9
$region0: #{ali_swin3d_forward.9}
  #allocation0 [shape = 'u32[]', space=smem, size = 0x4, offset = 0x4, fixed_abs, tag = 'smem constant byte address 0x4 - core index']
  #allocation1 [shape = 'u32[144,128]{1,0:T(1,128)}', space=vmem, size = 0x12000, scoped, tag = 'internal scratch']
  %s0 = inlined_call_operand.vmem [shape: bf16[8,432], index: 0, kind: input, shape index: {}]
  %s1 = inlined_call_operand.vmem [shape: bf16[432,32], index: 1, kind: input, shape index: {}]
  %s2 = inlined_call_operand.vmem [shape: f32[1,32], index: 2, kind: input, shape index: {}]
  %s3 = inlined_call_operand.vmem [shape: f32[8,32], index: 3, kind: output, shape index: {0}]
  %s4 = inlined_call_operand.vmem [shape: f32[1,32], index: 4, kind: output, shape index: {1}]
  %s5 = inlined_call_operand.vmem [shape: f32[1,32], index: 5, kind: output, shape index: {2}]
  %6 = xla_tuple %s3, %s4, %s5
  %s7 = sld [smem:[#allocation0]]
  $region38: #{ali_swin3d_forward.9} parent=0
    _
  %s9 = ssub.s32 1, %s7
  %s10 = scalar_select 0, %s9, %s7
  // Predicated region
  $region2: #{ali_swin3d_forward.9} parent=0 // pred_check
    _
  $region3: #{ali_swin3d_forward.9} parent=0 // pred_check_branch
    %12 = sbr.rel (0) target = $region5
  $region4: #{ali_swin3d_forward.9} parent=0 // pred_region
    _
  $region5: #{ali_swin3d_forward.9} parent=0 // pred_fallthru
    _
  // Predicated region
  $region6: #{ali_swin3d_forward.9} parent=0 // pred_check
    _
  $region7: #{ali_swin3d_forward.9} parent=0 // pred_check_branch
    %14 = sbr.rel (0) target = $region9
  $region8: #{ali_swin3d_forward.9} parent=0 // pred_region
    _
  $region9: #{ali_swin3d_forward.9} parent=0 // pred_fallthru
    _
  // Predicated region
  $region10: #{ali_swin3d_forward.9} parent=0 // pred_check
    _
  $region11: #{ali_swin3d_forward.9} parent=0 // pred_check_branch
    %16 = sbr.rel (0) target = $region13
  $region12: #{ali_swin3d_forward.9} parent=0 // pred_region
    _
  $region13: #{ali_swin3d_forward.9} parent=0 // pred_fallthru
    _
  %v18 = vld [vmem:[%s0] sm:$0xff]
  %v19 = vld [vmem:[%s0 + $0x8] sm:$0xff]
  %v20 = vld [vmem:[%s1] sm:$0xf]
  %v21 = vld [vmem:[%s1 + $0x4] sm:$0xf]
  %v22 = vld [vmem:[%s1 + $0x8] sm:$0xf]
  %v23 = vld [vmem:[%s1 + $0xc] sm:$0xf]
  %v24 = vld [vmem:[%s1 + $0x10] sm:$0xf]
  %v25 = vld [vmem:[%s1 + $0x14] sm:$0xf]
  %v26 = vld [vmem:[%s1 + $0x18] sm:$0xf]
  %v27 = vld [vmem:[%s1 + $0x1c] sm:$0xf]
  %v28 = vld [vmem:[%s1 + $0x20] sm:$0xf]
  %v29 = vld [vmem:[%s1 + $0x24] sm:$0xf]
  %v30 = vld [vmem:[%s1 + $0x28] sm:$0xf]
  %v31 = vld [vmem:[%s1 + $0x2c] sm:$0xf]
  %v32 = vld [vmem:[%s1 + $0x30] sm:$0xf]
  %v33 = vld [vmem:[%s1 + $0x34] sm:$0xf]
  %v34 = vld [vmem:[%s1 + $0x38] sm:$0xf]
  %v35 = vld [vmem:[%s1 + $0x3c] sm:$0xf]
  %v36 = vld [vmem:[%s1 + $0x40] sm:$0xf]
  %v37 = vld [vmem:[%s1 + $0x44] sm:$0xf]
  %v38 = vld [vmem:[%s1 + $0x48] sm:$0xf]
  %v39 = vld [vmem:[%s1 + $0x4c] sm:$0xf]
  %v40 = vld [vmem:[%s1 + $0x50] sm:$0xf]
  %v41 = vld [vmem:[%s1 + $0x54] sm:$0xf]
  %v42 = vld [vmem:[%s1 + $0x58] sm:$0xf]
  %v43 = vld [vmem:[%s1 + $0x5c] sm:$0xf]
  %v44 = vld [vmem:[%s1 + $0x60] sm:$0xf]
  %v45 = vld [vmem:[%s1 + $0x64] sm:$0xf]
  %v46 = vld [vmem:[%s1 + $0x68] sm:$0xf]
  %v47 = vld [vmem:[%s1 + $0x6c] sm:$0xf]
  %v48 = vld [vmem:[%s1 + $0x70] sm:$0xf]
  %v49 = vld [vmem:[%s1 + $0x74] sm:$0xf]
  %v50 = vld [vmem:[%s1 + $0x78] sm:$0xf]
  %v51 = vld [vmem:[%s1 + $0x7c] sm:$0xf]
  %v52 = vld [vmem:[%s1 + $0x80] sm:$0xf]
  %v53 = vld [vmem:[%s1 + $0x84] sm:$0xf]
  %v54 = vld [vmem:[%s1 + $0x88] sm:$0xf]
  %v55 = vld [vmem:[%s1 + $0x8c] sm:$0xf]
  %v56 = vld [vmem:[%s1 + $0x90] sm:$0xf]
  %v57 = vld [vmem:[%s1 + $0x94] sm:$0xf]
  %v58 = vld [vmem:[%s1 + $0x98] sm:$0xf]
  %v59 = vld [vmem:[%s1 + $0x9c] sm:$0xf]
  %v60 = vld [vmem:[%s1 + $0xa0] sm:$0xf]
  %v61 = vld [vmem:[%s1 + $0xa4] sm:$0xf]
  %v62 = vld [vmem:[%s1 + $0xa8] sm:$0xf]
  %v63 = vld [vmem:[%s1 + $0xac] sm:$0xf]
  %v64 = vld [vmem:[%s1 + $0xb0] sm:$0xf]
  %v65 = vld [vmem:[%s1 + $0xb4] sm:$0xf]
  %v66 = vld [vmem:[%s1 + $0xb8] sm:$0xf]
  %v67 = vld [vmem:[%s1 + $0xbc] sm:$0xf]
  %v68 = vld [vmem:[%s1 + $0xc0] sm:$0xf]
  %v69 = vld [vmem:[%s1 + $0xc4] sm:$0xf]
  %v70 = vld [vmem:[%s1 + $0xc8] sm:$0xf]
  %v71 = vld [vmem:[%s1 + $0xcc] sm:$0xf]
  %v72 = vld [vmem:[%s1 + $0xd0] sm:$0xf]
  %v73 = vld [vmem:[%s1 + $0xd4] sm:$0xf]
  %v74 = vld [vmem:[%s2] sm:$0x1]
  %v76 = vlaneseq
  %v77 = vshrl.u32 %v76, 7
  %v78 = vsub.s32 0, %v77
  %v79 = vrot.slane %v74, %v78
  %v83 = vunpack.c.l.b16 %v18
  %v84 = vunpack.c.h.b16 %v18
  %v85 = vunpack.c.l.b16 %v19
  %v86 = vunpack.c.h.b16 %v19
  %v87 = vpack.c.b16 %v83, %v83
  %v88 = vpack.c.b16 %v84, %v84
  %v89 = vpack.c.b16 %v85, %v85
  %v90 = vpack.c.b16 %v86, %v86
  %v148 = vunpack.c.l.b16 %v20
  %v149 = vunpack.c.l.b16 %v21
  %v150 = vunpack.c.l.b16 %v22
  %v151 = vunpack.c.l.b16 %v23
  %v152 = vunpack.c.l.b16 %v24
  %v153 = vunpack.c.l.b16 %v25
  %v154 = vunpack.c.l.b16 %v26
  %v155 = vunpack.c.l.b16 %v27
  %v156 = vunpack.c.l.b16 %v28
  %v157 = vunpack.c.l.b16 %v29
  %v158 = vunpack.c.l.b16 %v30
  %v159 = vunpack.c.l.b16 %v31
  %v160 = vunpack.c.l.b16 %v32
  %v161 = vunpack.c.l.b16 %v33
  %v162 = vunpack.c.l.b16 %v34
  %v163 = vunpack.c.l.b16 %v35
  %v164 = vunpack.c.l.b16 %v36
  %v165 = vunpack.c.l.b16 %v37
  %v166 = vunpack.c.l.b16 %v38
  %v167 = vunpack.c.l.b16 %v39
  %v168 = vunpack.c.l.b16 %v40
  %v169 = vunpack.c.l.b16 %v41
  %v170 = vunpack.c.l.b16 %v42
  %v171 = vunpack.c.l.b16 %v43
  %v172 = vunpack.c.l.b16 %v44
  %v173 = vunpack.c.l.b16 %v45
  %v174 = vunpack.c.l.b16 %v46
  %v175 = vunpack.c.l.b16 %v47
  %v176 = vunpack.c.l.b16 %v48
  %v177 = vunpack.c.l.b16 %v49
  %v178 = vunpack.c.l.b16 %v50
  %v179 = vunpack.c.l.b16 %v51
  %v180 = vunpack.c.l.b16 %v52
  %v181 = vunpack.c.l.b16 %v53
  %v182 = vunpack.c.l.b16 %v54
  %v183 = vunpack.c.l.b16 %v55
  %v184 = vunpack.c.l.b16 %v56
  %v185 = vunpack.c.l.b16 %v57
  %v186 = vunpack.c.l.b16 %v58
  %v187 = vunpack.c.l.b16 %v59
  %v188 = vunpack.c.l.b16 %v60
  %v189 = vunpack.c.l.b16 %v61
  %v190 = vunpack.c.l.b16 %v62
  %v191 = vunpack.c.l.b16 %v63
  %v192 = vunpack.c.l.b16 %v64
  %v193 = vunpack.c.l.b16 %v65
  %v194 = vunpack.c.l.b16 %v66
  %v195 = vunpack.c.l.b16 %v67
  %v196 = vunpack.c.l.b16 %v68
  %v197 = vunpack.c.l.b16 %v69
  %v198 = vunpack.c.l.b16 %v70
  %v199 = vunpack.c.l.b16 %v71
  %v200 = vunpack.c.l.b16 %v72
  %v201 = vunpack.c.l.b16 %v73
  %v202 = vpack.c.b16 %v149, %v148
  %v203 = vpack.c.b16 %v151, %v150
  %v204 = vpack.c.b16 %v153, %v152
  %v205 = vpack.c.b16 %v155, %v154
  %v206 = vpack.c.b16 %v157, %v156
  %v207 = vpack.c.b16 %v159, %v158
  %v208 = vpack.c.b16 %v161, %v160
  %v209 = vpack.c.b16 %v163, %v162
  %v210 = vpack.c.b16 %v165, %v164
  %v211 = vpack.c.b16 %v167, %v166
  %v212 = vpack.c.b16 %v169, %v168
  %v213 = vpack.c.b16 %v171, %v170
  %v214 = vpack.c.b16 %v173, %v172
  %v215 = vpack.c.b16 %v175, %v174
  %v216 = vpack.c.b16 %v177, %v176
  %v217 = vpack.c.b16 %v179, %v178
  %v218 = vpack.c.b16 %v181, %v180
  %v219 = vpack.c.b16 %v183, %v182
  %v220 = vpack.c.b16 %v185, %v184
  %v221 = vpack.c.b16 %v187, %v186
  %v222 = vpack.c.b16 %v189, %v188
  %v223 = vpack.c.b16 %v191, %v190
  %v224 = vpack.c.b16 %v193, %v192
  %v225 = vpack.c.b16 %v195, %v194
  %v226 = vpack.c.b16 %v197, %v196
  %v227 = vpack.c.b16 %v199, %v198
  %v228 = vpack.c.b16 %v201, %v200
  %vm256 = vcmask 392192
  %v258 = vsel %vm256, %v90, 0
  %260 = vmatprep.subr.bf16.mxu0 0
  %261 = vmatpush1.bf16.msra.mxu0 %v202
  %262 = vmatprep.subr.bf16.mxu0 0
  %263 = vmatpush1.bf16.msra.mxu0 %v203
  %264 = vmatprep.subr.bf16.mxu0 0
  %265 = vmatpush1.bf16.msra.mxu0 %v204
  %266 = vmatprep.subr.bf16.mxu0 0
  %267 = vmatpush1.bf16.msra.mxu0 %v205
  %268 = vmatprep.subr.bf16.mxu0 0
  %269 = vmatpush1.bf16.msra.mxu0 %v206
  %270 = vmatprep.subr.bf16.mxu0 0
  %271 = vmatpush1.bf16.msra.mxu0 %v207
  %272 = vmatprep.subr.bf16.mxu0 0
  %273 = vmatpush1.bf16.msra.mxu0 %v208
  %274 = vmatprep.subr.bf16.mxu0 0
  %275 = vmatpush1.bf16.msra.mxu0 %v209
  %276 = vmatprep.subr.bf16.mxu0 0
  %277 = vmatpush1.bf16.msra.mxu0 %v210
  %278 = vmatprep.subr.bf16.mxu0 0
  %279 = vmatpush1.bf16.msra.mxu0 %v211
  %280 = vmatprep.subr.bf16.mxu0 0
  %281 = vmatpush1.bf16.msra.mxu0 %v212
  %282 = vmatprep.subr.bf16.mxu0 0
  %283 = vmatpush1.bf16.msra.mxu0 %v213
  %284 = vmatprep.subr.bf16.mxu0 0
  %285 = vmatpush1.bf16.msra.mxu0 %v214
  %286 = vmatprep.subr.bf16.mxu0 0
  %287 = vmatpush1.bf16.msra.mxu0 %v215
  %288 = vmatprep.subr.bf16.mxu0 0
  %289 = vmatpush1.bf16.msra.mxu0 %v216
  %290 = vmatprep.subr.bf16.mxu0 0
  %291 = vmatpush1.bf16.msra.mxu0 %v217
  %292 = vmatprep.mubr.bf16.mxu0 %v88
  %293 = vmatmul.mubr.bf16.gmra.mrb[0].mxu0 %v87
  %v294 = vpop.f32.mrb[0].mxu0
  %v295 = vadd.f32 %v79, %v294
  %v296 = vpop.f32.mrb[0].mxu0
  %v297 = vpop.f32.mrb[0].mxu0
  %v298 = vpop.f32.mrb[0].mxu0
  %299 = vdwg.mxu0
  %300 = vmatprep.subr.bf16.mxu0 0
  %301 = vmatpush1.bf16.msra.mxu0 %v218
  %302 = vmatprep.subr.bf16.mxu0 0
  %303 = vmatpush1.bf16.msra.mxu0 %v219
  %304 = vmatprep.subr.bf16.mxu0 0
  %305 = vmatpush1.bf16.msra.mxu0 %v220
  %306 = vmatprep.subr.bf16.mxu0 0
  %307 = vmatpush1.bf16.msra.mxu0 %v221
  %308 = vmatprep.subr.bf16.mxu0 0
  %309 = vmatpush1.bf16.msra.mxu0 %v222
  %310 = vmatprep.subr.bf16.mxu0 0
  %311 = vmatpush1.bf16.msra.mxu0 %v223
  %312 = vmatprep.subr.bf16.mxu0 0
  %313 = vmatpush1.bf16.msra.mxu0 %v224
  %314 = vmatprep.subr.bf16.mxu0 0
  %315 = vmatpush1.bf16.msra.mxu0 %v225
  %316 = vmatprep.subr.bf16.mxu0 0
  %317 = vmatpush1.bf16.msra.mxu0 %v226
  %318 = vmatprep.subr.bf16.mxu0 0
  %319 = vmatpush1.bf16.msra.mxu0 %v227
  %320 = vmatprep.subr.bf16.mxu0 0
  %321 = vmatpush1.bf16.msra.mxu0 %v228
  %322 = vmatprep.subr.bf16.mxu0 0
  %323 = vmatpush1.bf16.msra.mxu0 0
  %324 = vmatprep.subr.bf16.mxu0 0
  %325 = vmatpush1.bf16.msra.mxu0 0
  %326 = vmatprep.subr.bf16.mxu0 0
  %327 = vmatpush1.bf16.msra.mxu0 0
  %328 = vmatprep.subr.bf16.mxu0 0
  %329 = vmatpush1.bf16.msra.mxu0 0
  %330 = vmatprep.subr.bf16.mxu0 0
  %331 = vmatpush1.bf16.msra.mxu0 0
  %332 = vmatprep.mubr.bf16.mxu0 %v258
  %333 = vmatmul.mubr.bf16.gmra.mrb[0].mxu0 %v89
  %v334 = vpop.f32.mrb[0].mxu0
  %v335 = vadd.f32 %v295, %v334
  %v336 = vpop.f32.mrb[0].mxu0
  %v337 = vpop.f32.mrb[0].mxu0
  %v338 = vpop.f32.mrb[0].mxu0
  %339 = vdwg.mxu0
  %vm340 = vcmask 261120
  %341 = vst.msk [vmem:[%s3] sm:$0xff] %vm340, %v335
  %v342 = vlaneseq
  %v343 = vshrl.u32 %v342, 7
  %s344 = smul.u32 0, 8
  %v345 = vstv %s344
  %v346 = vadd.s32 %v343, %v345
  %vm347 = vcmp.lt.s32.totalorder %v346, 8
  %v348 = vsel %vm347, %v335, 0.0
  %v349 = vsel %vm340, %v348, 0.0
  %v350 = vrot.slane %v349, 4
  %v351 = vadd.f32 %v349, %v350
  %v352 = vrot.slane %v351, 2
  %v353 = vadd.f32 %v351, %v352
  %v354 = vrot.slane %v353, 1
  %v355 = vadd.f32 %v353, %v354
  %vm356 = vcmask 253952
  %357 = vst.msk [vmem:[%s4] sm:$0x1] %vm356, %v355
  %v358 = vmul.f32 %v348, %v348
  %v359 = vsel %vm340, %v358, 0.0
  %v360 = vrot.slane %v359, 4
  %v361 = vadd.f32 %v359, %v360
  %v362 = vrot.slane %v361, 2
  %v363 = vadd.f32 %v361, %v362
  %v364 = vrot.slane %v363, 1
  %v365 = vadd.f32 %v363, %v364
  %366 = vst.msk [vmem:[%s5] sm:$0x1] %vm356, %v365
  // Predicated region
  $region14: #{ali_swin3d_forward.9} parent=0 // pred_check
    _
  $region15: #{ali_swin3d_forward.9} parent=0 // pred_check_branch
    %368 = sbr.rel (0) target = $region17
  $region16: #{ali_swin3d_forward.9} parent=0 // pred_region
    _
  $region17: #{ali_swin3d_forward.9} parent=0 // pred_fallthru
    _
  // Predicated region
  $region18: #{ali_swin3d_forward.9} parent=0 // pred_check
    _
  $region19: #{ali_swin3d_forward.9} parent=0 // pred_check_branch
    %370 = sbr.rel (0) target = $region21
  $region20: #{ali_swin3d_forward.9} parent=0 // pred_region
    _
  $region21: #{ali_swin3d_forward.9} parent=0 // pred_fallthru
    _
  // Predicated region
  $region22: #{ali_swin3d_forward.9} parent=0 // pred_check
    _
  $region23: #{ali_swin3d_forward.9} parent=0 // pred_check_branch
    %372 = sbr.rel (0) target = $region25
  $region24: #{ali_swin3d_forward.9} parent=0 // pred_region
    _
  $region25: #{ali_swin3d_forward.9} parent=0 // pred_fallthru
    _
  // Predicated region
  $region26: #{ali_swin3d_forward.9} parent=0 // pred_check
    _
  $region27: #{ali_swin3d_forward.9} parent=0 // pred_check_branch
    %374 = sbr.rel (0) target = $region29
  $region28: #{ali_swin3d_forward.9} parent=0 // pred_region
    _
  $region29: #{ali_swin3d_forward.9} parent=0 // pred_fallthru
    _
  // Predicated region
  $region30: #{ali_swin3d_forward.9} parent=0 // pred_check
    _
  $region31: #{ali_swin3d_forward.9} parent=0 // pred_check_branch
    %376 = sbr.rel (0) target = $region33
  $region32: #{ali_swin3d_forward.9} parent=0 // pred_region
    _
  $region33: #{ali_swin3d_forward.9} parent=0 // pred_fallthru
    _
  // Predicated region
  $region34: #{ali_swin3d_forward.9} parent=0 // pred_check
    _
  $region35: #{ali_swin3d_forward.9} parent=0 // pred_check_branch
    %378 = sbr.rel (0) target = $region37
  $region36: #{ali_swin3d_forward.9} parent=0 // pred_region
    _
  $region37: #{ali_swin3d_forward.9} parent=0 // pred_fallthru
    _

// kernel: tile.25
$region0: #{tile.25}
  #allocation0 [shape = 's32[1]{0}', space=sflag, size = 0x4, scoped, tag = 'scoped memory for tile.25']
  %s0 = inlined_call_operand.vmem [shape: f32[32], index: 0, kind: input, shape index: {}]
  %s1 = inlined_call_operand.vmem [shape: f32[4,32], index: 1, kind: output, shape index: {}]
  // Predicated region
  $region2: #{tile.25} parent=0 // pred_check
    _
  $region3: #{tile.25} parent=0 // pred_check_branch
    %3 = sbr.rel (0) target = $region5
  $region4: #{tile.25} parent=0 // pred_region
    _
  $region5: #{tile.25} parent=0 // pred_fallthru
    _
  %v4 = vld [vmem:[%s0] ss:$0 sm:$0xff]
  %5 = vst [vmem:[%s1] sm:$0xf] %v4

// kernel: tile.26
$region0: #{tile.26}
  %s0 = inlined_call_operand.vmem [shape: f32[4,32], index: 0, kind: input, shape index: {}]
  %s1 = inlined_call_operand.vmem [shape: f32[1,128], index: 1, kind: output, shape index: {}]
  $region1: #{tile.26} parent=0
    #allocation0 [shape = 'u8[4096]{0}', space=vmem, size = 0x1000, scoped, tag = 'scoped mem for output reshape']
    #allocation1 [shape = 'u8[4096]{0}', space=vmem, size = 0x1000, scoped, tag = 'scoped mem for input reshape']
    %s3 = sshllo.u32 0, 4
    %v4 = vld [vmem:[%s0] sm:%s3]
    %5 = vst [vmem:[#allocation1] sm:%s3] %v4
    %v6 = vld [vmem:[#allocation1] sm:$0x1]
    %vm7 = vcmask 261120
    %8 = vst.msk [vmem:[#allocation0] sm:$0x1] %vm7, %v6
    %s9 = scalar_lea.vmem [#allocation1], 3
    %v10 = vld [vmem:[%s9] sm:$0x1]
    %11 = vrot.lane.b32.xlu0 %v10, 96
    %v12 = vpop.permute.xlu0 %11
    %vm13 = vcmask 1048320
    %14 = vst.msk [vmem:[#allocation0] sm:$0x1] %vm13, %v12
    %s15 = scalar_lea.vmem [#allocation1], 2
    %v16 = vld [vmem:[%s15] sm:$0x1]
    %17 = vrot.lane.b32.xlu0 %v16, 64
    %v18 = vpop.permute.xlu0 %17
    %vm19 = vcmask 785920
    %20 = vst.msk [vmem:[#allocation0] sm:$0x1] %vm19, %v18
    %s21 = scalar_lea.vmem [#allocation1], 1
    %v22 = vld [vmem:[%s21] sm:$0x1]
    %23 = vrot.lane.b32.xlu0 %v22, 32
    %v24 = vpop.permute.xlu0 %23
    %vm25 = vcmask 523520
    %26 = vst.msk [vmem:[#allocation0] sm:$0x1] %vm25, %v24
    %s28 = sshllo.u32 0, 1
    %v30 = vld [vmem:[#allocation0] sm:%s28]
    %s31 = sshllo.u32 0, 1
    %32 = vst [vmem:[%s1] sm:%s31] %v30

// kernel: ali_swin3d_forward.10
$region0: #{ali_swin3d_forward.10}
  #allocation0 [shape = 'u32[]', space=smem, size = 0x4, offset = 0x4, fixed_abs, tag = 'smem constant byte address 0x4 - core index']
  #allocation1 [shape = 'u32[144,128]{1,0:T(1,128)}', space=vmem, size = 0x12000, scoped, tag = 'internal scratch']
  %s0 = inlined_call_operand.vmem [shape: f32[2,128], index: 0, kind: input, shape index: {}]
  %s1 = inlined_call_operand.vmem [shape: f32[1,128], index: 1, kind: input, shape index: {}]
  %s2 = inlined_call_operand.vmem [shape: f32[1,128], index: 2, kind: input, shape index: {}]
  %s3 = inlined_call_operand.vmem [shape: f32[2,128], index: 3, kind: output, shape index: {}]
  %s4 = sld [smem:[#allocation0]]
  $region22: #{ali_swin3d_forward.10} parent=0
    _
  %s6 = ssub.s32 1, %s4
  %s7 = scalar_select 0, %s6, %s4
  // Predicated region
  $region2: #{ali_swin3d_forward.10} parent=0 // pred_check
    _
  $region3: #{ali_swin3d_forward.10} parent=0 // pred_check_branch
    %9 = sbr.rel (0) target = $region5
  $region4: #{ali_swin3d_forward.10} parent=0 // pred_region
    _
  $region5: #{ali_swin3d_forward.10} parent=0 // pred_fallthru
    _
  // Predicated region
  $region6: #{ali_swin3d_forward.10} parent=0 // pred_check
    _
  $region7: #{ali_swin3d_forward.10} parent=0 // pred_check_branch
    %11 = sbr.rel (0) target = $region9
  $region8: #{ali_swin3d_forward.10} parent=0 // pred_region
    _
  $region9: #{ali_swin3d_forward.10} parent=0 // pred_fallthru
    _
  // Predicated region
  $region10: #{ali_swin3d_forward.10} parent=0 // pred_check
    _
  $region11: #{ali_swin3d_forward.10} parent=0 // pred_check_branch
    %13 = sbr.rel (0) target = $region13
  $region12: #{ali_swin3d_forward.10} parent=0 // pred_region
    _
  $region13: #{ali_swin3d_forward.10} parent=0 // pred_fallthru
    _
  %v14 = vld [vmem:[%s0] sm:$0x3]
  %v15 = vld [vmem:[%s1] sm:$0x1]
  %v17 = vlaneseq
  %v18 = vshrl.u32 %v17, 7
  %v19 = vsub.s32 0, %v18
  %v20 = vrot.slane %v15, %v19
  %v22 = vmul.f32 %v14, %v20
  %v23 = vld [vmem:[%s2] sm:$0x1]
  %v25 = vlaneseq
  %v26 = vshrl.u32 %v25, 7
  %v27 = vsub.s32 0, %v26
  %v28 = vrot.slane %v23, %v27
  %v30 = vadd.f32 %v22, %v28
  %v31 = vmax.f32 %v30, 0.0
  %32 = vst [vmem:[%s3] sm:$0x3] %v31
  // Predicated region
  $region14: #{ali_swin3d_forward.10} parent=0 // pred_check
    _
  $region15: #{ali_swin3d_forward.10} parent=0 // pred_check_branch
    %34 = sbr.rel (0) target = $region17
  $region16: #{ali_swin3d_forward.10} parent=0 // pred_region
    _
  $region17: #{ali_swin3d_forward.10} parent=0 // pred_fallthru
    _
  // Predicated region
  $region18: #{ali_swin3d_forward.10} parent=0 // pred_check
    _
  $region19: #{ali_swin3d_forward.10} parent=0 // pred_check_branch
    %36 = sbr.rel (0) target = $region21
  $region20: #{ali_swin3d_forward.10} parent=0 // pred_region
    _
  $region21: #{ali_swin3d_forward.10} parent=0 // pred_fallthru
    _

// kernel: tile.35
$region0: #{tile.35}
  #allocation0 [shape = 's32[1]{0}', space=sflag, size = 0x4, scoped, tag = 'scoped memory for tile.35']
  %s0 = inlined_call_operand.vmem [shape: f32[64], index: 0, kind: input, shape index: {}]
  %s1 = inlined_call_operand.vmem [shape: f32[2,64], index: 1, kind: output, shape index: {}]
  // Predicated region
  $region2: #{tile.35} parent=0 // pred_check
    _
  $region3: #{tile.35} parent=0 // pred_check_branch
    %3 = sbr.rel (0) target = $region5
  $region4: #{tile.35} parent=0 // pred_region
    _
  $region5: #{tile.35} parent=0 // pred_fallthru
    _
  %v4 = vld [vmem:[%s0] ss:$0 sm:$0xff]
  %5 = vst [vmem:[%s1] sm:$0x3] %v4

// kernel: tile.36
$region0: #{tile.36}
  %s0 = inlined_call_operand.vmem [shape: f32[2,64], index: 0, kind: input, shape index: {}]
  %s1 = inlined_call_operand.vmem [shape: f32[1,128], index: 1, kind: output, shape index: {}]
  $region1: #{tile.36} parent=0
    #allocation0 [shape = 'u8[4096]{0}', space=vmem, size = 0x1000, scoped, tag = 'scoped mem for output reshape']
    #allocation1 [shape = 'u8[4096]{0}', space=vmem, size = 0x1000, scoped, tag = 'scoped mem for input reshape']
    %s3 = sshllo.u32 0, 2
    %v4 = vld [vmem:[%s0] sm:%s3]
    %5 = vst [vmem:[#allocation1] sm:%s3] %v4
    %v6 = vld [vmem:[#allocation1] sm:$0x1]
    %vm7 = vcmask 523264
    %8 = vst.msk [vmem:[#allocation0] sm:$0x1] %vm7, %v6
    %s9 = scalar_lea.vmem [#allocation1], 1
    %v10 = vld [vmem:[%s9] sm:$0x1]
    %11 = vrot.lane.b32.xlu0 %v10, 64
    %v12 = vpop.permute.xlu0 %11
    %vm13 = vcmask 1048064
    %14 = vst.msk [vmem:[#allocation0] sm:$0x1] %vm13, %v12
    %s16 = sshllo.u32 0, 1
    %v18 = vld [vmem:[#allocation0] sm:%s16]
    %s19 = sshllo.u32 0, 1
    %20 = vst [vmem:[%s1] sm:%s19] %v18

// kernel: ali_swin3d_forward.12
$region0: #{ali_swin3d_forward.12}
  #allocation0 [shape = 'u32[]', space=smem, size = 0x4, offset = 0x4, fixed_abs, tag = 'smem constant byte address 0x4 - core index']
  #allocation1 [shape = 'u32[144,128]{1,0:T(1,128)}', space=vmem, size = 0x12000, scoped, tag = 'internal scratch']
  %s0 = inlined_call_operand.vmem [shape: f32[1,128], index: 0, kind: input, shape index: {}]
  %s1 = inlined_call_operand.vmem [shape: f32[1,128], index: 1, kind: input, shape index: {}]
  %s2 = inlined_call_operand.vmem [shape: f32[1,128], index: 2, kind: input, shape index: {}]
  %s3 = inlined_call_operand.vmem [shape: f32[1,128], index: 3, kind: output, shape index: {}]
  %s4 = sld [smem:[#allocation0]]
  $region22: #{ali_swin3d_forward.12} parent=0
    _
  %s6 = ssub.s32 1, %s4
  %s7 = scalar_select 0, %s6, %s4
  // Predicated region
  $region2: #{ali_swin3d_forward.12} parent=0 // pred_check
    _
  $region3: #{ali_swin3d_forward.12} parent=0 // pred_check_branch
    %9 = sbr.rel (0) target = $region5
  $region4: #{ali_swin3d_forward.12} parent=0 // pred_region
    _
  $region5: #{ali_swin3d_forward.12} parent=0 // pred_fallthru
    _
  // Predicated region
  $region6: #{ali_swin3d_forward.12} parent=0 // pred_check
    _
  $region7: #{ali_swin3d_forward.12} parent=0 // pred_check_branch
    %11 = sbr.rel (0) target = $region9
  $region8: #{ali_swin3d_forward.12} parent=0 // pred_region
    _
  $region9: #{ali_swin3d_forward.12} parent=0 // pred_fallthru
    _
  // Predicated region
  $region10: #{ali_swin3d_forward.12} parent=0 // pred_check
    _
  $region11: #{ali_swin3d_forward.12} parent=0 // pred_check_branch
    %13 = sbr.rel (0) target = $region13
  $region12: #{ali_swin3d_forward.12} parent=0 // pred_region
    _
  $region13: #{ali_swin3d_forward.12} parent=0 // pred_fallthru
    _
  %v14 = vld [vmem:[%s0] sm:$0x1]
  %v15 = vld [vmem:[%s1] sm:$0x1]
  %v16 = vmul.f32 %v14, %v15
  %v17 = vld [vmem:[%s2] sm:$0x1]
  %v18 = vadd.f32 %v16, %v17
  %v19 = vmax.f32 %v18, 0.0
  %20 = vst [vmem:[%s3] sm:$0x1] %v19
  // Predicated region
  $region14: #{ali_swin3d_forward.12} parent=0 // pred_check
    _
  $region15: #{ali_swin3d_forward.12} parent=0 // pred_check_branch
    %22 = sbr.rel (0) target = $region17
  $region16: #{ali_swin3d_forward.12} parent=0 // pred_region
    _
  $region17: #{ali_swin3d_forward.12} parent=0 // pred_fallthru
    _
  // Predicated region
  $region18: #{ali_swin3d_forward.12} parent=0 // pred_check
    _
  $region19: #{ali_swin3d_forward.12} parent=0 // pred_check_branch
    %24 = sbr.rel (0) target = $region21
  $region20: #{ali_swin3d_forward.12} parent=0 // pred_region
    _
  $region21: #{ali_swin3d_forward.12} parent=0 // pred_fallthru
    _

// kernel: ali_swin3d_forward.11
$region0: #{ali_swin3d_forward.11}
  #allocation0 [shape = 'u32[]', space=smem, size = 0x4, offset = 0x4, fixed_abs, tag = 'smem constant byte address 0x4 - core index']
  #allocation1 [shape = 'u32[144,128]{1,0:T(1,128)}', space=vmem, size = 0x12000, scoped, tag = 'internal scratch']
  %s0 = inlined_call_operand.vmem [shape: bf16[2,864], index: 0, kind: input, shape index: {}]
  %s1 = inlined_call_operand.vmem [shape: bf16[864,64], index: 1, kind: input, shape index: {}]
  %s2 = inlined_call_operand.vmem [shape: f32[1,64], index: 2, kind: input, shape index: {}]
  %s3 = inlined_call_operand.vmem [shape: f32[2,64], index: 3, kind: output, shape index: {0}]
  %s4 = inlined_call_operand.vmem [shape: f32[1,64], index: 4, kind: output, shape index: {1}]
  %s5 = inlined_call_operand.vmem [shape: f32[1,64], index: 5, kind: output, shape index: {2}]
  %6 = xla_tuple %s3, %s4, %s5
  %s7 = sld [smem:[#allocation0]]
  $region38: #{ali_swin3d_forward.11} parent=0
    _
  %s9 = ssub.s32 1, %s7
  %s10 = scalar_select 0, %s9, %s7
  // Predicated region
  $region2: #{ali_swin3d_forward.11} parent=0 // pred_check
    _
  $region3: #{ali_swin3d_forward.11} parent=0 // pred_check_branch
    %12 = sbr.rel (0) target = $region5
  $region4: #{ali_swin3d_forward.11} parent=0 // pred_region
    _
  $region5: #{ali_swin3d_forward.11} parent=0 // pred_fallthru
    _
  // Predicated region
  $region6: #{ali_swin3d_forward.11} parent=0 // pred_check
    _
  $region7: #{ali_swin3d_forward.11} parent=0 // pred_check_branch
    %14 = sbr.rel (0) target = $region9
  $region8: #{ali_swin3d_forward.11} parent=0 // pred_region
    _
  $region9: #{ali_swin3d_forward.11} parent=0 // pred_fallthru
    _
  // Predicated region
  $region10: #{ali_swin3d_forward.11} parent=0 // pred_check
    _
  $region11: #{ali_swin3d_forward.11} parent=0 // pred_check_branch
    %16 = sbr.rel (0) target = $region13
  $region12: #{ali_swin3d_forward.11} parent=0 // pred_region
    _
  $region13: #{ali_swin3d_forward.11} parent=0 // pred_fallthru
    _
  %v18 = vld [vmem:[%s0] sm:$0x7f]
  %v19 = vld [vmem:[%s1] sm:$0xf]
  %v20 = vld [vmem:[%s1 + $0x4] sm:$0xf]
  %v21 = vld [vmem:[%s1 + $0x8] sm:$0xf]
  %v22 = vld [vmem:[%s1 + $0xc] sm:$0xf]
  %v23 = vld [vmem:[%s1 + $0x10] sm:$0xf]
  %v24 = vld [vmem:[%s1 + $0x14] sm:$0xf]
  %v25 = vld [vmem:[%s1 + $0x18] sm:$0xf]
  %v26 = vld [vmem:[%s1 + $0x1c] sm:$0xf]
  %v27 = vld [vmem:[%s1 + $0x20] sm:$0xf]
  %v28 = vld [vmem:[%s1 + $0x24] sm:$0xf]
  %v29 = vld [vmem:[%s1 + $0x28] sm:$0xf]
  %v30 = vld [vmem:[%s1 + $0x2c] sm:$0xf]
  %v31 = vld [vmem:[%s1 + $0x30] sm:$0xf]
  %v32 = vld [vmem:[%s1 + $0x34] sm:$0xf]
  %v33 = vld [vmem:[%s1 + $0x38] sm:$0xf]
  %v34 = vld [vmem:[%s1 + $0x3c] sm:$0xf]
  %v35 = vld [vmem:[%s1 + $0x40] sm:$0xf]
  %v36 = vld [vmem:[%s1 + $0x44] sm:$0xf]
  %v37 = vld [vmem:[%s1 + $0x48] sm:$0xf]
  %v38 = vld [vmem:[%s1 + $0x4c] sm:$0xf]
  %v39 = vld [vmem:[%s1 + $0x50] sm:$0xf]
  %v40 = vld [vmem:[%s1 + $0x54] sm:$0xf]
  %v41 = vld [vmem:[%s1 + $0x58] sm:$0xf]
  %v42 = vld [vmem:[%s1 + $0x5c] sm:$0xf]
  %v43 = vld [vmem:[%s1 + $0x60] sm:$0xf]
  %v44 = vld [vmem:[%s1 + $0x64] sm:$0xf]
  %v45 = vld [vmem:[%s1 + $0x68] sm:$0xf]
  %v46 = vld [vmem:[%s1 + $0x6c] sm:$0xf]
  %v47 = vld [vmem:[%s1 + $0x70] sm:$0xf]
  %v48 = vld [vmem:[%s1 + $0x74] sm:$0xf]
  %v49 = vld [vmem:[%s1 + $0x78] sm:$0xf]
  %v50 = vld [vmem:[%s1 + $0x7c] sm:$0xf]
  %v51 = vld [vmem:[%s1 + $0x80] sm:$0xf]
  %v52 = vld [vmem:[%s1 + $0x84] sm:$0xf]
  %v53 = vld [vmem:[%s1 + $0x88] sm:$0xf]
  %v54 = vld [vmem:[%s1 + $0x8c] sm:$0xf]
  %v55 = vld [vmem:[%s1 + $0x90] sm:$0xf]
  %v56 = vld [vmem:[%s1 + $0x94] sm:$0xf]
  %v57 = vld [vmem:[%s1 + $0x98] sm:$0xf]
  %v58 = vld [vmem:[%s1 + $0x9c] sm:$0xf]
  %v59 = vld [vmem:[%s1 + $0xa0] sm:$0xf]
  %v60 = vld [vmem:[%s1 + $0xa4] sm:$0xf]
  %v61 = vld [vmem:[%s1 + $0xa8] sm:$0xf]
  %v62 = vld [vmem:[%s1 + $0xac] sm:$0xf]
  %v63 = vld [vmem:[%s1 + $0xb0] sm:$0xf]
  %v64 = vld [vmem:[%s1 + $0xb4] sm:$0xf]
  %v65 = vld [vmem:[%s1 + $0xb8] sm:$0xf]
  %v66 = vld [vmem:[%s1 + $0xbc] sm:$0xf]
  %v67 = vld [vmem:[%s1 + $0xc0] sm:$0xf]
  %v68 = vld [vmem:[%s1 + $0xc4] sm:$0xf]
  %v69 = vld [vmem:[%s1 + $0xc8] sm:$0xf]
  %v70 = vld [vmem:[%s1 + $0xcc] sm:$0xf]
  %v71 = vld [vmem:[%s1 + $0xd0] sm:$0xf]
  %v72 = vld [vmem:[%s1 + $0xd4] sm:$0xf]
  %v73 = vld [vmem:[%s1 + $0xd8] sm:$0xf]
  %v74 = vld [vmem:[%s1 + $0xdc] sm:$0xf]
  %v75 = vld [vmem:[%s1 + $0xe0] sm:$0xf]
  %v76 = vld [vmem:[%s1 + $0xe4] sm:$0xf]
  %v77 = vld [vmem:[%s1 + $0xe8] sm:$0xf]
  %v78 = vld [vmem:[%s1 + $0xec] sm:$0xf]
  %v79 = vld [vmem:[%s1 + $0xf0] sm:$0xf]
  %v80 = vld [vmem:[%s1 + $0xf4] sm:$0xf]
  %v81 = vld [vmem:[%s1 + $0xf8] sm:$0xf]
  %v82 = vld [vmem:[%s1 + $0xfc] sm:$0xf]
  %v83 = vld [vmem:[%s1 + $0x100] sm:$0xf]
  %v84 = vld [vmem:[%s1 + $0x104] sm:$0xf]
  %v85 = vld [vmem:[%s1 + $0x108] sm:$0xf]
  %v86 = vld [vmem:[%s1 + $0x10c] sm:$0xf]
  %v87 = vld [vmem:[%s1 + $0x110] sm:$0xf]
  %v88 = vld [vmem:[%s1 + $0x114] sm:$0xf]
  %v89 = vld [vmem:[%s1 + $0x118] sm:$0xf]
  %v90 = vld [vmem:[%s1 + $0x11c] sm:$0xf]
  %v91 = vld [vmem:[%s1 + $0x120] sm:$0xf]
  %v92 = vld [vmem:[%s1 + $0x124] sm:$0xf]
  %v93 = vld [vmem:[%s1 + $0x128] sm:$0xf]
  %v94 = vld [vmem:[%s1 + $0x12c] sm:$0xf]
  %v95 = vld [vmem:[%s1 + $0x130] sm:$0xf]
  %v96 = vld [vmem:[%s1 + $0x134] sm:$0xf]
  %v97 = vld [vmem:[%s1 + $0x138] sm:$0xf]
  %v98 = vld [vmem:[%s1 + $0x13c] sm:$0xf]
  %v99 = vld [vmem:[%s1 + $0x140] sm:$0xf]
  %v100 = vld [vmem:[%s1 + $0x144] sm:$0xf]
  %v101 = vld [vmem:[%s1 + $0x148] sm:$0xf]
  %v102 = vld [vmem:[%s1 + $0x14c] sm:$0xf]
  %v103 = vld [vmem:[%s1 + $0x150] sm:$0xf]
  %v104 = vld [vmem:[%s1 + $0x154] sm:$0xf]
  %v105 = vld [vmem:[%s1 + $0x158] sm:$0xf]
  %v106 = vld [vmem:[%s1 + $0x15c] sm:$0xf]
  %v107 = vld [vmem:[%s1 + $0x160] sm:$0xf]
  %v108 = vld [vmem:[%s1 + $0x164] sm:$0xf]
  %v109 = vld [vmem:[%s1 + $0x168] sm:$0xf]
  %v110 = vld [vmem:[%s1 + $0x16c] sm:$0xf]
  %v111 = vld [vmem:[%s1 + $0x170] sm:$0xf]
  %v112 = vld [vmem:[%s1 + $0x174] sm:$0xf]
  %v113 = vld [vmem:[%s1 + $0x178] sm:$0xf]
  %v114 = vld [vmem:[%s1 + $0x17c] sm:$0xf]
  %v115 = vld [vmem:[%s1 + $0x180] sm:$0xf]
  %v116 = vld [vmem:[%s1 + $0x184] sm:$0xf]
  %v117 = vld [vmem:[%s1 + $0x188] sm:$0xf]
  %v118 = vld [vmem:[%s1 + $0x18c] sm:$0xf]
  %v119 = vld [vmem:[%s1 + $0x190] sm:$0xf]
  %v120 = vld [vmem:[%s1 + $0x194] sm:$0xf]
  %v121 = vld [vmem:[%s1 + $0x198] sm:$0xf]
  %v122 = vld [vmem:[%s1 + $0x19c] sm:$0xf]
  %v123 = vld [vmem:[%s1 + $0x1a0] sm:$0xf]
  %v124 = vld [vmem:[%s1 + $0x1a4] sm:$0xf]
  %v125 = vld [vmem:[%s1 + $0x1a8] sm:$0xf]
  %v126 = vld [vmem:[%s1 + $0x1ac] sm:$0xf]
  %v127 = vld [vmem:[%s2] sm:$0x1]
  %v129 = vlaneseq
  %v130 = vshrl.u32 %v129, 7
  %v131 = vsub.s32 0, %v130
  %v132 = vrot.slane %v127, %v131
  %v135 = vcombine.high %v18, %v18
  %v137 = vunpack.c.l.s4 1966171168
  %v138 = vunpack.c.0.s8 %v137
  %v139 = vlaneseq
  %v140 = vshrl.u32 %v139, 7
  %v141 = vsub.s32 %v138, %v140
  %v142 = vrot.slane %v18, %v141
  %v144 = vunpack.c.l.s4 1966171168
  %v145 = vunpack.c.0.s8 %v144
  %v146 = vlaneseq
  %v147 = vshrl.u32 %v146, 7
  %v148 = vsub.s32 %v145, %v147
  %v149 = vrot.slane %v135, %v148
  %v150 = vcombine.high %v142, %v142
  %v151 = vcombine.high %v149, %v149
  %v153 = vunpack.c.l.s4 1966171168
  %v154 = vunpack.c.0.s8 %v153
  %v155 = vlaneseq
  %v156 = vshrl.u32 %v155, 7
  %v157 = vsub.s32 %v154, %v156
  %v158 = vrot.slane %v142, %v157
  %v160 = vunpack.c.l.s4 1966171168
  %v161 = vunpack.c.0.s8 %v160
  %v162 = vlaneseq
  %v163 = vshrl.u32 %v162, 7
  %v164 = vsub.s32 %v161, %v163
  %v165 = vrot.slane %v149, %v164
  %v167 = vunpack.c.l.s4 1966171168
  %v168 = vunpack.c.0.s8 %v167
  %v169 = vlaneseq
  %v170 = vshrl.u32 %v169, 7
  %v171 = vsub.s32 %v168, %v170
  %v172 = vrot.slane %v150, %v171
  %v174 = vunpack.c.l.s4 1966171168
  %v175 = vunpack.c.0.s8 %v174
  %v176 = vlaneseq
  %v177 = vshrl.u32 %v176, 7
  %v178 = vsub.s32 %v175, %v177
  %v179 = vrot.slane %v151, %v178
  %v180 = vcombine.high %v158, %v158
  %v181 = vcombine.high %v165, %v165
  %v182 = vcombine.high %v172, %v172
  %v297 = vunpack.c.l.b16 %v19
  %v298 = vunpack.c.l.b16 %v20
  %v299 = vunpack.c.l.b16 %v21
  %v300 = vunpack.c.l.b16 %v22
  %v301 = vunpack.c.l.b16 %v23
  %v302 = vunpack.c.l.b16 %v24
  %v303 = vunpack.c.l.b16 %v25
  %v304 = vunpack.c.l.b16 %v26
  %v305 = vunpack.c.l.b16 %v27
  %v306 = vunpack.c.l.b16 %v28
  %v307 = vunpack.c.l.b16 %v29
  %v308 = vunpack.c.l.b16 %v30
  %v309 = vunpack.c.l.b16 %v31
  %v310 = vunpack.c.l.b16 %v32
  %v311 = vunpack.c.l.b16 %v33
  %v312 = vunpack.c.l.b16 %v34
  %v313 = vunpack.c.l.b16 %v35
  %v314 = vunpack.c.l.b16 %v36
  %v315 = vunpack.c.l.b16 %v37
  %v316 = vunpack.c.l.b16 %v38
  %v317 = vunpack.c.l.b16 %v39
  %v318 = vunpack.c.l.b16 %v40
  %v319 = vunpack.c.l.b16 %v41
  %v320 = vunpack.c.l.b16 %v42
  %v321 = vunpack.c.l.b16 %v43
  %v322 = vunpack.c.l.b16 %v44
  %v323 = vunpack.c.l.b16 %v45
  %v324 = vunpack.c.l.b16 %v46
  %v325 = vunpack.c.l.b16 %v47
  %v326 = vunpack.c.l.b16 %v48
  %v327 = vunpack.c.l.b16 %v49
  %v328 = vunpack.c.l.b16 %v50
  %v329 = vunpack.c.l.b16 %v51
  %v330 = vunpack.c.l.b16 %v52
  %v331 = vunpack.c.l.b16 %v53
  %v332 = vunpack.c.l.b16 %v54
  %v333 = vunpack.c.l.b16 %v55
  %v334 = vunpack.c.l.b16 %v56
  %v335 = vunpack.c.l.b16 %v57
  %v336 = vunpack.c.l.b16 %v58
  %v337 = vunpack.c.l.b16 %v59
  %v338 = vunpack.c.l.b16 %v60
  %v339 = vunpack.c.l.b16 %v61
  %v340 = vunpack.c.l.b16 %v62
  %v341 = vunpack.c.l.b16 %v63
  %v342 = vunpack.c.l.b16 %v64
  %v343 = vunpack.c.l.b16 %v65
  %v344 = vunpack.c.l.b16 %v66
  %v345 = vunpack.c.l.b16 %v67
  %v346 = vunpack.c.l.b16 %v68
  %v347 = vunpack.c.l.b16 %v69
  %v348 = vunpack.c.l.b16 %v70
  %v349 = vunpack.c.l.b16 %v71
  %v350 = vunpack.c.l.b16 %v72
  %v351 = vunpack.c.l.b16 %v73
  %v352 = vunpack.c.l.b16 %v74
  %v353 = vunpack.c.l.b16 %v75
  %v354 = vunpack.c.l.b16 %v76
  %v355 = vunpack.c.l.b16 %v77
  %v356 = vunpack.c.l.b16 %v78
  %v357 = vunpack.c.l.b16 %v79
  %v358 = vunpack.c.l.b16 %v80
  %v359 = vunpack.c.l.b16 %v81
  %v360 = vunpack.c.l.b16 %v82
  %v361 = vunpack.c.l.b16 %v83
  %v362 = vunpack.c.l.b16 %v84
  %v363 = vunpack.c.l.b16 %v85
  %v364 = vunpack.c.l.b16 %v86
  %v365 = vunpack.c.l.b16 %v87
  %v366 = vunpack.c.l.b16 %v88
  %v367 = vunpack.c.l.b16 %v89
  %v368 = vunpack.c.l.b16 %v90
  %v369 = vunpack.c.l.b16 %v91
  %v370 = vunpack.c.l.b16 %v92
  %v371 = vunpack.c.l.b16 %v93
  %v372 = vunpack.c.l.b16 %v94
  %v373 = vunpack.c.l.b16 %v95
  %v374 = vunpack.c.l.b16 %v96
  %v375 = vunpack.c.l.b16 %v97
  %v376 = vunpack.c.l.b16 %v98
  %v377 = vunpack.c.l.b16 %v99
  %v378 = vunpack.c.l.b16 %v100
  %v379 = vunpack.c.l.b16 %v101
  %v380 = vunpack.c.l.b16 %v102
  %v381 = vunpack.c.l.b16 %v103
  %v382 = vunpack.c.l.b16 %v104
  %v383 = vunpack.c.l.b16 %v105
  %v384 = vunpack.c.l.b16 %v106
  %v385 = vunpack.c.l.b16 %v107
  %v386 = vunpack.c.l.b16 %v108
  %v387 = vunpack.c.l.b16 %v109
  %v388 = vunpack.c.l.b16 %v110
  %v389 = vunpack.c.l.b16 %v111
  %v390 = vunpack.c.l.b16 %v112
  %v391 = vunpack.c.l.b16 %v113
  %v392 = vunpack.c.l.b16 %v114
  %v393 = vunpack.c.l.b16 %v115
  %v394 = vunpack.c.l.b16 %v116
  %v395 = vunpack.c.l.b16 %v117
  %v396 = vunpack.c.l.b16 %v118
  %v397 = vunpack.c.l.b16 %v119
  %v398 = vunpack.c.l.b16 %v120
  %v399 = vunpack.c.l.b16 %v121
  %v400 = vunpack.c.l.b16 %v122
  %v401 = vunpack.c.l.b16 %v123
  %v402 = vunpack.c.l.b16 %v124
  %v403 = vunpack.c.l.b16 %v125
  %v404 = vunpack.c.l.b16 %v126
  %v405 = vpack.c.b16 %v298, %v297
  %v406 = vpack.c.b16 %v300, %v299
  %v407 = vpack.c.b16 %v302, %v301
  %v408 = vpack.c.b16 %v304, %v303
  %v409 = vpack.c.b16 %v306, %v305
  %v410 = vpack.c.b16 %v308, %v307
  %v411 = vpack.c.b16 %v310, %v309
  %v412 = vpack.c.b16 %v312, %v311
  %v413 = vpack.c.b16 %v314, %v313
  %v414 = vpack.c.b16 %v316, %v315
  %v415 = vpack.c.b16 %v318, %v317
  %v416 = vpack.c.b16 %v320, %v319
  %v417 = vpack.c.b16 %v322, %v321
  %v418 = vpack.c.b16 %v324, %v323
  %v419 = vpack.c.b16 %v326, %v325
  %v420 = vpack.c.b16 %v328, %v327
  %v421 = vpack.c.b16 %v330, %v329
  %v422 = vpack.c.b16 %v332, %v331
  %v423 = vpack.c.b16 %v334, %v333
  %v424 = vpack.c.b16 %v336, %v335
  %v425 = vpack.c.b16 %v338, %v337
  %v426 = vpack.c.b16 %v340, %v339
  %v427 = vpack.c.b16 %v342, %v341
  %v428 = vpack.c.b16 %v344, %v343
  %v429 = vpack.c.b16 %v346, %v345
  %v430 = vpack.c.b16 %v348, %v347
  %v431 = vpack.c.b16 %v350, %v349
  %v432 = vpack.c.b16 %v352, %v351
  %v433 = vpack.c.b16 %v354, %v353
  %v434 = vpack.c.b16 %v356, %v355
  %v435 = vpack.c.b16 %v358, %v357
  %v436 = vpack.c.b16 %v360, %v359
  %v437 = vpack.c.b16 %v362, %v361
  %v438 = vpack.c.b16 %v364, %v363
  %v439 = vpack.c.b16 %v366, %v365
  %v440 = vpack.c.b16 %v368, %v367
  %v441 = vpack.c.b16 %v370, %v369
  %v442 = vpack.c.b16 %v372, %v371
  %v443 = vpack.c.b16 %v374, %v373
  %v444 = vpack.c.b16 %v376, %v375
  %v445 = vpack.c.b16 %v378, %v377
  %v446 = vpack.c.b16 %v380, %v379
  %v447 = vpack.c.b16 %v382, %v381
  %v448 = vpack.c.b16 %v384, %v383
  %v449 = vpack.c.b16 %v386, %v385
  %v450 = vpack.c.b16 %v388, %v387
  %v451 = vpack.c.b16 %v390, %v389
  %v452 = vpack.c.b16 %v392, %v391
  %v453 = vpack.c.b16 %v394, %v393
  %v454 = vpack.c.b16 %v396, %v395
  %v455 = vpack.c.b16 %v398, %v397
  %v456 = vpack.c.b16 %v400, %v399
  %v457 = vpack.c.b16 %v402, %v401
  %v458 = vpack.c.b16 %v404, %v403
  %vm513 = vcmask 785408
  %v515 = vsel %vm513, %v181, 0
  %517 = vmatprep.subr.bf16.mxu0 0
  %518 = vmatpush1.bf16.msra.mxu0 %v405
  %519 = vmatprep.subr.bf16.mxu0 0
  %520 = vmatpush1.bf16.msra.mxu0 %v406
  %521 = vmatprep.subr.bf16.mxu0 0
  %522 = vmatpush1.bf16.msra.mxu0 %v407
  %523 = vmatprep.subr.bf16.mxu0 0
  %524 = vmatpush1.bf16.msra.mxu0 %v408
  %525 = vmatprep.subr.bf16.mxu0 0
  %526 = vmatpush1.bf16.msra.mxu0 %v409
  %527 = vmatprep.subr.bf16.mxu0 0
  %528 = vmatpush1.bf16.msra.mxu0 %v410
  %529 = vmatprep.subr.bf16.mxu0 0
  %530 = vmatpush1.bf16.msra.mxu0 %v411
  %531 = vmatprep.subr.bf16.mxu0 0
  %532 = vmatpush1.bf16.msra.mxu0 %v412
  %533 = vmatprep.subr.bf16.mxu0 0
  %534 = vmatpush1.bf16.msra.mxu0 %v413
  %535 = vmatprep.subr.bf16.mxu0 0
  %536 = vmatpush1.bf16.msra.mxu0 %v414
  %537 = vmatprep.subr.bf16.mxu0 0
  %538 = vmatpush1.bf16.msra.mxu0 %v415
  %539 = vmatprep.subr.bf16.mxu0 0
  %540 = vmatpush1.bf16.msra.mxu0 %v416
  %541 = vmatprep.subr.bf16.mxu0 0
  %542 = vmatpush1.bf16.msra.mxu0 %v417
  %543 = vmatprep.subr.bf16.mxu0 0
  %544 = vmatpush1.bf16.msra.mxu0 %v418
  %545 = vmatprep.subr.bf16.mxu0 0
  %546 = vmatpush1.bf16.msra.mxu0 %v419
  %547 = vmatprep.subr.bf16.mxu0 0
  %548 = vmatpush1.bf16.msra.mxu0 %v420
  %549 = vmatprep.mubr.bf16.mxu0 %v172
  %550 = vmatmul.mubr.bf16.gmra.mrb[0].mxu0 %v158
  %v551 = vpop.f32.mrb[0].mxu0
  %v552 = vadd.f32 %v132, %v551
  %v553 = vpop.f32.mrb[0].mxu0
  %v554 = vpop.f32.mrb[0].mxu0
  %v555 = vpop.f32.mrb[0].mxu0
  %556 = vdwg.mxu0
  %557 = vmatprep.subr.bf16.mxu0 0
  %558 = vmatpush1.bf16.msra.mxu0 %v421
  %559 = vmatprep.subr.bf16.mxu0 0
  %560 = vmatpush1.bf16.msra.mxu0 %v422
  %561 = vmatprep.subr.bf16.mxu0 0
  %562 = vmatpush1.bf16.msra.mxu0 %v423
  %563 = vmatprep.subr.bf16.mxu0 0
  %564 = vmatpush1.bf16.msra.mxu0 %v424
  %565 = vmatprep.subr.bf16.mxu0 0
  %566 = vmatpush1.bf16.msra.mxu0 %v425
  %567 = vmatprep.subr.bf16.mxu0 0
  %568 = vmatpush1.bf16.msra.mxu0 %v426
  %569 = vmatprep.subr.bf16.mxu0 0
  %570 = vmatpush1.bf16.msra.mxu0 %v427
  %571 = vmatprep.subr.bf16.mxu0 0
  %572 = vmatpush1.bf16.msra.mxu0 %v428
  %573 = vmatprep.subr.bf16.mxu0 0
  %574 = vmatpush1.bf16.msra.mxu0 %v429
  %575 = vmatprep.subr.bf16.mxu0 0
  %576 = vmatpush1.bf16.msra.mxu0 %v430
  %577 = vmatprep.subr.bf16.mxu0 0
  %578 = vmatpush1.bf16.msra.mxu0 %v431
  %579 = vmatprep.subr.bf16.mxu0 0
  %580 = vmatpush1.bf16.msra.mxu0 %v432
  %581 = vmatprep.subr.bf16.mxu0 0
  %582 = vmatpush1.bf16.msra.mxu0 %v433
  %583 = vmatprep.subr.bf16.mxu0 0
  %584 = vmatpush1.bf16.msra.mxu0 %v434
  %585 = vmatprep.subr.bf16.mxu0 0
  %586 = vmatpush1.bf16.msra.mxu0 %v435
  %587 = vmatprep.subr.bf16.mxu0 0
  %588 = vmatpush1.bf16.msra.mxu0 %v436
  %589 = vmatprep.mubr.bf16.mxu0 %v182
  %590 = vmatmul.mubr.bf16.gmra.mrb[0].mxu0 %v180
  %v591 = vpop.f32.mrb[0].mxu0
  %v592 = vadd.f32 %v552, %v591
  %v593 = vpop.f32.mrb[0].mxu0
  %v594 = vpop.f32.mrb[0].mxu0
  %v595 = vpop.f32.mrb[0].mxu0
  %596 = vdwg.mxu0
  %597 = vmatprep.subr.bf16.mxu0 0
  %598 = vmatpush1.bf16.msra.mxu0 %v437
  %599 = vmatprep.subr.bf16.mxu0 0
  %600 = vmatpush1.bf16.msra.mxu0 %v438
  %601 = vmatprep.subr.bf16.mxu0 0
  %602 = vmatpush1.bf16.msra.mxu0 %v439
  %603 = vmatprep.subr.bf16.mxu0 0
  %604 = vmatpush1.bf16.msra.mxu0 %v440
  %605 = vmatprep.subr.bf16.mxu0 0
  %606 = vmatpush1.bf16.msra.mxu0 %v441
  %607 = vmatprep.subr.bf16.mxu0 0
  %608 = vmatpush1.bf16.msra.mxu0 %v442
  %609 = vmatprep.subr.bf16.mxu0 0
  %610 = vmatpush1.bf16.msra.mxu0 %v443
  %611 = vmatprep.subr.bf16.mxu0 0
  %612 = vmatpush1.bf16.msra.mxu0 %v444
  %613 = vmatprep.subr.bf16.mxu0 0
  %614 = vmatpush1.bf16.msra.mxu0 %v445
  %615 = vmatprep.subr.bf16.mxu0 0
  %616 = vmatpush1.bf16.msra.mxu0 %v446
  %617 = vmatprep.subr.bf16.mxu0 0
  %618 = vmatpush1.bf16.msra.mxu0 %v447
  %619 = vmatprep.subr.bf16.mxu0 0
  %620 = vmatpush1.bf16.msra.mxu0 %v448
  %621 = vmatprep.subr.bf16.mxu0 0
  %622 = vmatpush1.bf16.msra.mxu0 %v449
  %623 = vmatprep.subr.bf16.mxu0 0
  %624 = vmatpush1.bf16.msra.mxu0 %v450
  %625 = vmatprep.subr.bf16.mxu0 0
  %626 = vmatpush1.bf16.msra.mxu0 %v451
  %627 = vmatprep.subr.bf16.mxu0 0
  %628 = vmatpush1.bf16.msra.mxu0 %v452
  %629 = vmatprep.mubr.bf16.mxu0 %v179
  %630 = vmatmul.mubr.bf16.gmra.mrb[0].mxu0 %v165
  %v631 = vpop.f32.mrb[0].mxu0
  %v632 = vadd.f32 %v592, %v631
  %v633 = vpop.f32.mrb[0].mxu0
  %v634 = vpop.f32.mrb[0].mxu0
  %v635 = vpop.f32.mrb[0].mxu0
  %636 = vdwg.mxu0
  %637 = vmatprep.subr.bf16.mxu0 0
  %638 = vmatpush1.bf16.msra.mxu0 %v453
  %639 = vmatprep.subr.bf16.mxu0 0
  %640 = vmatpush1.bf16.msra.mxu0 %v454
  %641 = vmatprep.subr.bf16.mxu0 0
  %642 = vmatpush1.bf16.msra.mxu0 %v455
  %643 = vmatprep.subr.bf16.mxu0 0
  %644 = vmatpush1.bf16.msra.mxu0 %v456
  %645 = vmatprep.subr.bf16.mxu0 0
  %646 = vmatpush1.bf16.msra.mxu0 %v457
  %647 = vmatprep.subr.bf16.mxu0 0
  %648 = vmatpush1.bf16.msra.mxu0 %v458
  %649 = vmatprep.subr.bf16.mxu0 0
  %650 = vmatpush1.bf16.msra.mxu0 0
  %651 = vmatprep.subr.bf16.mxu0 0
  %652 = vmatpush1.bf16.msra.mxu0 0
  %653 = vmatprep.subr.bf16.mxu0 0
  %654 = vmatpush1.bf16.msra.mxu0 0
  %655 = vmatprep.subr.bf16.mxu0 0
  %656 = vmatpush1.bf16.msra.mxu0 0
  %657 = vmatprep.subr.bf16.mxu0 0
  %658 = vmatpush1.bf16.msra.mxu0 0
  %659 = vmatprep.subr.bf16.mxu0 0
  %660 = vmatpush1.bf16.msra.mxu0 0
  %661 = vmatprep.subr.bf16.mxu0 0
  %662 = vmatpush1.bf16.msra.mxu0 0
  %663 = vmatprep.subr.bf16.mxu0 0
  %664 = vmatpush1.bf16.msra.mxu0 0
  %665 = vmatprep.subr.bf16.mxu0 0
  %666 = vmatpush1.bf16.msra.mxu0 0
  %667 = vmatprep.subr.bf16.mxu0 0
  %668 = vmatpush1.bf16.msra.mxu0 0
  %669 = vmatprep.mubr.bf16.mxu0 0
  %670 = vmatmul.mubr.bf16.gmra.mrb[0].mxu0 %v515
  %v671 = vpop.f32.mrb[0].mxu0
  %v672 = vadd.f32 %v632, %v671
  %v673 = vpop.f32.mrb[0].mxu0
  %v674 = vpop.f32.mrb[0].mxu0
  %v675 = vpop.f32.mrb[0].mxu0
  %676 = vdwg.mxu0
  %vm677 = vcmask 517120
  %678 = vst.msk [vmem:[%s3] sm:$0x3] %vm677, %v672
  %v679 = vlaneseq
  %v680 = vshrl.u32 %v679, 7
  %s681 = smul.u32 0, 2
  %v682 = vstv %s681
  %v683 = vadd.s32 %v680, %v682
  %vm684 = vcmp.lt.s32.totalorder %v683, 2
  %v685 = vsel %vm684, %v672, 0.0
  %v686 = vsel %vm677, %v685, 0.0
  %v687 = vrot.slane %v686, 4
  %v688 = vadd.f32 %v686, %v687
  %v689 = vrot.slane %v688, 2
  %v690 = vadd.f32 %v688, %v689
  %v691 = vrot.slane %v690, 1
  %v692 = vadd.f32 %v690, %v691
  %vm693 = vcmask 516096
  %694 = vst.msk [vmem:[%s4] sm:$0x1] %vm693, %v692
  %v695 = vmul.f32 %v685, %v685
  %v696 = vsel %vm677, %v695, 0.0
  %v697 = vrot.slane %v696, 4
  %v698 = vadd.f32 %v696, %v697
  %v699 = vrot.slane %v698, 2
  %v700 = vadd.f32 %v698, %v699
  %v701 = vrot.slane %v700, 1
  %v702 = vadd.f32 %v700, %v701
  %703 = vst.msk [vmem:[%s5] sm:$0x1] %vm693, %v702
  // Predicated region
  $region14: #{ali_swin3d_forward.11} parent=0 // pred_check
    _
  $region15: #{ali_swin3d_forward.11} parent=0 // pred_check_branch
    %705 = sbr.rel (0) target = $region17
  $region16: #{ali_swin3d_forward.11} parent=0 // pred_region
    _
  $region17: #{ali_swin3d_forward.11} parent=0 // pred_fallthru
    _
  // Predicated region
  $region18: #{ali_swin3d_forward.11} parent=0 // pred_check
    _
  $region19: #{ali_swin3d_forward.11} parent=0 // pred_check_branch
    %707 = sbr.rel (0) target = $region21
  $region20: #{ali_swin3d_forward.11} parent=0 // pred_region
    _
  $region21: #{ali_swin3d_forward.11} parent=0 // pred_fallthru
    _
  // Predicated region
  $region22: #{ali_swin3d_forward.11} parent=0 // pred_check
    _
  $region23: #{ali_swin3d_forward.11} parent=0 // pred_check_branch
    %709 = sbr.rel (0) target = $region25
  $region24: #{ali_swin3d_forward.11} parent=0 // pred_region
    _
  $region25: #{ali_swin3d_forward.11} parent=0 // pred_fallthru
    _
  // Predicated region
  $region26: #{ali_swin3d_forward.11} parent=0 // pred_check
    _
  $region27: #{ali_swin3d_forward.11} parent=0 // pred_check_branch
    %711 = sbr.rel (0) target = $region29
  $region28: #{ali_swin3d_forward.11} parent=0 // pred_region
    _
  $region29: #{ali_swin3d_forward.11} parent=0 // pred_fallthru
    _
  // Predicated region
  $region30: #{ali_swin3d_forward.11} parent=0 // pred_check
    _
  $region31: #{ali_swin3d_forward.11} parent=0 // pred_check_branch
    %713 = sbr.rel (0) target = $region33
  $region32: #{ali_swin3d_forward.11} parent=0 // pred_region
    _
  $region33: #{ali_swin3d_forward.11} parent=0 // pred_fallthru
    _
  // Predicated region
  $region34: #{ali_swin3d_forward.11} parent=0 // pred_check
    _
  $region35: #{ali_swin3d_forward.11} parent=0 // pred_check_branch
    %715 = sbr.rel (0) target = $region37
  $region36: #{ali_swin3d_forward.11} parent=0 // pred_region
    _
  $region37: #{ali_swin3d_forward.11} parent=0 // pred_fallthru
    _

// kernel: ali_swin3d_forward.15
$region0: #{ali_swin3d_forward.15}
  #allocation0 [shape = 'u32[]', space=smem, size = 0x4, offset = 0x4, fixed_abs, tag = 'smem constant byte address 0x4 - core index']
  #allocation1 [shape = 'u32[144,128]{1,0:T(1,128)}', space=vmem, size = 0x12000, scoped, tag = 'internal scratch']
  #allocation2 [shape = 'f32[2,128]{1,0:T(2,128)}', space=vmem, size = 0x400, scoped, tag = 'scratch operand']
  %s0 = inlined_call_operand.vmem [shape: f32[2,1,128], index: 0, kind: input, shape index: {}]
  %s1 = inlined_call_operand.hbm [shape: f32[2,128], index: 1, kind: output, shape index: {}]
  %s2 = sld [smem:[#allocation0]]
  $region22: #{ali_swin3d_forward.15} parent=0
    _
  %s4 = ssub.s32 1, %s2
  %s5 = scalar_select 0, %s4, %s2
  $region1: #{ali_swin3d_forward.15} parent=0
    #allocation3 [shape = 'u8[1024]{0}', space=vmem, size = 0x400, scoped, tag = 'output window, operand 0, single buffered']
    #allocation4 [shape = 's32[1]{0}', space=sflag, size = 0x4, scoped, tag = 'scoped memory for ali_swin3d_forward.15']
    %6 = vsyncpa [#allocation4], 0
    // Predicated region
    $region2: #{ali_swin3d_forward.15} parent=1 // pred_check
      _
    $region3: #{ali_swin3d_forward.15} parent=1 // pred_check_branch
      %8 = sbr.rel (0) target = $region5
    $region4: #{ali_swin3d_forward.15} parent=1 // pred_region
      _
    $region5: #{ali_swin3d_forward.15} parent=1 // pred_fallthru
      _
    %p9 = scmp.eq.s32.totalorder 0, 0
    // Predicated region
    $region6: #{ali_swin3d_forward.15} parent=1 // pred_check
      %p10 = pneg %p9
    $region7: #{ali_swin3d_forward.15} parent=1 // pred_check_branch
      %12 = sbr.rel (%p10) target = $region9
    $region8: #{ali_swin3d_forward.15} parent=1 // pred_region
      %13 = vst [vmem:[#allocation2] sm:$0x3] 0.0
    $region9: #{ali_swin3d_forward.15} parent=1 // pred_fallthru
      _
    %v14 = vld [vmem:[%s0] sm:$0x1]
    %v15 = vld [vmem:[%s0 + $0x1] sm:$0x1]
    %v16 = vlaneseq
    %v17 = vshrl.u32 %v16, 7
    %v18 = vstv 0
    %v19 = vadd.s32 %v17, %v18
    %vm20 = vcmp.lt.s32.totalorder %v19, 1
    %v21 = vsel %vm20, %v14, 0.0
    %v22 = vsel %vm20, %v15, 0.0
    %v23 = vld [vmem:[#allocation2] sm:$0x3]
    %v24 = vadd.f32 %v21, 0.0
    %v25 = vadd.f32 %v22, 0.0
    %v28 = vrot.slane %v25, 7
    %vm29 = vcmask 1041409
    %v30 = vsel %vm29, %v28, %v24
    %v32 = vadd.f32 %v23, %v30
    %33 = vst [vmem:[#allocation2] sm:$0x3] %v32
    // Predicated region
    $region10: #{ali_swin3d_forward.15} parent=1 // pred_check
      %p34 = pneg %p9
    $region11: #{ali_swin3d_forward.15} parent=1 // pred_check_branch
      %36 = sbr.rel (%p34) target = $region13
    $region12: #{ali_swin3d_forward.15} parent=1 // pred_region
      %v37 = vld [vmem:[#allocation2] sm:$0x3]
      %38 = vst [vmem:[#allocation3] sm:$0x3] %v37
    $region13: #{ali_swin3d_forward.15} parent=1 // pred_fallthru
      _
    // Predicated region
    $region14: #{ali_swin3d_forward.15} parent=1 // pred_check
      _
    $region15: #{ali_swin3d_forward.15} parent=1 // pred_check_branch
      %40 = sbr.rel (0) target = $region17
    $region16: #{ali_swin3d_forward.15} parent=1 // pred_region
      %s42 = ssub.s32 32, 32
      %43 = vsyncadd [#allocation4], %s42
      %s45 = sshll.u32 [#allocation3], 4
      %s46 = int_to_ptr.vmem [resolvable:$true] %s45
      %48 = dma.vmem_to_hbm [thread:$0]  %s46, 32, %s1, [#allocation4]
    $region17: #{ali_swin3d_forward.15} parent=1 // pred_fallthru
      _
    // Predicated region
    $region18: #{ali_swin3d_forward.15} parent=1 // pred_check
      _
    $region19: #{ali_swin3d_forward.15} parent=1 // pred_check_branch
      %50 = sbr.rel (0) target = $region21
    $region20: #{ali_swin3d_forward.15} parent=1 // pred_region
      %51 = dma.done [#allocation4], 32
    $region21: #{ali_swin3d_forward.15} parent=1 // pred_fallthru
      _
    %52 = vsyncpa [#allocation4], 1

// kernel: ali_swin3d_forward.13
$region0: #{ali_swin3d_forward.13}
  #allocation0 [shape = 'u32[]', space=smem, size = 0x4, offset = 0x4, fixed_abs, tag = 'smem constant byte address 0x4 - core index']
  #allocation1 [shape = 'u32[144,128]{1,0:T(1,128)}', space=vmem, size = 0x12000, scoped, tag = 'internal scratch']
  %s0 = inlined_call_operand.vmem [shape: bf16[2,1728], index: 0, kind: input, shape index: {}]
  %s1 = inlined_call_operand.vmem [shape: bf16[1728,128], index: 1, kind: input, shape index: {}]
  %s2 = inlined_call_operand.vmem [shape: f32[1,128], index: 2, kind: input, shape index: {}]
  %s3 = inlined_call_operand.vmem [shape: f32[2,128], index: 3, kind: output, shape index: {0}]
  %s4 = inlined_call_operand.vmem [shape: f32[1,128], index: 4, kind: output, shape index: {1}]
  %s5 = inlined_call_operand.vmem [shape: f32[1,128], index: 5, kind: output, shape index: {2}]
  %6 = xla_tuple %s3, %s4, %s5
  %s7 = sld [smem:[#allocation0]]
  $region38: #{ali_swin3d_forward.13} parent=0
    _
  %s9 = ssub.s32 1, %s7
  %s10 = scalar_select 0, %s9, %s7
  // Predicated region
  $region2: #{ali_swin3d_forward.13} parent=0 // pred_check
    _
  $region3: #{ali_swin3d_forward.13} parent=0 // pred_check_branch
    %12 = sbr.rel (0) target = $region5
  $region4: #{ali_swin3d_forward.13} parent=0 // pred_region
    _
  $region5: #{ali_swin3d_forward.13} parent=0 // pred_fallthru
    _
  // Predicated region
  $region6: #{ali_swin3d_forward.13} parent=0 // pred_check
    _
  $region7: #{ali_swin3d_forward.13} parent=0 // pred_check_branch
    %14 = sbr.rel (0) target = $region9
  $region8: #{ali_swin3d_forward.13} parent=0 // pred_region
    _
  $region9: #{ali_swin3d_forward.13} parent=0 // pred_fallthru
    _
  // Predicated region
  $region10: #{ali_swin3d_forward.13} parent=0 // pred_check
    _
  $region11: #{ali_swin3d_forward.13} parent=0 // pred_check_branch
    %16 = sbr.rel (0) target = $region13
  $region12: #{ali_swin3d_forward.13} parent=0 // pred_region
    _
  $region13: #{ali_swin3d_forward.13} parent=0 // pred_fallthru
    _
  %v18 = vld [vmem:[%s0] sm:$0xff]
  %v19 = vld [vmem:[%s0 + $0x8] sm:$0x3f]
  %v20 = vld [vmem:[%s1] sm:$0xf]
  %v21 = vld [vmem:[%s1 + $0x4] sm:$0xf]
  %v22 = vld [vmem:[%s1 + $0x8] sm:$0xf]
  %v23 = vld [vmem:[%s1 + $0xc] sm:$0xf]
  %v24 = vld [vmem:[%s1 + $0x10] sm:$0xf]
  %v25 = vld [vmem:[%s1 + $0x14] sm:$0xf]
  %v26 = vld [vmem:[%s1 + $0x18] sm:$0xf]
  %v27 = vld [vmem:[%s1 + $0x1c] sm:$0xf]
  %v28 = vld [vmem:[%s1 + $0x20] sm:$0xf]
  %v29 = vld [vmem:[%s1 + $0x24] sm:$0xf]
  %v30 = vld [vmem:[%s1 + $0x28] sm:$0xf]
  %v31 = vld [vmem:[%s1 + $0x2c] sm:$0xf]
  %v32 = vld [vmem:[%s1 + $0x30] sm:$0xf]
  %v33 = vld [vmem:[%s1 + $0x34] sm:$0xf]
  %v34 = vld [vmem:[%s1 + $0x38] sm:$0xf]
  %v35 = vld [vmem:[%s1 + $0x3c] sm:$0xf]
  %v36 = vld [vmem:[%s1 + $0x40] sm:$0xf]
  %v37 = vld [vmem:[%s1 + $0x44] sm:$0xf]
  %v38 = vld [vmem:[%s1 + $0x48] sm:$0xf]
  %v39 = vld [vmem:[%s1 + $0x4c] sm:$0xf]
  %v40 = vld [vmem:[%s1 + $0x50] sm:$0xf]
  %v41 = vld [vmem:[%s1 + $0x54] sm:$0xf]
  %v42 = vld [vmem:[%s1 + $0x58] sm:$0xf]
  %v43 = vld [vmem:[%s1 + $0x5c] sm:$0xf]
  %v44 = vld [vmem:[%s1 + $0x60] sm:$0xf]
  %v45 = vld [vmem:[%s1 + $0x64] sm:$0xf]
  %v46 = vld [vmem:[%s1 + $0x68] sm:$0xf]
  %v47 = vld [vmem:[%s1 + $0x6c] sm:$0xf]
  %v48 = vld [vmem:[%s1 + $0x70] sm:$0xf]
  %v49 = vld [vmem:[%s1 + $0x74] sm:$0xf]
  %v50 = vld [vmem:[%s1 + $0x78] sm:$0xf]
  %v51 = vld [vmem:[%s1 + $0x7c] sm:$0xf]
  %v52 = vld [vmem:[%s1 + $0x80] sm:$0xf]
  %v53 = vld [vmem:[%s1 + $0x84] sm:$0xf]
  %v54 = vld [vmem:[%s1 + $0x88] sm:$0xf]
  %v55 = vld [vmem:[%s1 + $0x8c] sm:$0xf]
  %v56 = vld [vmem:[%s1 + $0x90] sm:$0xf]
  %v57 = vld [vmem:[%s1 + $0x94] sm:$0xf]
  %v58 = vld [vmem:[%s1 + $0x98] sm:$0xf]
  %v59 = vld [vmem:[%s1 + $0x9c] sm:$0xf]
  %v60 = vld [vmem:[%s1 + $0xa0] sm:$0xf]
  %v61 = vld [vmem:[%s1 + $0xa4] sm:$0xf]
  %v62 = vld [vmem:[%s1 + $0xa8] sm:$0xf]
  %v63 = vld [vmem:[%s1 + $0xac] sm:$0xf]
  %v64 = vld [vmem:[%s1 + $0xb0] sm:$0xf]
  %v65 = vld [vmem:[%s1 + $0xb4] sm:$0xf]
  %v66 = vld [vmem:[%s1 + $0xb8] sm:$0xf]
  %v67 = vld [vmem:[%s1 + $0xbc] sm:$0xf]
  %v68 = vld [vmem:[%s1 + $0xc0] sm:$0xf]
  %v69 = vld [vmem:[%s1 + $0xc4] sm:$0xf]
  %v70 = vld [vmem:[%s1 + $0xc8] sm:$0xf]
  %v71 = vld [vmem:[%s1 + $0xcc] sm:$0xf]
  %v72 = vld [vmem:[%s1 + $0xd0] sm:$0xf]
  %v73 = vld [vmem:[%s1 + $0xd4] sm:$0xf]
  %v74 = vld [vmem:[%s1 + $0xd8] sm:$0xf]
  %v75 = vld [vmem:[%s1 + $0xdc] sm:$0xf]
  %v76 = vld [vmem:[%s1 + $0xe0] sm:$0xf]
  %v77 = vld [vmem:[%s1 + $0xe4] sm:$0xf]
  %v78 = vld [vmem:[%s1 + $0xe8] sm:$0xf]
  %v79 = vld [vmem:[%s1 + $0xec] sm:$0xf]
  %v80 = vld [vmem:[%s1 + $0xf0] sm:$0xf]
  %v81 = vld [vmem:[%s1 + $0xf4] sm:$0xf]
  %v82 = vld [vmem:[%s1 + $0xf8] sm:$0xf]
  %v83 = vld [vmem:[%s1 + $0xfc] sm:$0xf]
  %v84 = vld [vmem:[%s1 + $0x100] sm:$0xf]
  %v85 = vld [vmem:[%s1 + $0x104] sm:$0xf]
  %v86 = vld [vmem:[%s1 + $0x108] sm:$0xf]
  %v87 = vld [vmem:[%s1 + $0x10c] sm:$0xf]
  %v88 = vld [vmem:[%s1 + $0x110] sm:$0xf]
  %v89 = vld [vmem:[%s1 + $0x114] sm:$0xf]
  %v90 = vld [vmem:[%s1 + $0x118] sm:$0xf]
  %v91 = vld [vmem:[%s1 + $0x11c] sm:$0xf]
  %v92 = vld [vmem:[%s1 + $0x120] sm:$0xf]
  %v93 = vld [vmem:[%s1 + $0x124] sm:$0xf]
  %v94 = vld [vmem:[%s1 + $0x128] sm:$0xf]
  %v95 = vld [vmem:[%s1 + $0x12c] sm:$0xf]
  %v96 = vld [vmem:[%s1 + $0x130] sm:$0xf]
  %v97 = vld [vmem:[%s1 + $0x134] sm:$0xf]
  %v98 = vld [vmem:[%s1 + $0x138] sm:$0xf]
  %v99 = vld [vmem:[%s1 + $0x13c] sm:$0xf]
  %v100 = vld [vmem:[%s1 + $0x140] sm:$0xf]
  %v101 = vld [vmem:[%s1 + $0x144] sm:$0xf]
  %v102 = vld [vmem:[%s1 + $0x148] sm:$0xf]
  %v103 = vld [vmem:[%s1 + $0x14c] sm:$0xf]
  %v104 = vld [vmem:[%s1 + $0x150] sm:$0xf]
  %v105 = vld [vmem:[%s1 + $0x154] sm:$0xf]
  %v106 = vld [vmem:[%s1 + $0x158] sm:$0xf]
  %v107 = vld [vmem:[%s1 + $0x15c] sm:$0xf]
  %v108 = vld [vmem:[%s1 + $0x160] sm:$0xf]
  %v109 = vld [vmem:[%s1 + $0x164] sm:$0xf]
  %v110 = vld [vmem:[%s1 + $0x168] sm:$0xf]
  %v111 = vld [vmem:[%s1 + $0x16c] sm:$0xf]
  %v112 = vld [vmem:[%s1 + $0x170] sm:$0xf]
  %v113 = vld [vmem:[%s1 + $0x174] sm:$0xf]
  %v114 = vld [vmem:[%s1 + $0x178] sm:$0xf]
  %v115 = vld [vmem:[%s1 + $0x17c] sm:$0xf]
  %v116 = vld [vmem:[%s1 + $0x180] sm:$0xf]
  %v117 = vld [vmem:[%s1 + $0x184] sm:$0xf]
  %v118 = vld [vmem:[%s1 + $0x188] sm:$0xf]
  %v119 = vld [vmem:[%s1 + $0x18c] sm:$0xf]
  %v120 = vld [vmem:[%s1 + $0x190] sm:$0xf]
  %v121 = vld [vmem:[%s1 + $0x194] sm:$0xf]
  %v122 = vld [vmem:[%s1 + $0x198] sm:$0xf]
  %v123 = vld [vmem:[%s1 + $0x19c] sm:$0xf]
  %v124 = vld [vmem:[%s1 + $0x1a0] sm:$0xf]
  %v125 = vld [vmem:[%s1 + $0x1a4] sm:$0xf]
  %v126 = vld [vmem:[%s1 + $0x1a8] sm:$0xf]
  %v127 = vld [vmem:[%s1 + $0x1ac] sm:$0xf]
  %v128 = vld [vmem:[%s1 + $0x1b0] sm:$0xf]
  %v129 = vld [vmem:[%s1 + $0x1b4] sm:$0xf]
  %v130 = vld [vmem:[%s1 + $0x1b8] sm:$0xf]
  %v131 = vld [vmem:[%s1 + $0x1bc] sm:$0xf]
  %v132 = vld [vmem:[%s1 + $0x1c0] sm:$0xf]
  %v133 = vld [vmem:[%s1 + $0x1c4] sm:$0xf]
  %v134 = vld [vmem:[%s1 + $0x1c8] sm:$0xf]
  %v135 = vld [vmem:[%s1 + $0x1cc] sm:$0xf]
  %v136 = vld [vmem:[%s1 + $0x1d0] sm:$0xf]
  %v137 = vld [vmem:[%s1 + $0x1d4] sm:$0xf]
  %v138 = vld [vmem:[%s1 + $0x1d8] sm:$0xf]
  %v139 = vld [vmem:[%s1 + $0x1dc] sm:$0xf]
  %v140 = vld [vmem:[%s1 + $0x1e0] sm:$0xf]
  %v141 = vld [vmem:[%s1 + $0x1e4] sm:$0xf]
  %v142 = vld [vmem:[%s1 + $0x1e8] sm:$0xf]
  %v143 = vld [vmem:[%s1 + $0x1ec] sm:$0xf]
  %v144 = vld [vmem:[%s1 + $0x1f0] sm:$0xf]
  %v145 = vld [vmem:[%s1 + $0x1f4] sm:$0xf]
  %v146 = vld [vmem:[%s1 + $0x1f8] sm:$0xf]
  %v147 = vld [vmem:[%s1 + $0x1fc] sm:$0xf]
  %v148 = vld [vmem:[%s1 + $0x200] sm:$0xf]
  %v149 = vld [vmem:[%s1 + $0x204] sm:$0xf]
  %v150 = vld [vmem:[%s1 + $0x208] sm:$0xf]
  %v151 = vld [vmem:[%s1 + $0x20c] sm:$0xf]
  %v152 = vld [vmem:[%s1 + $0x210] sm:$0xf]
  %v153 = vld [vmem:[%s1 + $0x214] sm:$0xf]
  %v154 = vld [vmem:[%s1 + $0x218] sm:$0xf]
  %v155 = vld [vmem:[%s1 + $0x21c] sm:$0xf]
  %v156 = vld [vmem:[%s1 + $0x220] sm:$0xf]
  %v157 = vld [vmem:[%s1 + $0x224] sm:$0xf]
  %v158 = vld [vmem:[%s1 + $0x228] sm:$0xf]
  %v159 = vld [vmem:[%s1 + $0x22c] sm:$0xf]
  %v160 = vld [vmem:[%s1 + $0x230] sm:$0xf]
  %v161 = vld [vmem:[%s1 + $0x234] sm:$0xf]
  %v162 = vld [vmem:[%s1 + $0x238] sm:$0xf]
  %v163 = vld [vmem:[%s1 + $0x23c] sm:$0xf]
  %v164 = vld [vmem:[%s1 + $0x240] sm:$0xf]
  %v165 = vld [vmem:[%s1 + $0x244] sm:$0xf]
  %v166 = vld [vmem:[%s1 + $0x248] sm:$0xf]
  %v167 = vld [vmem:[%s1 + $0x24c] sm:$0xf]
  %v168 = vld [vmem:[%s1 + $0x250] sm:$0xf]
  %v169 = vld [vmem:[%s1 + $0x254] sm:$0xf]
  %v170 = vld [vmem:[%s1 + $0x258] sm:$0xf]
  %v171 = vld [vmem:[%s1 + $0x25c] sm:$0xf]
  %v172 = vld [vmem:[%s1 + $0x260] sm:$0xf]
  %v173 = vld [vmem:[%s1 + $0x264] sm:$0xf]
  %v174 = vld [vmem:[%s1 + $0x268] sm:$0xf]
  %v175 = vld [vmem:[%s1 + $0x26c] sm:$0xf]
  %v176 = vld [vmem:[%s1 + $0x270] sm:$0xf]
  %v177 = vld [vmem:[%s1 + $0x274] sm:$0xf]
  %v178 = vld [vmem:[%s1 + $0x278] sm:$0xf]
  %v179 = vld [vmem:[%s1 + $0x27c] sm:$0xf]
  %v180 = vld [vmem:[%s1 + $0x280] sm:$0xf]
  %v181 = vld [vmem:[%s1 + $0x284] sm:$0xf]
  %v182 = vld [vmem:[%s1 + $0x288] sm:$0xf]
  %v183 = vld [vmem:[%s1 + $0x28c] sm:$0xf]
  %v184 = vld [vmem:[%s1 + $0x290] sm:$0xf]
  %v185 = vld [vmem:[%s1 + $0x294] sm:$0xf]
  %v186 = vld [vmem:[%s1 + $0x298] sm:$0xf]
  %v187 = vld [vmem:[%s1 + $0x29c] sm:$0xf]
  %v188 = vld [vmem:[%s1 + $0x2a0] sm:$0xf]
  %v189 = vld [vmem:[%s1 + $0x2a4] sm:$0xf]
  %v190 = vld [vmem:[%s1 + $0x2a8] sm:$0xf]
  %v191 = vld [vmem:[%s1 + $0x2ac] sm:$0xf]
  %v192 = vld [vmem:[%s1 + $0x2b0] sm:$0xf]
  %v193 = vld [vmem:[%s1 + $0x2b4] sm:$0xf]
  %v194 = vld [vmem:[%s1 + $0x2b8] sm:$0xf]
  %v195 = vld [vmem:[%s1 + $0x2bc] sm:$0xf]
  %v196 = vld [vmem:[%s1 + $0x2c0] sm:$0xf]
  %v197 = vld [vmem:[%s1 + $0x2c4] sm:$0xf]
  %v198 = vld [vmem:[%s1 + $0x2c8] sm:$0xf]
  %v199 = vld [vmem:[%s1 + $0x2cc] sm:$0xf]
  %v200 = vld [vmem:[%s1 + $0x2d0] sm:$0xf]
  %v201 = vld [vmem:[%s1 + $0x2d4] sm:$0xf]
  %v202 = vld [vmem:[%s1 + $0x2d8] sm:$0xf]
  %v203 = vld [vmem:[%s1 + $0x2dc] sm:$0xf]
  %v204 = vld [vmem:[%s1 + $0x2e0] sm:$0xf]
  %v205 = vld [vmem:[%s1 + $0x2e4] sm:$0xf]
  %v206 = vld [vmem:[%s1 + $0x2e8] sm:$0xf]
  %v207 = vld [vmem:[%s1 + $0x2ec] sm:$0xf]
  %v208 = vld [vmem:[%s1 + $0x2f0] sm:$0xf]
  %v209 = vld [vmem:[%s1 + $0x2f4] sm:$0xf]
  %v210 = vld [vmem:[%s1 + $0x2f8] sm:$0xf]
  %v211 = vld [vmem:[%s1 + $0x2fc] sm:$0xf]
  %v212 = vld [vmem:[%s1 + $0x300] sm:$0xf]
  %v213 = vld [vmem:[%s1 + $0x304] sm:$0xf]
  %v214 = vld [vmem:[%s1 + $0x308] sm:$0xf]
  %v215 = vld [vmem:[%s1 + $0x30c] sm:$0xf]
  %v216 = vld [vmem:[%s1 + $0x310] sm:$0xf]
  %v217 = vld [vmem:[%s1 + $0x314] sm:$0xf]
  %v218 = vld [vmem:[%s1 + $0x318] sm:$0xf]
  %v219 = vld [vmem:[%s1 + $0x31c] sm:$0xf]
  %v220 = vld [vmem:[%s1 + $0x320] sm:$0xf]
  %v221 = vld [vmem:[%s1 + $0x324] sm:$0xf]
  %v222 = vld [vmem:[%s1 + $0x328] sm:$0xf]
  %v223 = vld [vmem:[%s1 + $0x32c] sm:$0xf]
  %v224 = vld [vmem:[%s1 + $0x330] sm:$0xf]
  %v225 = vld [vmem:[%s1 + $0x334] sm:$0xf]
  %v226 = vld [vmem:[%s1 + $0x338] sm:$0xf]
  %v227 = vld [vmem:[%s1 + $0x33c] sm:$0xf]
  %v228 = vld [vmem:[%s1 + $0x340] sm:$0xf]
  %v229 = vld [vmem:[%s1 + $0x344] sm:$0xf]
  %v230 = vld [vmem:[%s1 + $0x348] sm:$0xf]
  %v231 = vld [vmem:[%s1 + $0x34c] sm:$0xf]
  %v232 = vld [vmem:[%s1 + $0x350] sm:$0xf]
  %v233 = vld [vmem:[%s1 + $0x354] sm:$0xf]
  %v234 = vld [vmem:[%s1 + $0x358] sm:$0xf]
  %v235 = vld [vmem:[%s1 + $0x35c] sm:$0xf]
  %v236 = vld [vmem:[%s2] sm:$0x1]
  %v238 = vlaneseq
  %v239 = vshrl.u32 %v238, 7
  %v240 = vsub.s32 0, %v239
  %v241 = vrot.slane %v236, %v240
  %v245 = vcombine.high %v18, %v18
  %v247 = vunpack.c.l.s4 1966171168
  %v248 = vunpack.c.0.s8 %v247
  %v249 = vlaneseq
  %v250 = vshrl.u32 %v249, 7
  %v251 = vsub.s32 %v248, %v250
  %v252 = vrot.slane %v18, %v251
  %v254 = vunpack.c.l.s4 1966171168
  %v255 = vunpack.c.0.s8 %v254
  %v256 = vlaneseq
  %v257 = vshrl.u32 %v256, 7
  %v258 = vsub.s32 %v255, %v257
  %v259 = vrot.slane %v245, %v258
  %v260 = vcombine.high %v252, %v252
  %v261 = vcombine.high %v259, %v259
  %v263 = vunpack.c.l.s4 1966171168
  %v264 = vunpack.c.0.s8 %v263
  %v265 = vlaneseq
  %v266 = vshrl.u32 %v265, 7
  %v267 = vsub.s32 %v264, %v266
  %v268 = vrot.slane %v252, %v267
  %v270 = vunpack.c.l.s4 1966171168
  %v271 = vunpack.c.0.s8 %v270
  %v272 = vlaneseq
  %v273 = vshrl.u32 %v272, 7
  %v274 = vsub.s32 %v271, %v273
  %v275 = vrot.slane %v259, %v274
  %v277 = vunpack.c.l.s4 1966171168
  %v278 = vunpack.c.0.s8 %v277
  %v279 = vlaneseq
  %v280 = vshrl.u32 %v279, 7
  %v281 = vsub.s32 %v278, %v280
  %v282 = vrot.slane %v260, %v281
  %v284 = vunpack.c.l.s4 1966171168
  %v285 = vunpack.c.0.s8 %v284
  %v286 = vlaneseq
  %v287 = vshrl.u32 %v286, 7
  %v288 = vsub.s32 %v285, %v287
  %v289 = vrot.slane %v261, %v288
  %v290 = vcombine.high %v268, %v268
  %v291 = vcombine.high %v275, %v275
  %v292 = vcombine.high %v282, %v282
  %v293 = vcombine.high %v289, %v289
  %v294 = vcombine.high %v19, %v19
  %v296 = vunpack.c.l.s4 1966171168
  %v297 = vunpack.c.0.s8 %v296
  %v298 = vlaneseq
  %v299 = vshrl.u32 %v298, 7
  %v300 = vsub.s32 %v297, %v299
  %v301 = vrot.slane %v19, %v300
  %v303 = vunpack.c.l.s4 1966171168
  %v304 = vunpack.c.0.s8 %v303
  %v305 = vlaneseq
  %v306 = vshrl.u32 %v305, 7
  %v307 = vsub.s32 %v304, %v306
  %v308 = vrot.slane %v294, %v307
  %v309 = vcombine.high %v301, %v301
  %v310 = vcombine.high %v308, %v308
  %v312 = vunpack.c.l.s4 1966171168
  %v313 = vunpack.c.0.s8 %v312
  %v314 = vlaneseq
  %v315 = vshrl.u32 %v314, 7
  %v316 = vsub.s32 %v313, %v315
  %v317 = vrot.slane %v301, %v316
  %v319 = vunpack.c.l.s4 1966171168
  %v320 = vunpack.c.0.s8 %v319
  %v321 = vlaneseq
  %v322 = vshrl.u32 %v321, 7
  %v323 = vsub.s32 %v320, %v322
  %v324 = vrot.slane %v308, %v323
  %v326 = vunpack.c.l.s4 1966171168
  %v327 = vunpack.c.0.s8 %v326
  %v328 = vlaneseq
  %v329 = vshrl.u32 %v328, 7
  %v330 = vsub.s32 %v327, %v329
  %v331 = vrot.slane %v309, %v330
  %v333 = vunpack.c.l.s4 1966171168
  %v334 = vunpack.c.0.s8 %v333
  %v335 = vlaneseq
  %v336 = vshrl.u32 %v335, 7
  %v337 = vsub.s32 %v334, %v336
  %v338 = vrot.slane %v310, %v337
  %v339 = vcombine.high %v317, %v317
  %v340 = vcombine.high %v331, %v331
  %v570 = vunpack.c.l.b16 %v20
  %v571 = vunpack.c.l.b16 %v21
  %v572 = vunpack.c.l.b16 %v22
  %v573 = vunpack.c.l.b16 %v23
  %v574 = vunpack.c.l.b16 %v24
  %v575 = vunpack.c.l.b16 %v25
  %v576 = vunpack.c.l.b16 %v26
  %v577 = vunpack.c.l.b16 %v27
  %v578 = vunpack.c.l.b16 %v28
  %v579 = vunpack.c.l.b16 %v29
  %v580 = vunpack.c.l.b16 %v30
  %v581 = vunpack.c.l.b16 %v31
  %v582 = vunpack.c.l.b16 %v32
  %v583 = vunpack.c.l.b16 %v33
  %v584 = vunpack.c.l.b16 %v34
  %v585 = vunpack.c.l.b16 %v35
  %v586 = vunpack.c.l.b16 %v36
  %v587 = vunpack.c.l.b16 %v37
  %v588 = vunpack.c.l.b16 %v38
  %v589 = vunpack.c.l.b16 %v39
  %v590 = vunpack.c.l.b16 %v40
  %v591 = vunpack.c.l.b16 %v41
  %v592 = vunpack.c.l.b16 %v42
  %v593 = vunpack.c.l.b16 %v43
  %v594 = vunpack.c.l.b16 %v44
  %v595 = vunpack.c.l.b16 %v45
  %v596 = vunpack.c.l.b16 %v46
  %v597 = vunpack.c.l.b16 %v47
  %v598 = vunpack.c.l.b16 %v48
  %v599 = vunpack.c.l.b16 %v49
  %v600 = vunpack.c.l.b16 %v50
  %v601 = vunpack.c.l.b16 %v51
  %v602 = vunpack.c.l.b16 %v52
  %v603 = vunpack.c.l.b16 %v53
  %v604 = vunpack.c.l.b16 %v54
  %v605 = vunpack.c.l.b16 %v55
  %v606 = vunpack.c.l.b16 %v56
  %v607 = vunpack.c.l.b16 %v57
  %v608 = vunpack.c.l.b16 %v58
  %v609 = vunpack.c.l.b16 %v59
  %v610 = vunpack.c.l.b16 %v60
  %v611 = vunpack.c.l.b16 %v61
  %v612 = vunpack.c.l.b16 %v62
  %v613 = vunpack.c.l.b16 %v63
  %v614 = vunpack.c.l.b16 %v64
  %v615 = vunpack.c.l.b16 %v65
  %v616 = vunpack.c.l.b16 %v66
  %v617 = vunpack.c.l.b16 %v67
  %v618 = vunpack.c.l.b16 %v68
  %v619 = vunpack.c.l.b16 %v69
  %v620 = vunpack.c.l.b16 %v70
  %v621 = vunpack.c.l.b16 %v71
  %v622 = vunpack.c.l.b16 %v72
  %v623 = vunpack.c.l.b16 %v73
  %v624 = vunpack.c.l.b16 %v74
  %v625 = vunpack.c.l.b16 %v75
  %v626 = vunpack.c.l.b16 %v76
  %v627 = vunpack.c.l.b16 %v77
  %v628 = vunpack.c.l.b16 %v78
  %v629 = vunpack.c.l.b16 %v79
  %v630 = vunpack.c.l.b16 %v80
  %v631 = vunpack.c.l.b16 %v81
  %v632 = vunpack.c.l.b16 %v82
  %v633 = vunpack.c.l.b16 %v83
  %v634 = vunpack.c.l.b16 %v84
  %v635 = vunpack.c.l.b16 %v85
  %v636 = vunpack.c.l.b16 %v86
  %v637 = vunpack.c.l.b16 %v87
  %v638 = vunpack.c.l.b16 %v88
  %v639 = vunpack.c.l.b16 %v89
  %v640 = vunpack.c.l.b16 %v90
  %v641 = vunpack.c.l.b16 %v91
  %v642 = vunpack.c.l.b16 %v92
  %v643 = vunpack.c.l.b16 %v93
  %v644 = vunpack.c.l.b16 %v94
  %v645 = vunpack.c.l.b16 %v95
  %v646 = vunpack.c.l.b16 %v96
  %v647 = vunpack.c.l.b16 %v97
  %v648 = vunpack.c.l.b16 %v98
  %v649 = vunpack.c.l.b16 %v99
  %v650 = vunpack.c.l.b16 %v100
  %v651 = vunpack.c.l.b16 %v101
  %v652 = vunpack.c.l.b16 %v102
  %v653 = vunpack.c.l.b16 %v103
  %v654 = vunpack.c.l.b16 %v104
  %v655 = vunpack.c.l.b16 %v105
  %v656 = vunpack.c.l.b16 %v106
  %v657 = vunpack.c.l.b16 %v107
  %v658 = vunpack.c.l.b16 %v108
  %v659 = vunpack.c.l.b16 %v109
  %v660 = vunpack.c.l.b16 %v110
  %v661 = vunpack.c.l.b16 %v111
  %v662 = vunpack.c.l.b16 %v112
  %v663 = vunpack.c.l.b16 %v113
  %v664 = vunpack.c.l.b16 %v114
  %v665 = vunpack.c.l.b16 %v115
  %v666 = vunpack.c.l.b16 %v116
  %v667 = vunpack.c.l.b16 %v117
  %v668 = vunpack.c.l.b16 %v118
  %v669 = vunpack.c.l.b16 %v119
  %v670 = vunpack.c.l.b16 %v120
  %v671 = vunpack.c.l.b16 %v121
  %v672 = vunpack.c.l.b16 %v122
  %v673 = vunpack.c.l.b16 %v123
  %v674 = vunpack.c.l.b16 %v124
  %v675 = vunpack.c.l.b16 %v125
  %v676 = vunpack.c.l.b16 %v126
  %v677 = vunpack.c.l.b16 %v127
  %v678 = vunpack.c.l.b16 %v128
  %v679 = vunpack.c.l.b16 %v129
  %v680 = vunpack.c.l.b16 %v130
  %v681 = vunpack.c.l.b16 %v131
  %v682 = vunpack.c.l.b16 %v132
  %v683 = vunpack.c.l.b16 %v133
  %v684 = vunpack.c.l.b16 %v134
  %v685 = vunpack.c.l.b16 %v135
  %v686 = vunpack.c.l.b16 %v136
  %v687 = vunpack.c.l.b16 %v137
  %v688 = vunpack.c.l.b16 %v138
  %v689 = vunpack.c.l.b16 %v139
  %v690 = vunpack.c.l.b16 %v140
  %v691 = vunpack.c.l.b16 %v141
  %v692 = vunpack.c.l.b16 %v142
  %v693 = vunpack.c.l.b16 %v143
  %v694 = vunpack.c.l.b16 %v144
  %v695 = vunpack.c.l.b16 %v145
  %v696 = vunpack.c.l.b16 %v146
  %v697 = vunpack.c.l.b16 %v147
  %v698 = vunpack.c.l.b16 %v148
  %v699 = vunpack.c.l.b16 %v149
  %v700 = vunpack.c.l.b16 %v150
  %v701 = vunpack.c.l.b16 %v151
  %v702 = vunpack.c.l.b16 %v152
  %v703 = vunpack.c.l.b16 %v153
  %v704 = vunpack.c.l.b16 %v154
  %v705 = vunpack.c.l.b16 %v155
  %v706 = vunpack.c.l.b16 %v156
  %v707 = vunpack.c.l.b16 %v157
  %v708 = vunpack.c.l.b16 %v158
  %v709 = vunpack.c.l.b16 %v159
  %v710 = vunpack.c.l.b16 %v160
  %v711 = vunpack.c.l.b16 %v161
  %v712 = vunpack.c.l.b16 %v162
  %v713 = vunpack.c.l.b16 %v163
  %v714 = vunpack.c.l.b16 %v164
  %v715 = vunpack.c.l.b16 %v165
  %v716 = vunpack.c.l.b16 %v166
  %v717 = vunpack.c.l.b16 %v167
  %v718 = vunpack.c.l.b16 %v168
  %v719 = vunpack.c.l.b16 %v169
  %v720 = vunpack.c.l.b16 %v170
  %v721 = vunpack.c.l.b16 %v171
  %v722 = vunpack.c.l.b16 %v172
  %v723 = vunpack.c.l.b16 %v173
  %v724 = vunpack.c.l.b16 %v174
  %v725 = vunpack.c.l.b16 %v175
  %v726 = vunpack.c.l.b16 %v176
  %v727 = vunpack.c.l.b16 %v177
  %v728 = vunpack.c.l.b16 %v178
  %v729 = vunpack.c.l.b16 %v179
  %v730 = vunpack.c.l.b16 %v180
  %v731 = vunpack.c.l.b16 %v181
  %v732 = vunpack.c.l.b16 %v182
  %v733 = vunpack.c.l.b16 %v183
  %v734 = vunpack.c.l.b16 %v184
  %v735 = vunpack.c.l.b16 %v185
  %v736 = vunpack.c.l.b16 %v186
  %v737 = vunpack.c.l.b16 %v187
  %v738 = vunpack.c.l.b16 %v188
  %v739 = vunpack.c.l.b16 %v189
  %v740 = vunpack.c.l.b16 %v190
  %v741 = vunpack.c.l.b16 %v191
  %v742 = vunpack.c.l.b16 %v192
  %v743 = vunpack.c.l.b16 %v193
  %v744 = vunpack.c.l.b16 %v194
  %v745 = vunpack.c.l.b16 %v195
  %v746 = vunpack.c.l.b16 %v196
  %v747 = vunpack.c.l.b16 %v197
  %v748 = vunpack.c.l.b16 %v198
  %v749 = vunpack.c.l.b16 %v199
  %v750 = vunpack.c.l.b16 %v200
  %v751 = vunpack.c.l.b16 %v201
  %v752 = vunpack.c.l.b16 %v202
  %v753 = vunpack.c.l.b16 %v203
  %v754 = vunpack.c.l.b16 %v204
  %v755 = vunpack.c.l.b16 %v205
  %v756 = vunpack.c.l.b16 %v206
  %v757 = vunpack.c.l.b16 %v207
  %v758 = vunpack.c.l.b16 %v208
  %v759 = vunpack.c.l.b16 %v209
  %v760 = vunpack.c.l.b16 %v210
  %v761 = vunpack.c.l.b16 %v211
  %v762 = vunpack.c.l.b16 %v212
  %v763 = vunpack.c.l.b16 %v213
  %v764 = vunpack.c.l.b16 %v214
  %v765 = vunpack.c.l.b16 %v215
  %v766 = vunpack.c.l.b16 %v216
  %v767 = vunpack.c.l.b16 %v217
  %v768 = vunpack.c.l.b16 %v218
  %v769 = vunpack.c.l.b16 %v219
  %v770 = vunpack.c.l.b16 %v220
  %v771 = vunpack.c.l.b16 %v221
  %v772 = vunpack.c.l.b16 %v222
  %v773 = vunpack.c.l.b16 %v223
  %v774 = vunpack.c.l.b16 %v224
  %v775 = vunpack.c.l.b16 %v225
  %v776 = vunpack.c.l.b16 %v226
  %v777 = vunpack.c.l.b16 %v227
  %v778 = vunpack.c.l.b16 %v228
  %v779 = vunpack.c.l.b16 %v229
  %v780 = vunpack.c.l.b16 %v230
  %v781 = vunpack.c.l.b16 %v231
  %v782 = vunpack.c.l.b16 %v232
  %v783 = vunpack.c.l.b16 %v233
  %v784 = vunpack.c.l.b16 %v234
  %v785 = vunpack.c.l.b16 %v235
  %v786 = vpack.c.b16 %v571, %v570
  %v787 = vpack.c.b16 %v573, %v572
  %v788 = vpack.c.b16 %v575, %v574
  %v789 = vpack.c.b16 %v577, %v576
  %v790 = vpack.c.b16 %v579, %v578
  %v791 = vpack.c.b16 %v581, %v580
  %v792 = vpack.c.b16 %v583, %v582
  %v793 = vpack.c.b16 %v585, %v584
  %v794 = vpack.c.b16 %v587, %v586
  %v795 = vpack.c.b16 %v589, %v588
  %v796 = vpack.c.b16 %v591, %v590
  %v797 = vpack.c.b16 %v593, %v592
  %v798 = vpack.c.b16 %v595, %v594
  %v799 = vpack.c.b16 %v597, %v596
  %v800 = vpack.c.b16 %v599, %v598
  %v801 = vpack.c.b16 %v601, %v600
  %v802 = vpack.c.b16 %v603, %v602
  %v803 = vpack.c.b16 %v605, %v604
  %v804 = vpack.c.b16 %v607, %v606
  %v805 = vpack.c.b16 %v609, %v608
  %v806 = vpack.c.b16 %v611, %v610
  %v807 = vpack.c.b16 %v613, %v612
  %v808 = vpack.c.b16 %v615, %v614
  %v809 = vpack.c.b16 %v617, %v616
  %v810 = vpack.c.b16 %v619, %v618
  %v811 = vpack.c.b16 %v621, %v620
  %v812 = vpack.c.b16 %v623, %v622
  %v813 = vpack.c.b16 %v625, %v624
  %v814 = vpack.c.b16 %v627, %v626
  %v815 = vpack.c.b16 %v629, %v628
  %v816 = vpack.c.b16 %v631, %v630
  %v817 = vpack.c.b16 %v633, %v632
  %v818 = vpack.c.b16 %v635, %v634
  %v819 = vpack.c.b16 %v637, %v636
  %v820 = vpack.c.b16 %v639, %v638
  %v821 = vpack.c.b16 %v641, %v640
  %v822 = vpack.c.b16 %v643, %v642
  %v823 = vpack.c.b16 %v645, %v644
  %v824 = vpack.c.b16 %v647, %v646
  %v825 = vpack.c.b16 %v649, %v648
  %v826 = vpack.c.b16 %v651, %v650
  %v827 = vpack.c.b16 %v653, %v652
  %v828 = vpack.c.b16 %v655, %v654
  %v829 = vpack.c.b16 %v657, %v656
  %v830 = vpack.c.b16 %v659, %v658
  %v831 = vpack.c.b16 %v661, %v660
  %v832 = vpack.c.b16 %v663, %v662
  %v833 = vpack.c.b16 %v665, %v664
  %v834 = vpack.c.b16 %v667, %v666
  %v835 = vpack.c.b16 %v669, %v668
  %v836 = vpack.c.b16 %v671, %v670
  %v837 = vpack.c.b16 %v673, %v672
  %v838 = vpack.c.b16 %v675, %v674
  %v839 = vpack.c.b16 %v677, %v676
  %v840 = vpack.c.b16 %v679, %v678
  %v841 = vpack.c.b16 %v681, %v680
  %v842 = vpack.c.b16 %v683, %v682
  %v843 = vpack.c.b16 %v685, %v684
  %v844 = vpack.c.b16 %v687, %v686
  %v845 = vpack.c.b16 %v689, %v688
  %v846 = vpack.c.b16 %v691, %v690
  %v847 = vpack.c.b16 %v693, %v692
  %v848 = vpack.c.b16 %v695, %v694
  %v849 = vpack.c.b16 %v697, %v696
  %v850 = vpack.c.b16 %v699, %v698
  %v851 = vpack.c.b16 %v701, %v700
  %v852 = vpack.c.b16 %v703, %v702
  %v853 = vpack.c.b16 %v705, %v704
  %v854 = vpack.c.b16 %v707, %v706
  %v855 = vpack.c.b16 %v709, %v708
  %v856 = vpack.c.b16 %v711, %v710
  %v857 = vpack.c.b16 %v713, %v712
  %v858 = vpack.c.b16 %v715, %v714
  %v859 = vpack.c.b16 %v717, %v716
  %v860 = vpack.c.b16 %v719, %v718
  %v861 = vpack.c.b16 %v721, %v720
  %v862 = vpack.c.b16 %v723, %v722
  %v863 = vpack.c.b16 %v725, %v724
  %v864 = vpack.c.b16 %v727, %v726
  %v865 = vpack.c.b16 %v729, %v728
  %v866 = vpack.c.b16 %v731, %v730
  %v867 = vpack.c.b16 %v733, %v732
  %v868 = vpack.c.b16 %v735, %v734
  %v869 = vpack.c.b16 %v737, %v736
  %v870 = vpack.c.b16 %v739, %v738
  %v871 = vpack.c.b16 %v741, %v740
  %v872 = vpack.c.b16 %v743, %v742
  %v873 = vpack.c.b16 %v745, %v744
  %v874 = vpack.c.b16 %v747, %v746
  %v875 = vpack.c.b16 %v749, %v748
  %v876 = vpack.c.b16 %v751, %v750
  %v877 = vpack.c.b16 %v753, %v752
  %v878 = vpack.c.b16 %v755, %v754
  %v879 = vpack.c.b16 %v757, %v756
  %v880 = vpack.c.b16 %v759, %v758
  %v881 = vpack.c.b16 %v761, %v760
  %v882 = vpack.c.b16 %v763, %v762
  %v883 = vpack.c.b16 %v765, %v764
  %v884 = vpack.c.b16 %v767, %v766
  %v885 = vpack.c.b16 %v769, %v768
  %v886 = vpack.c.b16 %v771, %v770
  %v887 = vpack.c.b16 %v773, %v772
  %v888 = vpack.c.b16 %v775, %v774
  %v889 = vpack.c.b16 %v777, %v776
  %v890 = vpack.c.b16 %v779, %v778
  %v891 = vpack.c.b16 %v781, %v780
  %v892 = vpack.c.b16 %v783, %v782
  %v893 = vpack.c.b16 %v785, %v784
  %vm1002 = vcmask 523264
  %v1004 = vsel %vm1002, %v338, 0
  %1006 = vmatprep.subr.bf16.mxu0 0
  %1007 = vmatpush1.bf16.msra.mxu0 %v786
  %1008 = vmatprep.subr.bf16.mxu0 0
  %1009 = vmatpush1.bf16.msra.mxu0 %v787
  %1010 = vmatprep.subr.bf16.mxu0 0
  %1011 = vmatpush1.bf16.msra.mxu0 %v788
  %1012 = vmatprep.subr.bf16.mxu0 0
  %1013 = vmatpush1.bf16.msra.mxu0 %v789
  %1014 = vmatprep.subr.bf16.mxu0 0
  %1015 = vmatpush1.bf16.msra.mxu0 %v790
  %1016 = vmatprep.subr.bf16.mxu0 0
  %1017 = vmatpush1.bf16.msra.mxu0 %v791
  %1018 = vmatprep.subr.bf16.mxu0 0
  %1019 = vmatpush1.bf16.msra.mxu0 %v792
  %1020 = vmatprep.subr.bf16.mxu0 0
  %1021 = vmatpush1.bf16.msra.mxu0 %v793
  %1022 = vmatprep.subr.bf16.mxu0 0
  %1023 = vmatpush1.bf16.msra.mxu0 %v794
  %1024 = vmatprep.subr.bf16.mxu0 0
  %1025 = vmatpush1.bf16.msra.mxu0 %v795
  %1026 = vmatprep.subr.bf16.mxu0 0
  %1027 = vmatpush1.bf16.msra.mxu0 %v796
  %1028 = vmatprep.subr.bf16.mxu0 0
  %1029 = vmatpush1.bf16.msra.mxu0 %v797
  %1030 = vmatprep.subr.bf16.mxu0 0
  %1031 = vmatpush1.bf16.msra.mxu0 %v798
  %1032 = vmatprep.subr.bf16.mxu0 0
  %1033 = vmatpush1.bf16.msra.mxu0 %v799
  %1034 = vmatprep.subr.bf16.mxu0 0
  %1035 = vmatpush1.bf16.msra.mxu0 %v800
  %1036 = vmatprep.subr.bf16.mxu0 0
  %1037 = vmatpush1.bf16.msra.mxu0 %v801
  %1038 = vmatprep.mubr.bf16.mxu0 %v282
  %1039 = vmatmul.mubr.bf16.gmra.mrb[0].mxu0 %v268
  %v1040 = vpop.f32.mrb[0].mxu0
  %v1041 = vadd.f32 %v241, %v1040
  %v1042 = vpop.f32.mrb[0].mxu0
  %v1043 = vpop.f32.mrb[0].mxu0
  %v1044 = vpop.f32.mrb[0].mxu0
  %1045 = vdwg.mxu0
  %1046 = vmatprep.subr.bf16.mxu0 0
  %1047 = vmatpush1.bf16.msra.mxu0 %v802
  %1048 = vmatprep.subr.bf16.mxu0 0
  %1049 = vmatpush1.bf16.msra.mxu0 %v803
  %1050 = vmatprep.subr.bf16.mxu0 0
  %1051 = vmatpush1.bf16.msra.mxu0 %v804
  %1052 = vmatprep.subr.bf16.mxu0 0
  %1053 = vmatpush1.bf16.msra.mxu0 %v805
  %1054 = vmatprep.subr.bf16.mxu0 0
  %1055 = vmatpush1.bf16.msra.mxu0 %v806
  %1056 = vmatprep.subr.bf16.mxu0 0
  %1057 = vmatpush1.bf16.msra.mxu0 %v807
  %1058 = vmatprep.subr.bf16.mxu0 0
  %1059 = vmatpush1.bf16.msra.mxu0 %v808
  %1060 = vmatprep.subr.bf16.mxu0 0
  %1061 = vmatpush1.bf16.msra.mxu0 %v809
  %1062 = vmatprep.subr.bf16.mxu0 0
  %1063 = vmatpush1.bf16.msra.mxu0 %v810
  %1064 = vmatprep.subr.bf16.mxu0 0
  %1065 = vmatpush1.bf16.msra.mxu0 %v811
  %1066 = vmatprep.subr.bf16.mxu0 0
  %1067 = vmatpush1.bf16.msra.mxu0 %v812
  %1068 = vmatprep.subr.bf16.mxu0 0
  %1069 = vmatpush1.bf16.msra.mxu0 %v813
  %1070 = vmatprep.subr.bf16.mxu0 0
  %1071 = vmatpush1.bf16.msra.mxu0 %v814
  %1072 = vmatprep.subr.bf16.mxu0 0
  %1073 = vmatpush1.bf16.msra.mxu0 %v815
  %1074 = vmatprep.subr.bf16.mxu0 0
  %1075 = vmatpush1.bf16.msra.mxu0 %v816
  %1076 = vmatprep.subr.bf16.mxu0 0
  %1077 = vmatpush1.bf16.msra.mxu0 %v817
  %1078 = vmatprep.mubr.bf16.mxu0 %v292
  %1079 = vmatmul.mubr.bf16.gmra.mrb[0].mxu0 %v290
  %v1080 = vpop.f32.mrb[0].mxu0
  %v1081 = vadd.f32 %v1041, %v1080
  %v1082 = vpop.f32.mrb[0].mxu0
  %v1083 = vpop.f32.mrb[0].mxu0
  %v1084 = vpop.f32.mrb[0].mxu0
  %1085 = vdwg.mxu0
  %1086 = vmatprep.subr.bf16.mxu0 0
  %1087 = vmatpush1.bf16.msra.mxu0 %v818
  %1088 = vmatprep.subr.bf16.mxu0 0
  %1089 = vmatpush1.bf16.msra.mxu0 %v819
  %1090 = vmatprep.subr.bf16.mxu0 0
  %1091 = vmatpush1.bf16.msra.mxu0 %v820
  %1092 = vmatprep.subr.bf16.mxu0 0
  %1093 = vmatpush1.bf16.msra.mxu0 %v821
  %1094 = vmatprep.subr.bf16.mxu0 0
  %1095 = vmatpush1.bf16.msra.mxu0 %v822
  %1096 = vmatprep.subr.bf16.mxu0 0
  %1097 = vmatpush1.bf16.msra.mxu0 %v823
  %1098 = vmatprep.subr.bf16.mxu0 0
  %1099 = vmatpush1.bf16.msra.mxu0 %v824
  %1100 = vmatprep.subr.bf16.mxu0 0
  %1101 = vmatpush1.bf16.msra.mxu0 %v825
  %1102 = vmatprep.subr.bf16.mxu0 0
  %1103 = vmatpush1.bf16.msra.mxu0 %v826
  %1104 = vmatprep.subr.bf16.mxu0 0
  %1105 = vmatpush1.bf16.msra.mxu0 %v827
  %1106 = vmatprep.subr.bf16.mxu0 0
  %1107 = vmatpush1.bf16.msra.mxu0 %v828
  %1108 = vmatprep.subr.bf16.mxu0 0
  %1109 = vmatpush1.bf16.msra.mxu0 %v829
  %1110 = vmatprep.subr.bf16.mxu0 0
  %1111 = vmatpush1.bf16.msra.mxu0 %v830
  %1112 = vmatprep.subr.bf16.mxu0 0
  %1113 = vmatpush1.bf16.msra.mxu0 %v831
  %1114 = vmatprep.subr.bf16.mxu0 0
  %1115 = vmatpush1.bf16.msra.mxu0 %v832
  %1116 = vmatprep.subr.bf16.mxu0 0
  %1117 = vmatpush1.bf16.msra.mxu0 %v833
  %1118 = vmatprep.mubr.bf16.mxu0 %v289
  %1119 = vmatmul.mubr.bf16.gmra.mrb[0].mxu0 %v275
  %v1120 = vpop.f32.mrb[0].mxu0
  %v1121 = vadd.f32 %v1081, %v1120
  %v1122 = vpop.f32.mrb[0].mxu0
  %v1123 = vpop.f32.mrb[0].mxu0
  %v1124 = vpop.f32.mrb[0].mxu0
  %1125 = vdwg.mxu0
  %1126 = vmatprep.subr.bf16.mxu0 0
  %1127 = vmatpush1.bf16.msra.mxu0 %v834
  %1128 = vmatprep.subr.bf16.mxu0 0
  %1129 = vmatpush1.bf16.msra.mxu0 %v835
  %1130 = vmatprep.subr.bf16.mxu0 0
  %1131 = vmatpush1.bf16.msra.mxu0 %v836
  %1132 = vmatprep.subr.bf16.mxu0 0
  %1133 = vmatpush1.bf16.msra.mxu0 %v837
  %1134 = vmatprep.subr.bf16.mxu0 0
  %1135 = vmatpush1.bf16.msra.mxu0 %v838
  %1136 = vmatprep.subr.bf16.mxu0 0
  %1137 = vmatpush1.bf16.msra.mxu0 %v839
  %1138 = vmatprep.subr.bf16.mxu0 0
  %1139 = vmatpush1.bf16.msra.mxu0 %v840
  %1140 = vmatprep.subr.bf16.mxu0 0
  %1141 = vmatpush1.bf16.msra.mxu0 %v841
  %1142 = vmatprep.subr.bf16.mxu0 0
  %1143 = vmatpush1.bf16.msra.mxu0 %v842
  %1144 = vmatprep.subr.bf16.mxu0 0
  %1145 = vmatpush1.bf16.msra.mxu0 %v843
  %1146 = vmatprep.subr.bf16.mxu0 0
  %1147 = vmatpush1.bf16.msra.mxu0 %v844
  %1148 = vmatprep.subr.bf16.mxu0 0
  %1149 = vmatpush1.bf16.msra.mxu0 %v845
  %1150 = vmatprep.subr.bf16.mxu0 0
  %1151 = vmatpush1.bf16.msra.mxu0 %v846
  %1152 = vmatprep.subr.bf16.mxu0 0
  %1153 = vmatpush1.bf16.msra.mxu0 %v847
  %1154 = vmatprep.subr.bf16.mxu0 0
  %1155 = vmatpush1.bf16.msra.mxu0 %v848
  %1156 = vmatprep.subr.bf16.mxu0 0
  %1157 = vmatpush1.bf16.msra.mxu0 %v849
  %1158 = vmatprep.mubr.bf16.mxu0 %v293
  %1159 = vmatmul.mubr.bf16.gmra.mrb[0].mxu0 %v291
  %v1160 = vpop.f32.mrb[0].mxu0
  %v1161 = vadd.f32 %v1121, %v1160
  %v1162 = vpop.f32.mrb[0].mxu0
  %v1163 = vpop.f32.mrb[0].mxu0
  %v1164 = vpop.f32.mrb[0].mxu0
  %1165 = vdwg.mxu0
  %1166 = vmatprep.subr.bf16.mxu0 0
  %1167 = vmatpush1.bf16.msra.mxu0 %v850
  %1168 = vmatprep.subr.bf16.mxu0 0
  %1169 = vmatpush1.bf16.msra.mxu0 %v851
  %1170 = vmatprep.subr.bf16.mxu0 0
  %1171 = vmatpush1.bf16.msra.mxu0 %v852
  %1172 = vmatprep.subr.bf16.mxu0 0
  %1173 = vmatpush1.bf16.msra.mxu0 %v853
  %1174 = vmatprep.subr.bf16.mxu0 0
  %1175 = vmatpush1.bf16.msra.mxu0 %v854
  %1176 = vmatprep.subr.bf16.mxu0 0
  %1177 = vmatpush1.bf16.msra.mxu0 %v855
  %1178 = vmatprep.subr.bf16.mxu0 0
  %1179 = vmatpush1.bf16.msra.mxu0 %v856
  %1180 = vmatprep.subr.bf16.mxu0 0
  %1181 = vmatpush1.bf16.msra.mxu0 %v857
  %1182 = vmatprep.subr.bf16.mxu0 0
  %1183 = vmatpush1.bf16.msra.mxu0 %v858
  %1184 = vmatprep.subr.bf16.mxu0 0
  %1185 = vmatpush1.bf16.msra.mxu0 %v859
  %1186 = vmatprep.subr.bf16.mxu0 0
  %1187 = vmatpush1.bf16.msra.mxu0 %v860
  %1188 = vmatprep.subr.bf16.mxu0 0
  %1189 = vmatpush1.bf16.msra.mxu0 %v861
  %1190 = vmatprep.subr.bf16.mxu0 0
  %1191 = vmatpush1.bf16.msra.mxu0 %v862
  %1192 = vmatprep.subr.bf16.mxu0 0
  %1193 = vmatpush1.bf16.msra.mxu0 %v863
  %1194 = vmatprep.subr.bf16.mxu0 0
  %1195 = vmatpush1.bf16.msra.mxu0 %v864
  %1196 = vmatprep.subr.bf16.mxu0 0
  %1197 = vmatpush1.bf16.msra.mxu0 %v865
  %1198 = vmatprep.mubr.bf16.mxu0 %v331
  %1199 = vmatmul.mubr.bf16.gmra.mrb[0].mxu0 %v317
  %v1200 = vpop.f32.mrb[0].mxu0
  %v1201 = vadd.f32 %v1161, %v1200
  %v1202 = vpop.f32.mrb[0].mxu0
  %v1203 = vpop.f32.mrb[0].mxu0
  %v1204 = vpop.f32.mrb[0].mxu0
  %1205 = vdwg.mxu0
  %1206 = vmatprep.subr.bf16.mxu0 0
  %1207 = vmatpush1.bf16.msra.mxu0 %v866
  %1208 = vmatprep.subr.bf16.mxu0 0
  %1209 = vmatpush1.bf16.msra.mxu0 %v867
  %1210 = vmatprep.subr.bf16.mxu0 0
  %1211 = vmatpush1.bf16.msra.mxu0 %v868
  %1212 = vmatprep.subr.bf16.mxu0 0
  %1213 = vmatpush1.bf16.msra.mxu0 %v869
  %1214 = vmatprep.subr.bf16.mxu0 0
  %1215 = vmatpush1.bf16.msra.mxu0 %v870
  %1216 = vmatprep.subr.bf16.mxu0 0
  %1217 = vmatpush1.bf16.msra.mxu0 %v871
  %1218 = vmatprep.subr.bf16.mxu0 0
  %1219 = vmatpush1.bf16.msra.mxu0 %v872
  %1220 = vmatprep.subr.bf16.mxu0 0
  %1221 = vmatpush1.bf16.msra.mxu0 %v873
  %1222 = vmatprep.subr.bf16.mxu0 0
  %1223 = vmatpush1.bf16.msra.mxu0 %v874
  %1224 = vmatprep.subr.bf16.mxu0 0
  %1225 = vmatpush1.bf16.msra.mxu0 %v875
  %1226 = vmatprep.subr.bf16.mxu0 0
  %1227 = vmatpush1.bf16.msra.mxu0 %v876
  %1228 = vmatprep.subr.bf16.mxu0 0
  %1229 = vmatpush1.bf16.msra.mxu0 %v877
  %1230 = vmatprep.subr.bf16.mxu0 0
  %1231 = vmatpush1.bf16.msra.mxu0 %v878
  %1232 = vmatprep.subr.bf16.mxu0 0
  %1233 = vmatpush1.bf16.msra.mxu0 %v879
  %1234 = vmatprep.subr.bf16.mxu0 0
  %1235 = vmatpush1.bf16.msra.mxu0 %v880
  %1236 = vmatprep.subr.bf16.mxu0 0
  %1237 = vmatpush1.bf16.msra.mxu0 %v881
  %1238 = vmatprep.mubr.bf16.mxu0 %v340
  %1239 = vmatmul.mubr.bf16.gmra.mrb[0].mxu0 %v339
  %v1240 = vpop.f32.mrb[0].mxu0
  %v1241 = vadd.f32 %v1201, %v1240
  %v1242 = vpop.f32.mrb[0].mxu0
  %v1243 = vpop.f32.mrb[0].mxu0
  %v1244 = vpop.f32.mrb[0].mxu0
  %1245 = vdwg.mxu0
  %1246 = vmatprep.subr.bf16.mxu0 0
  %1247 = vmatpush1.bf16.msra.mxu0 %v882
  %1248 = vmatprep.subr.bf16.mxu0 0
  %1249 = vmatpush1.bf16.msra.mxu0 %v883
  %1250 = vmatprep.subr.bf16.mxu0 0
  %1251 = vmatpush1.bf16.msra.mxu0 %v884
  %1252 = vmatprep.subr.bf16.mxu0 0
  %1253 = vmatpush1.bf16.msra.mxu0 %v885
  %1254 = vmatprep.subr.bf16.mxu0 0
  %1255 = vmatpush1.bf16.msra.mxu0 %v886
  %1256 = vmatprep.subr.bf16.mxu0 0
  %1257 = vmatpush1.bf16.msra.mxu0 %v887
  %1258 = vmatprep.subr.bf16.mxu0 0
  %1259 = vmatpush1.bf16.msra.mxu0 %v888
  %1260 = vmatprep.subr.bf16.mxu0 0
  %1261 = vmatpush1.bf16.msra.mxu0 %v889
  %1262 = vmatprep.subr.bf16.mxu0 0
  %1263 = vmatpush1.bf16.msra.mxu0 %v890
  %1264 = vmatprep.subr.bf16.mxu0 0
  %1265 = vmatpush1.bf16.msra.mxu0 %v891
  %1266 = vmatprep.subr.bf16.mxu0 0
  %1267 = vmatpush1.bf16.msra.mxu0 %v892
  %1268 = vmatprep.subr.bf16.mxu0 0
  %1269 = vmatpush1.bf16.msra.mxu0 %v893
  %1270 = vmatprep.subr.bf16.mxu0 0
  %1271 = vmatpush1.bf16.msra.mxu0 0
  %1272 = vmatprep.subr.bf16.mxu0 0
  %1273 = vmatpush1.bf16.msra.mxu0 0
  %1274 = vmatprep.subr.bf16.mxu0 0
  %1275 = vmatpush1.bf16.msra.mxu0 0
  %1276 = vmatprep.subr.bf16.mxu0 0
  %1277 = vmatpush1.bf16.msra.mxu0 0
  %1278 = vmatprep.mubr.bf16.mxu0 %v1004
  %1279 = vmatmul.mubr.bf16.gmra.mrb[0].mxu0 %v324
  %v1280 = vpop.f32.mrb[0].mxu0
  %v1281 = vadd.f32 %v1241, %v1280
  %v1282 = vpop.f32.mrb[0].mxu0
  %v1283 = vpop.f32.mrb[0].mxu0
  %v1284 = vpop.f32.mrb[0].mxu0
  %1285 = vdwg.mxu0
  %1286 = vst [vmem:[%s3] sm:$0x3] %v1281
  %v1287 = vlaneseq
  %v1288 = vshrl.u32 %v1287, 7
  %s1289 = smul.u32 0, 2
  %v1290 = vstv %s1289
  %v1291 = vadd.s32 %v1288, %v1290
  %vm1292 = vcmp.lt.s32.totalorder %v1291, 2
  %v1293 = vsel %vm1292, %v1281, 0.0
  %vm1294 = vcmask 1041408
  %v1295 = vsel %vm1294, %v1293, 0.0
  %v1296 = vrot.slane %v1295, 4
  %v1297 = vadd.f32 %v1295, %v1296
  %v1298 = vrot.slane %v1297, 2
  %v1299 = vadd.f32 %v1297, %v1298
  %v1300 = vrot.slane %v1299, 1
  %v1301 = vadd.f32 %v1299, %v1300
  %1302 = vst [vmem:[%s4] sm:$0x1] %v1301
  %v1303 = vmul.f32 %v1293, %v1293
  %v1304 = vsel %vm1294, %v1303, 0.0
  %v1305 = vrot.slane %v1304, 4
  %v1306 = vadd.f32 %v1304, %v1305
  %v1307 = vrot.slane %v1306, 2
  %v1308 = vadd.f32 %v1306, %v1307
  %v1309 = vrot.slane %v1308, 1
  %v1310 = vadd.f32 %v1308, %v1309
  %1311 = vst [vmem:[%s5] sm:$0x1] %v1310
  // Predicated region
  $region14: #{ali_swin3d_forward.13} parent=0 // pred_check
    _
  $region15: #{ali_swin3d_forward.13} parent=0 // pred_check_branch
    %1313 = sbr.rel (0) target = $region17
  $region16: #{ali_swin3d_forward.13} parent=0 // pred_region
    _
  $region17: #{ali_swin3d_forward.13} parent=0 // pred_fallthru
    _
  // Predicated region
  $region18: #{ali_swin3d_forward.13} parent=0 // pred_check
    _
  $region19: #{ali_swin3d_forward.13} parent=0 // pred_check_branch
    %1315 = sbr.rel (0) target = $region21
  $region20: #{ali_swin3d_forward.13} parent=0 // pred_region
    _
  $region21: #{ali_swin3d_forward.13} parent=0 // pred_fallthru
    _
  // Predicated region
  $region22: #{ali_swin3d_forward.13} parent=0 // pred_check
    _
  $region23: #{ali_swin3d_forward.13} parent=0 // pred_check_branch
    %1317 = sbr.rel (0) target = $region25
  $region24: #{ali_swin3d_forward.13} parent=0 // pred_region
    _
  $region25: #{ali_swin3d_forward.13} parent=0 // pred_fallthru
    _
  // Predicated region
  $region26: #{ali_swin3d_forward.13} parent=0 // pred_check
    _
  $region27: #{ali_swin3d_forward.13} parent=0 // pred_check_branch
    %1319 = sbr.rel (0) target = $region29
  $region28: #{ali_swin3d_forward.13} parent=0 // pred_region
    _
  $region29: #{ali_swin3d_forward.13} parent=0 // pred_fallthru
    _
  // Predicated region
  $region30: #{ali_swin3d_forward.13} parent=0 // pred_check
    _
  $region31: #{ali_swin3d_forward.13} parent=0 // pred_check_branch
    %1321 = sbr.rel (0) target = $region33
  $region32: #{ali_swin3d_forward.13} parent=0 // pred_region
    _
  $region33: #{ali_swin3d_forward.13} parent=0 // pred_fallthru
    _
  // Predicated region
  $region34: #{ali_swin3d_forward.13} parent=0 // pred_check
    _
  $region35: #{ali_swin3d_forward.13} parent=0 // pred_check_branch
    %1323 = sbr.rel (0) target = $region37
  $region36: #{ali_swin3d_forward.13} parent=0 // pred_region
    _
  $region37: #{ali_swin3d_forward.13} parent=0 // pred_fallthru
    _

</llo_original>
